<compile_context>
chip_gen: v7x
topology: tpu7x:2x2x1
jax: 0.10.0
libtpu: 0.0.40
codegen_flags: <defaults>
</compile_context>

<pallas_src>
import functools
import math
import re
import string

import numpy as np
import jax
import jax.numpy as jnp
from jax.experimental import pallas as pl
from jax.experimental.pallas import tpu as pltpu

# ----------------------------- configuration --------------------------------
VOCAB = 178          # PL-BERT phoneme symbol table size
EMB = 16             # ALBERT factorized embedding size
HID = 32             # ALBERT hidden size
NH = 4               # attention heads
DH = HID // NH       # head dim
INTER = 64           # ALBERT intermediate (FFN) size
NLAYERS = 2          # shared layer repeated NLAYERS times
MAX_POS = 64
SPACE_ID = 16        # TextCleaner word_index_dictionary[' '] (synthetic)
HIDDEN_DIM = 16      # TextEncoder hidden_dim
SEQ_DIM = HIDDEN_DIM # seq_dim defaults to hidden_dim
BERT_EPS = 1e-12
LN_EPS = 1e-5


# ------------------------------- fused kernel --------------------------------
def _layer_norm(x, g, b, eps):
    mu = jnp.mean(x, axis=-1, keepdims=True)
    var = jnp.mean((x - mu) ** 2, axis=-1, keepdims=True)
    return (x - mu) * jax.lax.rsqrt(var + eps) * g + b


def _fused_text_encoder_kernel(emb_ref, bias_ref, mask_ref, *refs):
    """One grid step = one batch element; everything stays in VMEM."""
    (emb_ln_g, emb_ln_b, map_w, map_b,
     qkv_w, qkv_b, ao_w, ao_b, attn_ln_g, attn_ln_b,
     ffn_w, ffn_b, ffn_out_w, ffn_out_b, full_ln_g, full_ln_b,
     glob_g, glob_b, fcg_w, fcg_b,
     seqn_g, seqn_b, fcs_w, fcs_b) = refs[:24]
    out_global_ref, out_seq_ref = refs[24], refs[25]

    # --- ALBERT embeddings: LayerNorm + factorized projection to hidden ---
    x = _layer_norm(emb_ref[0], emb_ln_g[...], emb_ln_b[...], BERT_EPS)   # (T, EMB)
    h = jnp.dot(x, map_w[...], preferred_element_type=jnp.float32) + map_b[...]

    bias2d = bias_ref[0]                      # (1, T) additive attention bias
    scale = 1.0 / math.sqrt(DH)

    w_qkv, b_qkv = qkv_w[...], qkv_b[...]
    w_ao, b_ao = ao_w[...], ao_b[...]
    g_attn, b_attn = attn_ln_g[...], attn_ln_b[...]
    w_ffn, b_ffn = ffn_w[...], ffn_b[...]
    w_ffo, b_ffo = ffn_out_w[...], ffn_out_b[...]
    g_full, b_full = full_ln_g[...], full_ln_b[...]

    # --- shared ALBERT layer applied NLAYERS times (weights reused in VMEM) ---
    for _ in range(NLAYERS):
        # fused Q/K/V projection: one (T, HID) @ (HID, 3*HID) matmul
        qkv = jnp.dot(h, w_qkv, preferred_element_type=jnp.float32) + b_qkv

        ctx_heads = []
        for hd in range(NH):                  # static unroll over heads
            q_h = qkv[:, hd * DH:(hd + 1) * DH]
            k_h = qkv[:, HID + hd * DH:HID + (hd + 1) * DH]
            v_h = qkv[:, 2 * HID + hd * DH:2 * HID + (hd + 1) * DH]
            s = jnp.dot(q_h, k_h.T, preferred_element_type=jnp.float32) * scale
            s = s + bias2d
            s = s - jnp.max(s, axis=-1, keepdims=True)
            p = jnp.exp(s)
            p = p * pl.reciprocal(jnp.sum(p, axis=-1, keepdims=True), approx=True)
            ctx_heads.append(jnp.dot(p, v_h, preferred_element_type=jnp.float32))
        ctx = jnp.concatenate(ctx_heads, axis=-1)           # (T, HID)

        attn_out = jnp.dot(ctx, w_ao, preferred_element_type=jnp.float32) + b_ao
        h = _layer_norm(h + attn_out, g_attn, b_attn, BERT_EPS)

        ffn = jnp.dot(h, w_ffn, preferred_element_type=jnp.float32) + b_ffn
        ffn = jax.nn.gelu(ffn, approximate=True)            # ALBERT "gelu_new"
        ffn_out = jnp.dot(ffn, w_ffo, preferred_element_type=jnp.float32) + b_ffo
        h = _layer_norm(h + ffn_out, g_full, b_full, BERT_EPS)

    # --- global head: CLS token (row 0) -> LayerNorm -> fc_global ---
    gfull = _layer_norm(h, glob_g[...], glob_b[...], LN_EPS)
    gfull = jnp.dot(gfull, fcg_w[...], preferred_element_type=jnp.float32) + fcg_b[...]
    out_global_ref[0] = gfull[0:1, :]

    # --- sequence head: LayerNorm -> fc_seq -> masked_fill(key_mask, 0) ---
    sn = _layer_norm(h, seqn_g[...], seqn_b[...], LN_EPS)
    seq = jnp.dot(sn, fcs_w[...], preferred_element_type=jnp.float32) + fcs_b[...]
    seq = jnp.where(mask_ref[0] > 0.5, 0.0, seq)
    out_seq_ref[0] = seq


# ------------------------- parameter construction -----------------------------
def make_params(key):
    ks = list(jax.random.split(key, 32))
    nxt = lambda: ks.pop()

    def normal(shape, std=0.02):
        return (std * jax.random.normal(nxt(), shape)).astype(jnp.float32)

    def xavier(shape):
        fan_in, fan_out = shape
        lim = math.sqrt(6.0 / (fan_in + fan_out))
        return jax.random.uniform(nxt(), shape, jnp.float32, -lim, lim)

    p = {
        # ALBERT embeddings
        "word_emb": normal((VOCAB, EMB)),
        "pos_emb": normal((MAX_POS, EMB)),
        "type_emb": normal((2, EMB)),
        "emb_ln_g": jnp.ones((EMB,), jnp.float32),
        "emb_ln_b": jnp.zeros((EMB,), jnp.float32),
        "map_w": normal((EMB, HID)),
        "map_b": jnp.zeros((HID,), jnp.float32),
        # shared ALBERT layer
        "q_w": normal((HID, HID)), "q_b": jnp.zeros((HID,), jnp.float32),
        "k_w": normal((HID, HID)), "k_b": jnp.zeros((HID,), jnp.float32),
        "v_w": normal((HID, HID)), "v_b": jnp.zeros((HID,), jnp.float32),
        "ao_w": normal((HID, HID)), "ao_b": jnp.zeros((HID,), jnp.float32),
        "attn_ln_g": jnp.ones((HID,), jnp.float32),
        "attn_ln_b": jnp.zeros((HID,), jnp.float32),
        "ffn_w": normal((HID, INTER)), "ffn_b": jnp.zeros((INTER,), jnp.float32),
        "ffn_out_w": normal((INTER, HID)), "ffn_out_b": jnp.zeros((HID,), jnp.float32),
        "full_ln_g": jnp.ones((HID,), jnp.float32),
        "full_ln_b": jnp.zeros((HID,), jnp.float32),
        # TextEncoder head
        "global_norm_g": jnp.ones((HID,), jnp.float32),
        "global_norm_b": jnp.zeros((HID,), jnp.float32),
        "seq_norm_g": jnp.ones((HID,), jnp.float32),
        "seq_norm_b": jnp.zeros((HID,), jnp.float32),
        "fc_global_w": xavier((HID, HIDDEN_DIM)),
        "fc_global_b": jnp.zeros((HIDDEN_DIM,), jnp.float32),
        "fc_seq_w": xavier((HID, SEQ_DIM)),
        "fc_seq_b": jnp.zeros((SEQ_DIM,), jnp.float32),
    }
    return p


# ----------------------------- forward pass -----------------------------------
@jax.jit
def text_encoder_forward(phoneme_ids, attention_mask, params):
    B, T = phoneme_ids.shape
    # Guard (review correctness note): pos_emb only covers MAX_POS positions.
    assert T <= MAX_POS, f"sequence length {T} exceeds MAX_POS={MAX_POS}"

    # Pad tokens to a sublane-aligned length; padded positions have mask==0 so
    # they are excluded from attention and zeroed by the key_mask fill.
    T_pad = max(8, ((T + 7) // 8) * 8)
    pad = T_pad - T
    ids_p = jnp.pad(phoneme_ids, ((0, 0), (0, pad)))
    amask_p = jnp.pad(attention_mask, ((0, 0), (0, pad)))

    # TODO(synk): the embedding row gather stays in XLA (data-dependent gather);
    # everything downstream runs inside the single fused Pallas kernel.
    we = params["word_emb"][ids_p]                          # (B, T_pad, EMB)
    pe = params["pos_emb"][:T_pad][None, :, :]              # (1, T_pad, EMB)
    te = params["type_emb"][0][None, None, :]               # (1, 1, EMB)
    emb = (we + pe + te).astype(jnp.float32)                # (B, T_pad, EMB)

    # extended attention mask: (1 - mask) * large negative, one row per batch
    bias = ((1.0 - amask_p) * -1e9).astype(jnp.float32).reshape(B, 1, T_pad)
    key_mask_p = (amask_p == 0) | (ids_p == SPACE_ID)       # (B, T_pad) bool
    mask_col = key_mask_p.astype(jnp.float32).reshape(B, T_pad, 1)

    # concatenated Q/K/V weights -> one matmul inside the kernel
    qkv_w = jnp.concatenate([params["q_w"], params["k_w"], params["v_w"]], axis=1)
    qkv_b = jnp.concatenate([params["q_b"], params["k_b"], params["v_b"]], axis=0)

    row = lambda v: v.reshape(1, -1)
    weights = [
        row(params["emb_ln_g"]), row(params["emb_ln_b"]),
        params["map_w"], row(params["map_b"]),
        qkv_w, row(qkv_b),
        params["ao_w"], row(params["ao_b"]),
        row(params["attn_ln_g"]), row(params["attn_ln_b"]),
        params["ffn_w"], row(params["ffn_b"]),
        params["ffn_out_w"], row(params["ffn_out_b"]),
        row(params["full_ln_g"]), row(params["full_ln_b"]),
        row(params["global_norm_g"]), row(params["global_norm_b"]),
        params["fc_global_w"], row(params["fc_global_b"]),
        row(params["seq_norm_g"]), row(params["seq_norm_b"]),
        params["fc_seq_w"], row(params["fc_seq_b"]),
    ]

    act_specs = [
        pl.BlockSpec((1, T_pad, EMB), lambda b: (b, 0, 0)),   # emb
        pl.BlockSpec((1, 1, T_pad), lambda b: (b, 0, 0)),     # attention bias
        pl.BlockSpec((1, T_pad, 1), lambda b: (b, 0, 0)),     # key-mask column
    ]
    # Weight blocks: full arrays, constant block index -> fetched once, kept in VMEM.
    weight_specs = [pl.BlockSpec(w.shape, lambda b: (0, 0)) for w in weights]

    out_shape = (
        jax.ShapeDtypeStruct((B, 1, HIDDEN_DIM), jnp.float32),
        jax.ShapeDtypeStruct((B, T_pad, SEQ_DIM), jnp.float32),
    )
    out_specs = (
        pl.BlockSpec((1, 1, HIDDEN_DIM), lambda b: (b, 0, 0)),
        pl.BlockSpec((1, T_pad, SEQ_DIM), lambda b: (b, 0, 0)),
    )

    global_emb, seq_emb = pl.pallas_call(
        _fused_text_encoder_kernel,
        out_shape=out_shape,
        grid=(B,),
        in_specs=act_specs + weight_specs,
        out_specs=out_specs,
        compiler_params=pltpu.CompilerParams(
            dimension_semantics=("parallel",),   # batch split across TCs on v7x
        ),
    )(emb, bias, mask_col, *weights)

    global_emb = global_emb[:, 0, :]            # (B, HIDDEN_DIM)
    seq_emb = seq_emb[:, :T, :]                 # (B, T, SEQ_DIM)
    key_mask = key_mask_p[:, :T]                # (B, T) bool
    return global_emb, seq_emb, key_mask


# ------------------------- host-side tokenization ------------------------------
def simple_tokenize(sents):
    # TODO(synk): OpenPhonemizer + TextCleaner + TransfoXL tokenizer are host-side
    # string models with no Pallas equivalent; replaced by a deterministic
    # char->id map that mimics the original padding / uniq-filter logic.
    punct_re = re.compile(f"[{re.escape(string.punctuation)}]")
    sents = [punct_re.sub("", s.lower()).strip() for s in sents]
    batched = []
    for sent in sents:
        if not sent or not sent.strip():
            batched.append([0])
            continue
        ids_raw = [SPACE_ID if c == " " else (ord(c) % (VOCAB - 20)) + 20 for c in sent]
        seen, ids = set(), []
        for t in ids_raw:            # uniq-filter (first occurrence kept)
            if t not in seen:
                ids.append(t)
                seen.add(t)
        batched.append(ids)
    B = len(sents)
    max_len = max(len(x) for x in batched)
    pid = np.zeros((B, max_len), dtype=np.int32)
    msk = np.zeros((B, max_len), dtype=np.float32)
    for i, ids in enumerate(batched):
        pid[i, : len(ids)] = ids
        msk[i, : len(ids)] = 1.0
    return jnp.asarray(pid), jnp.asarray(msk)


# ------------------------------------ main -------------------------------------
if __name__ == "__main__":
    key = jax.random.PRNGKey(0)
    params = make_params(key)

    sentences = ["Hello, world!", "The quick brown fox."]
    phoneme_ids, attention_mask = simple_tokenize(sentences)

    global_emb, seq_emb, key_mask = text_encoder_forward(
        phoneme_ids, attention_mask, params)
    jax.block_until_ready((global_emb, seq_emb, key_mask))

    assert global_emb.shape == (len(sentences), HIDDEN_DIM)
    assert seq_emb.shape == (len(sentences), phoneme_ids.shape[1], SEQ_DIM)
    assert key_mask.shape == phoneme_ids.shape
    # masked positions must be exactly zero
    assert bool(jnp.all(jnp.where(key_mask[..., None], seq_emb == 0.0, True)))
    assert bool(jnp.all(jnp.isfinite(global_emb))) and bool(jnp.all(jnp.isfinite(seq_emb)))

    print("KERNEL_OK")
</pallas_src>

<mosaic_0001>
module attributes {stable_mosaic.version = 11 : i64} {
  func.func @_fused_text_encoder_kernel(%arg0: i32, %arg1: memref<1x16x16xf32, #tpu.memory_space<vmem>>, %arg2: memref<1x1x16xf32, #tpu.memory_space<vmem>>, %arg3: memref<1x16x1xf32, #tpu.memory_space<vmem>>, %arg4: memref<1x16xf32, #tpu.memory_space<vmem>>, %arg5: memref<1x16xf32, #tpu.memory_space<vmem>>, %arg6: memref<16x32xf32, #tpu.memory_space<vmem>>, %arg7: memref<1x32xf32, #tpu.memory_space<vmem>>, %arg8: memref<32x96xf32, #tpu.memory_space<vmem>>, %arg9: memref<1x96xf32, #tpu.memory_space<vmem>>, %arg10: memref<32x32xf32, #tpu.memory_space<vmem>>, %arg11: memref<1x32xf32, #tpu.memory_space<vmem>>, %arg12: memref<1x32xf32, #tpu.memory_space<vmem>>, %arg13: memref<1x32xf32, #tpu.memory_space<vmem>>, %arg14: memref<32x64xf32, #tpu.memory_space<vmem>>, %arg15: memref<1x64xf32, #tpu.memory_space<vmem>>, %arg16: memref<64x32xf32, #tpu.memory_space<vmem>>, %arg17: memref<1x32xf32, #tpu.memory_space<vmem>>, %arg18: memref<1x32xf32, #tpu.memory_space<vmem>>, %arg19: memref<1x32xf32, #tpu.memory_space<vmem>>, %arg20: memref<1x32xf32, #tpu.memory_space<vmem>>, %arg21: memref<1x32xf32, #tpu.memory_space<vmem>>, %arg22: memref<32x16xf32, #tpu.memory_space<vmem>>, %arg23: memref<1x16xf32, #tpu.memory_space<vmem>>, %arg24: memref<1x32xf32, #tpu.memory_space<vmem>>, %arg25: memref<1x32xf32, #tpu.memory_space<vmem>>, %arg26: memref<32x16xf32, #tpu.memory_space<vmem>>, %arg27: memref<1x16xf32, #tpu.memory_space<vmem>>, %arg28: memref<1x1x16xf32, #tpu.memory_space<vmem>>, %arg29: memref<1x16x16xf32, #tpu.memory_space<vmem>>) attributes {dimension_semantics = [#tpu.dimension_semantics<parallel>], iteration_bounds = array<i64: 2>, scalar_prefetch = 0 : i64, scratch_operands = 0 : i64, tpu.core_type = #tpu.core_type<tc>, window_params = [{transform_indices = @transform_0, window_bounds = array<i64: 1, 16, 16>}, {transform_indices = @transform_1, window_bounds = array<i64: 1, 1, 16>}, {transform_indices = @transform_2, window_bounds = array<i64: 1, 16, 1>}, {pipeline_mode = #tpu.pipeline_mode<synchronous>, transform_indices = @transform_3, window_bounds = array<i64: 1, 16>}, {pipeline_mode = #tpu.pipeline_mode<synchronous>, transform_indices = @transform_4, window_bounds = array<i64: 1, 16>}, {pipeline_mode = #tpu.pipeline_mode<synchronous>, transform_indices = @transform_5, window_bounds = array<i64: 16, 32>}, {pipeline_mode = #tpu.pipeline_mode<synchronous>, transform_indices = @transform_6, window_bounds = array<i64: 1, 32>}, {pipeline_mode = #tpu.pipeline_mode<synchronous>, transform_indices = @transform_7, window_bounds = array<i64: 32, 96>}, {pipeline_mode = #tpu.pipeline_mode<synchronous>, transform_indices = @transform_8, window_bounds = array<i64: 1, 96>}, {pipeline_mode = #tpu.pipeline_mode<synchronous>, transform_indices = @transform_9, window_bounds = array<i64: 32, 32>}, {pipeline_mode = #tpu.pipeline_mode<synchronous>, transform_indices = @transform_10, window_bounds = array<i64: 1, 32>}, {pipeline_mode = #tpu.pipeline_mode<synchronous>, transform_indices = @transform_11, window_bounds = array<i64: 1, 32>}, {pipeline_mode = #tpu.pipeline_mode<synchronous>, transform_indices = @transform_12, window_bounds = array<i64: 1, 32>}, {pipeline_mode = #tpu.pipeline_mode<synchronous>, transform_indices = @transform_13, window_bounds = array<i64: 32, 64>}, {pipeline_mode = #tpu.pipeline_mode<synchronous>, transform_indices = @transform_14, window_bounds = array<i64: 1, 64>}, {pipeline_mode = #tpu.pipeline_mode<synchronous>, transform_indices = @transform_15, window_bounds = array<i64: 64, 32>}, {pipeline_mode = #tpu.pipeline_mode<synchronous>, transform_indices = @transform_16, window_bounds = array<i64: 1, 32>}, {pipeline_mode = #tpu.pipeline_mode<synchronous>, transform_indices = @transform_17, window_bounds = array<i64: 1, 32>}, {pipeline_mode = #tpu.pipeline_mode<synchronous>, transform_indices = @transform_18, window_bounds = array<i64: 1, 32>}, {pipeline_mode = #tpu.pipeline_mode<synchronous>, transform_indices = @transform_19, window_bounds = array<i64: 1, 32>}, {pipeline_mode = #tpu.pipeline_mode<synchronous>, transform_indices = @transform_20, window_bounds = array<i64: 1, 32>}, {pipeline_mode = #tpu.pipeline_mode<synchronous>, transform_indices = @transform_21, window_bounds = array<i64: 32, 16>}, {pipeline_mode = #tpu.pipeline_mode<synchronous>, transform_indices = @transform_22, window_bounds = array<i64: 1, 16>}, {pipeline_mode = #tpu.pipeline_mode<synchronous>, transform_indices = @transform_23, window_bounds = array<i64: 1, 32>}, {pipeline_mode = #tpu.pipeline_mode<synchronous>, transform_indices = @transform_24, window_bounds = array<i64: 1, 32>}, {pipeline_mode = #tpu.pipeline_mode<synchronous>, transform_indices = @transform_25, window_bounds = array<i64: 32, 16>}, {pipeline_mode = #tpu.pipeline_mode<synchronous>, transform_indices = @transform_26, window_bounds = array<i64: 1, 16>}, {transform_indices = @transform_27, window_bounds = array<i64: 1, 1, 16>}, {transform_indices = @transform_28, window_bounds = array<i64: 1, 16, 16>}]} {
    %c0 = arith.constant 0 : index
    %c0_0 = arith.constant 0 : index
    %c0_1 = arith.constant 0 : index
    %0 = vector.load %arg1[%c0, %c0_0, %c0_1] : memref<1x16x16xf32, #tpu.memory_space<vmem>>, vector<1x16x16xf32>
    %1 = vector.shape_cast %0 : vector<1x16x16xf32> to vector<16x16xf32>
    %c0_2 = arith.constant 0 : index
    %c0_3 = arith.constant 0 : index
    %2 = vector.load %arg4[%c0_2, %c0_3] : memref<1x16xf32, #tpu.memory_space<vmem>>, vector<1x16xf32>
    %c0_4 = arith.constant 0 : index
    %c0_5 = arith.constant 0 : index
    %3 = vector.load %arg5[%c0_4, %c0_5] : memref<1x16xf32, #tpu.memory_space<vmem>>, vector<1x16xf32>
    %cst = arith.constant dense<0.000000e+00> : vector<16xf32>
    %4 = vector.multi_reduction <add>, %1, %cst [1] : vector<16x16xf32> to vector<16xf32>
    %5 = vector.shape_cast %4 : vector<16xf32> to vector<16x1xf32>
    %cst_6 = arith.constant 1.600000e+01 : f32
    %6 = vector.broadcast %cst_6 : f32 to vector<16x1xf32>
    %7 = arith.divf %5, %6 : vector<16x1xf32>
    %8 = vector.broadcast %7 : vector<16x1xf32> to vector<16x16xf32>
    %9 = arith.subf %1, %8 : vector<16x16xf32>
    %10 = arith.mulf %9, %9 : vector<16x16xf32>
    %cst_7 = arith.constant dense<0.000000e+00> : vector<16xf32>
    %11 = vector.multi_reduction <add>, %10, %cst_7 [1] : vector<16x16xf32> to vector<16xf32>
    %12 = vector.shape_cast %11 : vector<16xf32> to vector<16x1xf32>
    %cst_8 = arith.constant 1.600000e+01 : f32
    %13 = vector.broadcast %cst_8 : f32 to vector<16x1xf32>
    %14 = arith.divf %12, %13 : vector<16x1xf32>
    %15 = vector.broadcast %7 : vector<16x1xf32> to vector<16x16xf32>
    %16 = arith.subf %1, %15 : vector<16x16xf32>
    %cst_9 = arith.constant 9.99999996E-13 : f32
    %17 = vector.broadcast %cst_9 : f32 to vector<16x1xf32>
    %18 = arith.addf %14, %17 : vector<16x1xf32>
    %19 = math.rsqrt %18 : vector<16x1xf32>
    %20 = vector.broadcast %19 : vector<16x1xf32> to vector<16x16xf32>
    %21 = arith.mulf %16, %20 : vector<16x16xf32>
    %22 = vector.broadcast %2 : vector<1x16xf32> to vector<16x16xf32>
    %23 = arith.mulf %21, %22 : vector<16x16xf32>
    %24 = vector.broadcast %3 : vector<1x16xf32> to vector<16x16xf32>
    %25 = arith.addf %23, %24 : vector<16x16xf32>
    %c0_10 = arith.constant 0 : index
    %c0_11 = arith.constant 0 : index
    %26 = vector.load %arg6[%c0_10, %c0_11] : memref<16x32xf32, #tpu.memory_space<vmem>>, vector<16x32xf32>
    %cst_12 = arith.constant dense<0.000000e+00> : vector<16x32xf32>
    %27 = tpu.matmul %25, %26, %cst_12 {dimension_numbers = #tpu.dot_dimension_numbers<[1], [0], [0], [1], [0, 0, 1, 1], [], []>} : vector<16x16xf32>, vector<16x32xf32>, vector<16x32xf32> -> vector<16x32xf32>
    %c0_13 = arith.constant 0 : index
    %c0_14 = arith.constant 0 : index
    %28 = vector.load %arg7[%c0_13, %c0_14] : memref<1x32xf32, #tpu.memory_space<vmem>>, vector<1x32xf32>
    %29 = vector.broadcast %28 : vector<1x32xf32> to vector<16x32xf32>
    %30 = arith.addf %27, %29 : vector<16x32xf32>
    %c0_15 = arith.constant 0 : index
    %c0_16 = arith.constant 0 : index
    %c0_17 = arith.constant 0 : index
    %31 = vector.load %arg2[%c0_15, %c0_16, %c0_17] : memref<1x1x16xf32, #tpu.memory_space<vmem>>, vector<1x1x16xf32>
    %32 = vector.shape_cast %31 : vector<1x1x16xf32> to vector<1x16xf32>
    %c0_18 = arith.constant 0 : index
    %c0_19 = arith.constant 0 : index
    %33 = vector.load %arg8[%c0_18, %c0_19] : memref<32x96xf32, #tpu.memory_space<vmem>>, vector<32x96xf32>
    %c0_20 = arith.constant 0 : index
    %c0_21 = arith.constant 0 : index
    %34 = vector.load %arg9[%c0_20, %c0_21] : memref<1x96xf32, #tpu.memory_space<vmem>>, vector<1x96xf32>
    %c0_22 = arith.constant 0 : index
    %c0_23 = arith.constant 0 : index
    %35 = vector.load %arg10[%c0_22, %c0_23] : memref<32x32xf32, #tpu.memory_space<vmem>>, vector<32x32xf32>
    %c0_24 = arith.constant 0 : index
    %c0_25 = arith.constant 0 : index
    %36 = vector.load %arg11[%c0_24, %c0_25] : memref<1x32xf32, #tpu.memory_space<vmem>>, vector<1x32xf32>
    %c0_26 = arith.constant 0 : index
    %c0_27 = arith.constant 0 : index
    %37 = vector.load %arg12[%c0_26, %c0_27] : memref<1x32xf32, #tpu.memory_space<vmem>>, vector<1x32xf32>
    %c0_28 = arith.constant 0 : index
    %c0_29 = arith.constant 0 : index
    %38 = vector.load %arg13[%c0_28, %c0_29] : memref<1x32xf32, #tpu.memory_space<vmem>>, vector<1x32xf32>
    %c0_30 = arith.constant 0 : index
    %c0_31 = arith.constant 0 : index
    %39 = vector.load %arg14[%c0_30, %c0_31] : memref<32x64xf32, #tpu.memory_space<vmem>>, vector<32x64xf32>
    %c0_32 = arith.constant 0 : index
    %c0_33 = arith.constant 0 : index
    %40 = vector.load %arg15[%c0_32, %c0_33] : memref<1x64xf32, #tpu.memory_space<vmem>>, vector<1x64xf32>
    %c0_34 = arith.constant 0 : index
    %c0_35 = arith.constant 0 : index
    %41 = vector.load %arg16[%c0_34, %c0_35] : memref<64x32xf32, #tpu.memory_space<vmem>>, vector<64x32xf32>
    %c0_36 = arith.constant 0 : index
    %c0_37 = arith.constant 0 : index
    %42 = vector.load %arg17[%c0_36, %c0_37] : memref<1x32xf32, #tpu.memory_space<vmem>>, vector<1x32xf32>
    %c0_38 = arith.constant 0 : index
    %c0_39 = arith.constant 0 : index
    %43 = vector.load %arg18[%c0_38, %c0_39] : memref<1x32xf32, #tpu.memory_space<vmem>>, vector<1x32xf32>
    %c0_40 = arith.constant 0 : index
    %c0_41 = arith.constant 0 : index
    %44 = vector.load %arg19[%c0_40, %c0_41] : memref<1x32xf32, #tpu.memory_space<vmem>>, vector<1x32xf32>
    %cst_42 = arith.constant dense<0.000000e+00> : vector<16x96xf32>
    %45 = tpu.matmul %30, %33, %cst_42 {dimension_numbers = #tpu.dot_dimension_numbers<[1], [0], [0], [1], [0, 0, 1, 1], [], []>} : vector<16x32xf32>, vector<32x96xf32>, vector<16x96xf32> -> vector<16x96xf32>
    %46 = vector.broadcast %34 : vector<1x96xf32> to vector<16x96xf32>
    %47 = arith.addf %45, %46 : vector<16x96xf32>
    %48 = vector.extract_strided_slice %47 {offsets = [0, 0], sizes = [16, 8], strides = [1, 1]} : vector<16x96xf32> to vector<16x8xf32>
    %49 = vector.extract_strided_slice %47 {offsets = [0, 32], sizes = [16, 8], strides = [1, 1]} : vector<16x96xf32> to vector<16x8xf32>
    %50 = vector.extract_strided_slice %47 {offsets = [0, 64], sizes = [16, 8], strides = [1, 1]} : vector<16x96xf32> to vector<16x8xf32>
    %51 = tpu.transpose %49, [1, 0] : vector<16x8xf32> -> vector<8x16xf32>
    %cst_43 = arith.constant dense<0.000000e+00> : vector<16x16xf32>
    %52 = tpu.matmul %48, %51, %cst_43 {dimension_numbers = #tpu.dot_dimension_numbers<[1], [0], [0], [1], [0, 0, 1, 1], [], []>} : vector<16x8xf32>, vector<8x16xf32>, vector<16x16xf32> -> vector<16x16xf32>
    %cst_44 = arith.constant 0.353553385 : f32
    %53 = vector.broadcast %cst_44 : f32 to vector<16x16xf32>
    %54 = arith.mulf %52, %53 : vector<16x16xf32>
    %55 = vector.broadcast %32 : vector<1x16xf32> to vector<16x16xf32>
    %56 = arith.addf %54, %55 : vector<16x16xf32>
    %cst_45 = arith.constant dense<0xFF800000> : vector<16xf32>
    %57 = vector.multi_reduction <maximumf>, %56, %cst_45 [1] : vector<16x16xf32> to vector<16xf32>
    %58 = vector.shape_cast %57 : vector<16xf32> to vector<16x1xf32>
    %59 = vector.broadcast %58 : vector<16x1xf32> to vector<16x16xf32>
    %60 = arith.subf %56, %59 : vector<16x16xf32>
    %61 = math.exp %60 : vector<16x16xf32>
    %cst_46 = arith.constant dense<0.000000e+00> : vector<16xf32>
    %62 = vector.multi_reduction <add>, %61, %cst_46 [1] : vector<16x16xf32> to vector<16xf32>
    %63 = vector.shape_cast %62 : vector<16xf32> to vector<16x1xf32>
    %64 = tpu.reciprocal %63 {approx = true} : vector<16x1xf32> -> vector<16x1xf32>
    %65 = vector.broadcast %64 : vector<16x1xf32> to vector<16x16xf32>
    %66 = arith.mulf %61, %65 : vector<16x16xf32>
    %cst_47 = arith.constant dense<0.000000e+00> : vector<16x8xf32>
    %67 = tpu.matmul %66, %50, %cst_47 {dimension_numbers = #tpu.dot_dimension_numbers<[1], [0], [0], [1], [0, 0, 1, 1], [], []>} : vector<16x16xf32>, vector<16x8xf32>, vector<16x8xf32> -> vector<16x8xf32>
    %68 = vector.extract_strided_slice %47 {offsets = [0, 8], sizes = [16, 8], strides = [1, 1]} : vector<16x96xf32> to vector<16x8xf32>
    %69 = vector.extract_strided_slice %47 {offsets = [0, 40], sizes = [16, 8], strides = [1, 1]} : vector<16x96xf32> to vector<16x8xf32>
    %70 = vector.extract_strided_slice %47 {offsets = [0, 72], sizes = [16, 8], strides = [1, 1]} : vector<16x96xf32> to vector<16x8xf32>
    %71 = tpu.transpose %69, [1, 0] : vector<16x8xf32> -> vector<8x16xf32>
    %cst_48 = arith.constant dense<0.000000e+00> : vector<16x16xf32>
    %72 = tpu.matmul %68, %71, %cst_48 {dimension_numbers = #tpu.dot_dimension_numbers<[1], [0], [0], [1], [0, 0, 1, 1], [], []>} : vector<16x8xf32>, vector<8x16xf32>, vector<16x16xf32> -> vector<16x16xf32>
    %cst_49 = arith.constant 0.353553385 : f32
    %73 = vector.broadcast %cst_49 : f32 to vector<16x16xf32>
    %74 = arith.mulf %72, %73 : vector<16x16xf32>
    %75 = vector.broadcast %32 : vector<1x16xf32> to vector<16x16xf32>
    %76 = arith.addf %74, %75 : vector<16x16xf32>
    %cst_50 = arith.constant dense<0xFF800000> : vector<16xf32>
    %77 = vector.multi_reduction <maximumf>, %76, %cst_50 [1] : vector<16x16xf32> to vector<16xf32>
    %78 = vector.shape_cast %77 : vector<16xf32> to vector<16x1xf32>
    %79 = vector.broadcast %78 : vector<16x1xf32> to vector<16x16xf32>
    %80 = arith.subf %76, %79 : vector<16x16xf32>
    %81 = math.exp %80 : vector<16x16xf32>
    %cst_51 = arith.constant dense<0.000000e+00> : vector<16xf32>
    %82 = vector.multi_reduction <add>, %81, %cst_51 [1] : vector<16x16xf32> to vector<16xf32>
    %83 = vector.shape_cast %82 : vector<16xf32> to vector<16x1xf32>
    %84 = tpu.reciprocal %83 {approx = true} : vector<16x1xf32> -> vector<16x1xf32>
    %85 = vector.broadcast %84 : vector<16x1xf32> to vector<16x16xf32>
    %86 = arith.mulf %81, %85 : vector<16x16xf32>
    %cst_52 = arith.constant dense<0.000000e+00> : vector<16x8xf32>
    %87 = tpu.matmul %86, %70, %cst_52 {dimension_numbers = #tpu.dot_dimension_numbers<[1], [0], [0], [1], [0, 0, 1, 1], [], []>} : vector<16x16xf32>, vector<16x8xf32>, vector<16x8xf32> -> vector<16x8xf32>
    %88 = vector.extract_strided_slice %47 {offsets = [0, 16], sizes = [16, 8], strides = [1, 1]} : vector<16x96xf32> to vector<16x8xf32>
    %89 = vector.extract_strided_slice %47 {offsets = [0, 48], sizes = [16, 8], strides = [1, 1]} : vector<16x96xf32> to vector<16x8xf32>
    %90 = vector.extract_strided_slice %47 {offsets = [0, 80], sizes = [16, 8], strides = [1, 1]} : vector<16x96xf32> to vector<16x8xf32>
    %91 = tpu.transpose %89, [1, 0] : vector<16x8xf32> -> vector<8x16xf32>
    %cst_53 = arith.constant dense<0.000000e+00> : vector<16x16xf32>
    %92 = tpu.matmul %88, %91, %cst_53 {dimension_numbers = #tpu.dot_dimension_numbers<[1], [0], [0], [1], [0, 0, 1, 1], [], []>} : vector<16x8xf32>, vector<8x16xf32>, vector<16x16xf32> -> vector<16x16xf32>
    %cst_54 = arith.constant 0.353553385 : f32
    %93 = vector.broadcast %cst_54 : f32 to vector<16x16xf32>
    %94 = arith.mulf %92, %93 : vector<16x16xf32>
    %95 = vector.broadcast %32 : vector<1x16xf32> to vector<16x16xf32>
    %96 = arith.addf %94, %95 : vector<16x16xf32>
    %cst_55 = arith.constant dense<0xFF800000> : vector<16xf32>
    %97 = vector.multi_reduction <maximumf>, %96, %cst_55 [1] : vector<16x16xf32> to vector<16xf32>
    %98 = vector.shape_cast %97 : vector<16xf32> to vector<16x1xf32>
    %99 = vector.broadcast %98 : vector<16x1xf32> to vector<16x16xf32>
    %100 = arith.subf %96, %99 : vector<16x16xf32>
    %101 = math.exp %100 : vector<16x16xf32>
    %cst_56 = arith.constant dense<0.000000e+00> : vector<16xf32>
    %102 = vector.multi_reduction <add>, %101, %cst_56 [1] : vector<16x16xf32> to vector<16xf32>
    %103 = vector.shape_cast %102 : vector<16xf32> to vector<16x1xf32>
    %104 = tpu.reciprocal %103 {approx = true} : vector<16x1xf32> -> vector<16x1xf32>
    %105 = vector.broadcast %104 : vector<16x1xf32> to vector<16x16xf32>
    %106 = arith.mulf %101, %105 : vector<16x16xf32>
    %cst_57 = arith.constant dense<0.000000e+00> : vector<16x8xf32>
    %107 = tpu.matmul %106, %90, %cst_57 {dimension_numbers = #tpu.dot_dimension_numbers<[1], [0], [0], [1], [0, 0, 1, 1], [], []>} : vector<16x16xf32>, vector<16x8xf32>, vector<16x8xf32> -> vector<16x8xf32>
    %108 = vector.extract_strided_slice %47 {offsets = [0, 24], sizes = [16, 8], strides = [1, 1]} : vector<16x96xf32> to vector<16x8xf32>
    %109 = vector.extract_strided_slice %47 {offsets = [0, 56], sizes = [16, 8], strides = [1, 1]} : vector<16x96xf32> to vector<16x8xf32>
    %110 = vector.extract_strided_slice %47 {offsets = [0, 88], sizes = [16, 8], strides = [1, 1]} : vector<16x96xf32> to vector<16x8xf32>
    %111 = tpu.transpose %109, [1, 0] : vector<16x8xf32> -> vector<8x16xf32>
    %cst_58 = arith.constant dense<0.000000e+00> : vector<16x16xf32>
    %112 = tpu.matmul %108, %111, %cst_58 {dimension_numbers = #tpu.dot_dimension_numbers<[1], [0], [0], [1], [0, 0, 1, 1], [], []>} : vector<16x8xf32>, vector<8x16xf32>, vector<16x16xf32> -> vector<16x16xf32>
    %cst_59 = arith.constant 0.353553385 : f32
    %113 = vector.broadcast %cst_59 : f32 to vector<16x16xf32>
    %114 = arith.mulf %112, %113 : vector<16x16xf32>
    %115 = vector.broadcast %32 : vector<1x16xf32> to vector<16x16xf32>
    %116 = arith.addf %114, %115 : vector<16x16xf32>
    %cst_60 = arith.constant dense<0xFF800000> : vector<16xf32>
    %117 = vector.multi_reduction <maximumf>, %116, %cst_60 [1] : vector<16x16xf32> to vector<16xf32>
    %118 = vector.shape_cast %117 : vector<16xf32> to vector<16x1xf32>
    %119 = vector.broadcast %118 : vector<16x1xf32> to vector<16x16xf32>
    %120 = arith.subf %116, %119 : vector<16x16xf32>
    %121 = math.exp %120 : vector<16x16xf32>
    %cst_61 = arith.constant dense<0.000000e+00> : vector<16xf32>
    %122 = vector.multi_reduction <add>, %121, %cst_61 [1] : vector<16x16xf32> to vector<16xf32>
    %123 = vector.shape_cast %122 : vector<16xf32> to vector<16x1xf32>
    %124 = tpu.reciprocal %123 {approx = true} : vector<16x1xf32> -> vector<16x1xf32>
    %125 = vector.broadcast %124 : vector<16x1xf32> to vector<16x16xf32>
    %126 = arith.mulf %121, %125 : vector<16x16xf32>
    %cst_62 = arith.constant dense<0.000000e+00> : vector<16x8xf32>
    %127 = tpu.matmul %126, %110, %cst_62 {dimension_numbers = #tpu.dot_dimension_numbers<[1], [0], [0], [1], [0, 0, 1, 1], [], []>} : vector<16x16xf32>, vector<16x8xf32>, vector<16x8xf32> -> vector<16x8xf32>
    %128 = tpu.concatenate %67, %87, %107, %127 in 1 : vector<16x8xf32>, vector<16x8xf32>, vector<16x8xf32>, vector<16x8xf32> -> vector<16x32xf32>
    %cst_63 = arith.constant dense<0.000000e+00> : vector<16x32xf32>
    %129 = tpu.matmul %128, %35, %cst_63 {dimension_numbers = #tpu.dot_dimension_numbers<[1], [0], [0], [1], [0, 0, 1, 1], [], []>} : vector<16x32xf32>, vector<32x32xf32>, vector<16x32xf32> -> vector<16x32xf32>
    %130 = vector.broadcast %36 : vector<1x32xf32> to vector<16x32xf32>
    %131 = arith.addf %129, %130 : vector<16x32xf32>
    %132 = arith.addf %30, %131 : vector<16x32xf32>
    %cst_64 = arith.constant dense<0.000000e+00> : vector<16xf32>
    %133 = vector.multi_reduction <add>, %132, %cst_64 [1] : vector<16x32xf32> to vector<16xf32>
    %134 = vector.shape_cast %133 : vector<16xf32> to vector<16x1xf32>
    %cst_65 = arith.constant 3.200000e+01 : f32
    %135 = vector.broadcast %cst_65 : f32 to vector<16x1xf32>
    %136 = arith.divf %134, %135 : vector<16x1xf32>
    %137 = vector.broadcast %136 : vector<16x1xf32> to vector<16x32xf32>
    %138 = arith.subf %132, %137 : vector<16x32xf32>
    %139 = arith.mulf %138, %138 : vector<16x32xf32>
    %cst_66 = arith.constant dense<0.000000e+00> : vector<16xf32>
    %140 = vector.multi_reduction <add>, %139, %cst_66 [1] : vector<16x32xf32> to vector<16xf32>
    %141 = vector.shape_cast %140 : vector<16xf32> to vector<16x1xf32>
    %cst_67 = arith.constant 3.200000e+01 : f32
    %142 = vector.broadcast %cst_67 : f32 to vector<16x1xf32>
    %143 = arith.divf %141, %142 : vector<16x1xf32>
    %144 = vector.broadcast %136 : vector<16x1xf32> to vector<16x32xf32>
    %145 = arith.subf %132, %144 : vector<16x32xf32>
    %cst_68 = arith.constant 9.99999996E-13 : f32
    %146 = vector.broadcast %cst_68 : f32 to vector<16x1xf32>
    %147 = arith.addf %143, %146 : vector<16x1xf32>
    %148 = math.rsqrt %147 : vector<16x1xf32>
    %149 = vector.broadcast %148 : vector<16x1xf32> to vector<16x32xf32>
    %150 = arith.mulf %145, %149 : vector<16x32xf32>
    %151 = vector.broadcast %37 : vector<1x32xf32> to vector<16x32xf32>
    %152 = arith.mulf %150, %151 : vector<16x32xf32>
    %153 = vector.broadcast %38 : vector<1x32xf32> to vector<16x32xf32>
    %154 = arith.addf %152, %153 : vector<16x32xf32>
    %cst_69 = arith.constant dense<0.000000e+00> : vector<16x64xf32>
    %155 = tpu.matmul %154, %39, %cst_69 {dimension_numbers = #tpu.dot_dimension_numbers<[1], [0], [0], [1], [0, 0, 1, 1], [], []>} : vector<16x32xf32>, vector<32x64xf32>, vector<16x64xf32> -> vector<16x64xf32>
    %156 = vector.broadcast %40 : vector<1x64xf32> to vector<16x64xf32>
    %157 = arith.addf %155, %156 : vector<16x64xf32>
    %158 = arith.mulf %157, %157 : vector<16x64xf32>
    %159 = arith.mulf %157, %158 : vector<16x64xf32>
    %cst_70 = arith.constant 4.471500e-02 : f32
    %160 = vector.broadcast %cst_70 : f32 to vector<16x64xf32>
    %161 = arith.mulf %160, %159 : vector<16x64xf32>
    %162 = arith.addf %157, %161 : vector<16x64xf32>
    %cst_71 = arith.constant 0.797884583 : f32
    %163 = vector.broadcast %cst_71 : f32 to vector<16x64xf32>
    %164 = arith.mulf %163, %162 : vector<16x64xf32>
    %165 = math.tanh %164 : vector<16x64xf32>
    %cst_72 = arith.constant 1.000000e+00 : f32
    %166 = vector.broadcast %cst_72 : f32 to vector<16x64xf32>
    %167 = arith.addf %166, %165 : vector<16x64xf32>
    %cst_73 = arith.constant 5.000000e-01 : f32
    %168 = vector.broadcast %cst_73 : f32 to vector<16x64xf32>
    %169 = arith.mulf %168, %167 : vector<16x64xf32>
    %170 = arith.mulf %157, %169 : vector<16x64xf32>
    %cst_74 = arith.constant dense<0.000000e+00> : vector<16x32xf32>
    %171 = tpu.matmul %170, %41, %cst_74 {dimension_numbers = #tpu.dot_dimension_numbers<[1], [0], [0], [1], [0, 0, 1, 1], [], []>} : vector<16x64xf32>, vector<64x32xf32>, vector<16x32xf32> -> vector<16x32xf32>
    %172 = vector.broadcast %42 : vector<1x32xf32> to vector<16x32xf32>
    %173 = arith.addf %171, %172 : vector<16x32xf32>
    %174 = arith.addf %154, %173 : vector<16x32xf32>
    %cst_75 = arith.constant dense<0.000000e+00> : vector<16xf32>
    %175 = vector.multi_reduction <add>, %174, %cst_75 [1] : vector<16x32xf32> to vector<16xf32>
    %176 = vector.shape_cast %175 : vector<16xf32> to vector<16x1xf32>
    %cst_76 = arith.constant 3.200000e+01 : f32
    %177 = vector.broadcast %cst_76 : f32 to vector<16x1xf32>
    %178 = arith.divf %176, %177 : vector<16x1xf32>
    %179 = vector.broadcast %178 : vector<16x1xf32> to vector<16x32xf32>
    %180 = arith.subf %174, %179 : vector<16x32xf32>
    %181 = arith.mulf %180, %180 : vector<16x32xf32>
    %cst_77 = arith.constant dense<0.000000e+00> : vector<16xf32>
    %182 = vector.multi_reduction <add>, %181, %cst_77 [1] : vector<16x32xf32> to vector<16xf32>
    %183 = vector.shape_cast %182 : vector<16xf32> to vector<16x1xf32>
    %cst_78 = arith.constant 3.200000e+01 : f32
    %184 = vector.broadcast %cst_78 : f32 to vector<16x1xf32>
    %185 = arith.divf %183, %184 : vector<16x1xf32>
    %186 = vector.broadcast %178 : vector<16x1xf32> to vector<16x32xf32>
    %187 = arith.subf %174, %186 : vector<16x32xf32>
    %cst_79 = arith.constant 9.99999996E-13 : f32
    %188 = vector.broadcast %cst_79 : f32 to vector<16x1xf32>
    %189 = arith.addf %185, %188 : vector<16x1xf32>
    %190 = math.rsqrt %189 : vector<16x1xf32>
    %191 = vector.broadcast %190 : vector<16x1xf32> to vector<16x32xf32>
    %192 = arith.mulf %187, %191 : vector<16x32xf32>
    %193 = vector.broadcast %43 : vector<1x32xf32> to vector<16x32xf32>
    %194 = arith.mulf %192, %193 : vector<16x32xf32>
    %195 = vector.broadcast %44 : vector<1x32xf32> to vector<16x32xf32>
    %196 = arith.addf %194, %195 : vector<16x32xf32>
    %cst_80 = arith.constant dense<0.000000e+00> : vector<16x96xf32>
    %197 = tpu.matmul %196, %33, %cst_80 {dimension_numbers = #tpu.dot_dimension_numbers<[1], [0], [0], [1], [0, 0, 1, 1], [], []>} : vector<16x32xf32>, vector<32x96xf32>, vector<16x96xf32> -> vector<16x96xf32>
    %198 = vector.broadcast %34 : vector<1x96xf32> to vector<16x96xf32>
    %199 = arith.addf %197, %198 : vector<16x96xf32>
    %200 = vector.extract_strided_slice %199 {offsets = [0, 0], sizes = [16, 8], strides = [1, 1]} : vector<16x96xf32> to vector<16x8xf32>
    %201 = vector.extract_strided_slice %199 {offsets = [0, 32], sizes = [16, 8], strides = [1, 1]} : vector<16x96xf32> to vector<16x8xf32>
    %202 = vector.extract_strided_slice %199 {offsets = [0, 64], sizes = [16, 8], strides = [1, 1]} : vector<16x96xf32> to vector<16x8xf32>
    %203 = tpu.transpose %201, [1, 0] : vector<16x8xf32> -> vector<8x16xf32>
    %cst_81 = arith.constant dense<0.000000e+00> : vector<16x16xf32>
    %204 = tpu.matmul %200, %203, %cst_81 {dimension_numbers = #tpu.dot_dimension_numbers<[1], [0], [0], [1], [0, 0, 1, 1], [], []>} : vector<16x8xf32>, vector<8x16xf32>, vector<16x16xf32> -> vector<16x16xf32>
    %cst_82 = arith.constant 0.353553385 : f32
    %205 = vector.broadcast %cst_82 : f32 to vector<16x16xf32>
    %206 = arith.mulf %204, %205 : vector<16x16xf32>
    %207 = vector.broadcast %32 : vector<1x16xf32> to vector<16x16xf32>
    %208 = arith.addf %206, %207 : vector<16x16xf32>
    %cst_83 = arith.constant dense<0xFF800000> : vector<16xf32>
    %209 = vector.multi_reduction <maximumf>, %208, %cst_83 [1] : vector<16x16xf32> to vector<16xf32>
    %210 = vector.shape_cast %209 : vector<16xf32> to vector<16x1xf32>
    %211 = vector.broadcast %210 : vector<16x1xf32> to vector<16x16xf32>
    %212 = arith.subf %208, %211 : vector<16x16xf32>
    %213 = math.exp %212 : vector<16x16xf32>
    %cst_84 = arith.constant dense<0.000000e+00> : vector<16xf32>
    %214 = vector.multi_reduction <add>, %213, %cst_84 [1] : vector<16x16xf32> to vector<16xf32>
    %215 = vector.shape_cast %214 : vector<16xf32> to vector<16x1xf32>
    %216 = tpu.reciprocal %215 {approx = true} : vector<16x1xf32> -> vector<16x1xf32>
    %217 = vector.broadcast %216 : vector<16x1xf32> to vector<16x16xf32>
    %218 = arith.mulf %213, %217 : vector<16x16xf32>
    %cst_85 = arith.constant dense<0.000000e+00> : vector<16x8xf32>
    %219 = tpu.matmul %218, %202, %cst_85 {dimension_numbers = #tpu.dot_dimension_numbers<[1], [0], [0], [1], [0, 0, 1, 1], [], []>} : vector<16x16xf32>, vector<16x8xf32>, vector<16x8xf32> -> vector<16x8xf32>
    %220 = vector.extract_strided_slice %199 {offsets = [0, 8], sizes = [16, 8], strides = [1, 1]} : vector<16x96xf32> to vector<16x8xf32>
    %221 = vector.extract_strided_slice %199 {offsets = [0, 40], sizes = [16, 8], strides = [1, 1]} : vector<16x96xf32> to vector<16x8xf32>
    %222 = vector.extract_strided_slice %199 {offsets = [0, 72], sizes = [16, 8], strides = [1, 1]} : vector<16x96xf32> to vector<16x8xf32>
    %223 = tpu.transpose %221, [1, 0] : vector<16x8xf32> -> vector<8x16xf32>
    %cst_86 = arith.constant dense<0.000000e+00> : vector<16x16xf32>
    %224 = tpu.matmul %220, %223, %cst_86 {dimension_numbers = #tpu.dot_dimension_numbers<[1], [0], [0], [1], [0, 0, 1, 1], [], []>} : vector<16x8xf32>, vector<8x16xf32>, vector<16x16xf32> -> vector<16x16xf32>
    %cst_87 = arith.constant 0.353553385 : f32
    %225 = vector.broadcast %cst_87 : f32 to vector<16x16xf32>
    %226 = arith.mulf %224, %225 : vector<16x16xf32>
    %227 = vector.broadcast %32 : vector<1x16xf32> to vector<16x16xf32>
    %228 = arith.addf %226, %227 : vector<16x16xf32>
    %cst_88 = arith.constant dense<0xFF800000> : vector<16xf32>
    %229 = vector.multi_reduction <maximumf>, %228, %cst_88 [1] : vector<16x16xf32> to vector<16xf32>
    %230 = vector.shape_cast %229 : vector<16xf32> to vector<16x1xf32>
    %231 = vector.broadcast %230 : vector<16x1xf32> to vector<16x16xf32>
    %232 = arith.subf %228, %231 : vector<16x16xf32>
    %233 = math.exp %232 : vector<16x16xf32>
    %cst_89 = arith.constant dense<0.000000e+00> : vector<16xf32>
    %234 = vector.multi_reduction <add>, %233, %cst_89 [1] : vector<16x16xf32> to vector<16xf32>
    %235 = vector.shape_cast %234 : vector<16xf32> to vector<16x1xf32>
    %236 = tpu.reciprocal %235 {approx = true} : vector<16x1xf32> -> vector<16x1xf32>
    %237 = vector.broadcast %236 : vector<16x1xf32> to vector<16x16xf32>
    %238 = arith.mulf %233, %237 : vector<16x16xf32>
    %cst_90 = arith.constant dense<0.000000e+00> : vector<16x8xf32>
    %239 = tpu.matmul %238, %222, %cst_90 {dimension_numbers = #tpu.dot_dimension_numbers<[1], [0], [0], [1], [0, 0, 1, 1], [], []>} : vector<16x16xf32>, vector<16x8xf32>, vector<16x8xf32> -> vector<16x8xf32>
    %240 = vector.extract_strided_slice %199 {offsets = [0, 16], sizes = [16, 8], strides = [1, 1]} : vector<16x96xf32> to vector<16x8xf32>
    %241 = vector.extract_strided_slice %199 {offsets = [0, 48], sizes = [16, 8], strides = [1, 1]} : vector<16x96xf32> to vector<16x8xf32>
    %242 = vector.extract_strided_slice %199 {offsets = [0, 80], sizes = [16, 8], strides = [1, 1]} : vector<16x96xf32> to vector<16x8xf32>
    %243 = tpu.transpose %241, [1, 0] : vector<16x8xf32> -> vector<8x16xf32>
    %cst_91 = arith.constant dense<0.000000e+00> : vector<16x16xf32>
    %244 = tpu.matmul %240, %243, %cst_91 {dimension_numbers = #tpu.dot_dimension_numbers<[1], [0], [0], [1], [0, 0, 1, 1], [], []>} : vector<16x8xf32>, vector<8x16xf32>, vector<16x16xf32> -> vector<16x16xf32>
    %cst_92 = arith.constant 0.353553385 : f32
    %245 = vector.broadcast %cst_92 : f32 to vector<16x16xf32>
    %246 = arith.mulf %244, %245 : vector<16x16xf32>
    %247 = vector.broadcast %32 : vector<1x16xf32> to vector<16x16xf32>
    %248 = arith.addf %246, %247 : vector<16x16xf32>
    %cst_93 = arith.constant dense<0xFF800000> : vector<16xf32>
    %249 = vector.multi_reduction <maximumf>, %248, %cst_93 [1] : vector<16x16xf32> to vector<16xf32>
    %250 = vector.shape_cast %249 : vector<16xf32> to vector<16x1xf32>
    %251 = vector.broadcast %250 : vector<16x1xf32> to vector<16x16xf32>
    %252 = arith.subf %248, %251 : vector<16x16xf32>
    %253 = math.exp %252 : vector<16x16xf32>
    %cst_94 = arith.constant dense<0.000000e+00> : vector<16xf32>
    %254 = vector.multi_reduction <add>, %253, %cst_94 [1] : vector<16x16xf32> to vector<16xf32>
    %255 = vector.shape_cast %254 : vector<16xf32> to vector<16x1xf32>
    %256 = tpu.reciprocal %255 {approx = true} : vector<16x1xf32> -> vector<16x1xf32>
    %257 = vector.broadcast %256 : vector<16x1xf32> to vector<16x16xf32>
    %258 = arith.mulf %253, %257 : vector<16x16xf32>
    %cst_95 = arith.constant dense<0.000000e+00> : vector<16x8xf32>
    %259 = tpu.matmul %258, %242, %cst_95 {dimension_numbers = #tpu.dot_dimension_numbers<[1], [0], [0], [1], [0, 0, 1, 1], [], []>} : vector<16x16xf32>, vector<16x8xf32>, vector<16x8xf32> -> vector<16x8xf32>
    %260 = vector.extract_strided_slice %199 {offsets = [0, 24], sizes = [16, 8], strides = [1, 1]} : vector<16x96xf32> to vector<16x8xf32>
    %261 = vector.extract_strided_slice %199 {offsets = [0, 56], sizes = [16, 8], strides = [1, 1]} : vector<16x96xf32> to vector<16x8xf32>
    %262 = vector.extract_strided_slice %199 {offsets = [0, 88], sizes = [16, 8], strides = [1, 1]} : vector<16x96xf32> to vector<16x8xf32>
    %263 = tpu.transpose %261, [1, 0] : vector<16x8xf32> -> vector<8x16xf32>
    %cst_96 = arith.constant dense<0.000000e+00> : vector<16x16xf32>
    %264 = tpu.matmul %260, %263, %cst_96 {dimension_numbers = #tpu.dot_dimension_numbers<[1], [0], [0], [1], [0, 0, 1, 1], [], []>} : vector<16x8xf32>, vector<8x16xf32>, vector<16x16xf32> -> vector<16x16xf32>
    %cst_97 = arith.constant 0.353553385 : f32
    %265 = vector.broadcast %cst_97 : f32 to vector<16x16xf32>
    %266 = arith.mulf %264, %265 : vector<16x16xf32>
    %267 = vector.broadcast %32 : vector<1x16xf32> to vector<16x16xf32>
    %268 = arith.addf %266, %267 : vector<16x16xf32>
    %cst_98 = arith.constant dense<0xFF800000> : vector<16xf32>
    %269 = vector.multi_reduction <maximumf>, %268, %cst_98 [1] : vector<16x16xf32> to vector<16xf32>
    %270 = vector.shape_cast %269 : vector<16xf32> to vector<16x1xf32>
    %271 = vector.broadcast %270 : vector<16x1xf32> to vector<16x16xf32>
    %272 = arith.subf %268, %271 : vector<16x16xf32>
    %273 = math.exp %272 : vector<16x16xf32>
    %cst_99 = arith.constant dense<0.000000e+00> : vector<16xf32>
    %274 = vector.multi_reduction <add>, %273, %cst_99 [1] : vector<16x16xf32> to vector<16xf32>
    %275 = vector.shape_cast %274 : vector<16xf32> to vector<16x1xf32>
    %276 = tpu.reciprocal %275 {approx = true} : vector<16x1xf32> -> vector<16x1xf32>
    %277 = vector.broadcast %276 : vector<16x1xf32> to vector<16x16xf32>
    %278 = arith.mulf %273, %277 : vector<16x16xf32>
    %cst_100 = arith.constant dense<0.000000e+00> : vector<16x8xf32>
    %279 = tpu.matmul %278, %262, %cst_100 {dimension_numbers = #tpu.dot_dimension_numbers<[1], [0], [0], [1], [0, 0, 1, 1], [], []>} : vector<16x16xf32>, vector<16x8xf32>, vector<16x8xf32> -> vector<16x8xf32>
    %280 = tpu.concatenate %219, %239, %259, %279 in 1 : vector<16x8xf32>, vector<16x8xf32>, vector<16x8xf32>, vector<16x8xf32> -> vector<16x32xf32>
    %cst_101 = arith.constant dense<0.000000e+00> : vector<16x32xf32>
    %281 = tpu.matmul %280, %35, %cst_101 {dimension_numbers = #tpu.dot_dimension_numbers<[1], [0], [0], [1], [0, 0, 1, 1], [], []>} : vector<16x32xf32>, vector<32x32xf32>, vector<16x32xf32> -> vector<16x32xf32>
    %282 = vector.broadcast %36 : vector<1x32xf32> to vector<16x32xf32>
    %283 = arith.addf %281, %282 : vector<16x32xf32>
    %284 = arith.addf %196, %283 : vector<16x32xf32>
    %cst_102 = arith.constant dense<0.000000e+00> : vector<16xf32>
    %285 = vector.multi_reduction <add>, %284, %cst_102 [1] : vector<16x32xf32> to vector<16xf32>
    %286 = vector.shape_cast %285 : vector<16xf32> to vector<16x1xf32>
    %cst_103 = arith.constant 3.200000e+01 : f32
    %287 = vector.broadcast %cst_103 : f32 to vector<16x1xf32>
    %288 = arith.divf %286, %287 : vector<16x1xf32>
    %289 = vector.broadcast %288 : vector<16x1xf32> to vector<16x32xf32>
    %290 = arith.subf %284, %289 : vector<16x32xf32>
    %291 = arith.mulf %290, %290 : vector<16x32xf32>
    %cst_104 = arith.constant dense<0.000000e+00> : vector<16xf32>
    %292 = vector.multi_reduction <add>, %291, %cst_104 [1] : vector<16x32xf32> to vector<16xf32>
    %293 = vector.shape_cast %292 : vector<16xf32> to vector<16x1xf32>
    %cst_105 = arith.constant 3.200000e+01 : f32
    %294 = vector.broadcast %cst_105 : f32 to vector<16x1xf32>
    %295 = arith.divf %293, %294 : vector<16x1xf32>
    %296 = vector.broadcast %288 : vector<16x1xf32> to vector<16x32xf32>
    %297 = arith.subf %284, %296 : vector<16x32xf32>
    %cst_106 = arith.constant 9.99999996E-13 : f32
    %298 = vector.broadcast %cst_106 : f32 to vector<16x1xf32>
    %299 = arith.addf %295, %298 : vector<16x1xf32>
    %300 = math.rsqrt %299 : vector<16x1xf32>
    %301 = vector.broadcast %300 : vector<16x1xf32> to vector<16x32xf32>
    %302 = arith.mulf %297, %301 : vector<16x32xf32>
    %303 = vector.broadcast %37 : vector<1x32xf32> to vector<16x32xf32>
    %304 = arith.mulf %302, %303 : vector<16x32xf32>
    %305 = vector.broadcast %38 : vector<1x32xf32> to vector<16x32xf32>
    %306 = arith.addf %304, %305 : vector<16x32xf32>
    %cst_107 = arith.constant dense<0.000000e+00> : vector<16x64xf32>
    %307 = tpu.matmul %306, %39, %cst_107 {dimension_numbers = #tpu.dot_dimension_numbers<[1], [0], [0], [1], [0, 0, 1, 1], [], []>} : vector<16x32xf32>, vector<32x64xf32>, vector<16x64xf32> -> vector<16x64xf32>
    %308 = vector.broadcast %40 : vector<1x64xf32> to vector<16x64xf32>
    %309 = arith.addf %307, %308 : vector<16x64xf32>
    %310 = arith.mulf %309, %309 : vector<16x64xf32>
    %311 = arith.mulf %309, %310 : vector<16x64xf32>
    %cst_108 = arith.constant 4.471500e-02 : f32
    %312 = vector.broadcast %cst_108 : f32 to vector<16x64xf32>
    %313 = arith.mulf %312, %311 : vector<16x64xf32>
    %314 = arith.addf %309, %313 : vector<16x64xf32>
    %cst_109 = arith.constant 0.797884583 : f32
    %315 = vector.broadcast %cst_109 : f32 to vector<16x64xf32>
    %316 = arith.mulf %315, %314 : vector<16x64xf32>
    %317 = math.tanh %316 : vector<16x64xf32>
    %cst_110 = arith.constant 1.000000e+00 : f32
    %318 = vector.broadcast %cst_110 : f32 to vector<16x64xf32>
    %319 = arith.addf %318, %317 : vector<16x64xf32>
    %cst_111 = arith.constant 5.000000e-01 : f32
    %320 = vector.broadcast %cst_111 : f32 to vector<16x64xf32>
    %321 = arith.mulf %320, %319 : vector<16x64xf32>
    %322 = arith.mulf %309, %321 : vector<16x64xf32>
    %cst_112 = arith.constant dense<0.000000e+00> : vector<16x32xf32>
    %323 = tpu.matmul %322, %41, %cst_112 {dimension_numbers = #tpu.dot_dimension_numbers<[1], [0], [0], [1], [0, 0, 1, 1], [], []>} : vector<16x64xf32>, vector<64x32xf32>, vector<16x32xf32> -> vector<16x32xf32>
    %324 = vector.broadcast %42 : vector<1x32xf32> to vector<16x32xf32>
    %325 = arith.addf %323, %324 : vector<16x32xf32>
    %326 = arith.addf %306, %325 : vector<16x32xf32>
    %cst_113 = arith.constant dense<0.000000e+00> : vector<16xf32>
    %327 = vector.multi_reduction <add>, %326, %cst_113 [1] : vector<16x32xf32> to vector<16xf32>
    %328 = vector.shape_cast %327 : vector<16xf32> to vector<16x1xf32>
    %cst_114 = arith.constant 3.200000e+01 : f32
    %329 = vector.broadcast %cst_114 : f32 to vector<16x1xf32>
    %330 = arith.divf %328, %329 : vector<16x1xf32>
    %331 = vector.broadcast %330 : vector<16x1xf32> to vector<16x32xf32>
    %332 = arith.subf %326, %331 : vector<16x32xf32>
    %333 = arith.mulf %332, %332 : vector<16x32xf32>
    %cst_115 = arith.constant dense<0.000000e+00> : vector<16xf32>
    %334 = vector.multi_reduction <add>, %333, %cst_115 [1] : vector<16x32xf32> to vector<16xf32>
    %335 = vector.shape_cast %334 : vector<16xf32> to vector<16x1xf32>
    %cst_116 = arith.constant 3.200000e+01 : f32
    %336 = vector.broadcast %cst_116 : f32 to vector<16x1xf32>
    %337 = arith.divf %335, %336 : vector<16x1xf32>
    %338 = vector.broadcast %330 : vector<16x1xf32> to vector<16x32xf32>
    %339 = arith.subf %326, %338 : vector<16x32xf32>
    %cst_117 = arith.constant 9.99999996E-13 : f32
    %340 = vector.broadcast %cst_117 : f32 to vector<16x1xf32>
    %341 = arith.addf %337, %340 : vector<16x1xf32>
    %342 = math.rsqrt %341 : vector<16x1xf32>
    %343 = vector.broadcast %342 : vector<16x1xf32> to vector<16x32xf32>
    %344 = arith.mulf %339, %343 : vector<16x32xf32>
    %345 = vector.broadcast %43 : vector<1x32xf32> to vector<16x32xf32>
    %346 = arith.mulf %344, %345 : vector<16x32xf32>
    %347 = vector.broadcast %44 : vector<1x32xf32> to vector<16x32xf32>
    %348 = arith.addf %346, %347 : vector<16x32xf32>
    %c0_118 = arith.constant 0 : index
    %c0_119 = arith.constant 0 : index
    %349 = vector.load %arg20[%c0_118, %c0_119] : memref<1x32xf32, #tpu.memory_space<vmem>>, vector<1x32xf32>
    %c0_120 = arith.constant 0 : index
    %c0_121 = arith.constant 0 : index
    %350 = vector.load %arg21[%c0_120, %c0_121] : memref<1x32xf32, #tpu.memory_space<vmem>>, vector<1x32xf32>
    %cst_122 = arith.constant dense<0.000000e+00> : vector<16xf32>
    %351 = vector.multi_reduction <add>, %348, %cst_122 [1] : vector<16x32xf32> to vector<16xf32>
    %352 = vector.shape_cast %351 : vector<16xf32> to vector<16x1xf32>
    %cst_123 = arith.constant 3.200000e+01 : f32
    %353 = vector.broadcast %cst_123 : f32 to vector<16x1xf32>
    %354 = arith.divf %352, %353 : vector<16x1xf32>
    %355 = vector.broadcast %354 : vector<16x1xf32> to vector<16x32xf32>
    %356 = arith.subf %348, %355 : vector<16x32xf32>
    %357 = arith.mulf %356, %356 : vector<16x32xf32>
    %cst_124 = arith.constant dense<0.000000e+00> : vector<16xf32>
    %358 = vector.multi_reduction <add>, %357, %cst_124 [1] : vector<16x32xf32> to vector<16xf32>
    %359 = vector.shape_cast %358 : vector<16xf32> to vector<16x1xf32>
    %cst_125 = arith.constant 3.200000e+01 : f32
    %360 = vector.broadcast %cst_125 : f32 to vector<16x1xf32>
    %361 = arith.divf %359, %360 : vector<16x1xf32>
    %362 = vector.broadcast %354 : vector<16x1xf32> to vector<16x32xf32>
    %363 = arith.subf %348, %362 : vector<16x32xf32>
    %cst_126 = arith.constant 9.99999974E-6 : f32
    %364 = vector.broadcast %cst_126 : f32 to vector<16x1xf32>
    %365 = arith.addf %361, %364 : vector<16x1xf32>
    %366 = math.rsqrt %365 : vector<16x1xf32>
    %367 = vector.broadcast %366 : vector<16x1xf32> to vector<16x32xf32>
    %368 = arith.mulf %363, %367 : vector<16x32xf32>
    %369 = vector.broadcast %349 : vector<1x32xf32> to vector<16x32xf32>
    %370 = arith.mulf %368, %369 : vector<16x32xf32>
    %371 = vector.broadcast %350 : vector<1x32xf32> to vector<16x32xf32>
    %372 = arith.addf %370, %371 : vector<16x32xf32>
    %c0_127 = arith.constant 0 : index
    %c0_128 = arith.constant 0 : index
    %373 = vector.load %arg22[%c0_127, %c0_128] : memref<32x16xf32, #tpu.memory_space<vmem>>, vector<32x16xf32>
    %cst_129 = arith.constant dense<0.000000e+00> : vector<16x16xf32>
    %374 = tpu.matmul %372, %373, %cst_129 {dimension_numbers = #tpu.dot_dimension_numbers<[1], [0], [0], [1], [0, 0, 1, 1], [], []>} : vector<16x32xf32>, vector<32x16xf32>, vector<16x16xf32> -> vector<16x16xf32>
    %c0_130 = arith.constant 0 : index
    %c0_131 = arith.constant 0 : index
    %375 = vector.load %arg23[%c0_130, %c0_131] : memref<1x16xf32, #tpu.memory_space<vmem>>, vector<1x16xf32>
    %376 = vector.broadcast %375 : vector<1x16xf32> to vector<16x16xf32>
    %377 = arith.addf %374, %376 : vector<16x16xf32>
    %378 = vector.extract_strided_slice %377 {offsets = [0, 0], sizes = [1, 16], strides = [1, 1]} : vector<16x16xf32> to vector<1x16xf32>
    %c0_132 = arith.constant 0 : index
    %c0_133 = arith.constant 0 : index
    %c0_134 = arith.constant 0 : index
    %379 = vector.load %arg28[%c0_132, %c0_133, %c0_134] : memref<1x1x16xf32, #tpu.memory_space<vmem>>, vector<1x1x16xf32>
    %380 = vector.shape_cast %379 : vector<1x1x16xf32> to vector<1x16xf32>
    %381 = vector.shape_cast %378 : vector<1x16xf32> to vector<1x1x16xf32>
    tpu.vector_store %arg28[%c0_132, %c0_133, %c0_134], %381 {strides = array<i32>} : memref<1x1x16xf32, #tpu.memory_space<vmem>>, vector<1x1x16xf32>,
    %c0_135 = arith.constant 0 : index
    %c0_136 = arith.constant 0 : index
    %382 = vector.load %arg24[%c0_135, %c0_136] : memref<1x32xf32, #tpu.memory_space<vmem>>, vector<1x32xf32>
    %c0_137 = arith.constant 0 : index
    %c0_138 = arith.constant 0 : index
    %383 = vector.load %arg25[%c0_137, %c0_138] : memref<1x32xf32, #tpu.memory_space<vmem>>, vector<1x32xf32>
    %cst_139 = arith.constant dense<0.000000e+00> : vector<16xf32>
    %384 = vector.multi_reduction <add>, %348, %cst_139 [1] : vector<16x32xf32> to vector<16xf32>
    %385 = vector.shape_cast %384 : vector<16xf32> to vector<16x1xf32>
    %cst_140 = arith.constant 3.200000e+01 : f32
    %386 = vector.broadcast %cst_140 : f32 to vector<16x1xf32>
    %387 = arith.divf %385, %386 : vector<16x1xf32>
    %388 = vector.broadcast %387 : vector<16x1xf32> to vector<16x32xf32>
    %389 = arith.subf %348, %388 : vector<16x32xf32>
    %390 = arith.mulf %389, %389 : vector<16x32xf32>
    %cst_141 = arith.constant dense<0.000000e+00> : vector<16xf32>
    %391 = vector.multi_reduction <add>, %390, %cst_141 [1] : vector<16x32xf32> to vector<16xf32>
    %392 = vector.shape_cast %391 : vector<16xf32> to vector<16x1xf32>
    %cst_142 = arith.constant 3.200000e+01 : f32
    %393 = vector.broadcast %cst_142 : f32 to vector<16x1xf32>
    %394 = arith.divf %392, %393 : vector<16x1xf32>
    %395 = vector.broadcast %387 : vector<16x1xf32> to vector<16x32xf32>
    %396 = arith.subf %348, %395 : vector<16x32xf32>
    %cst_143 = arith.constant 9.99999974E-6 : f32
    %397 = vector.broadcast %cst_143 : f32 to vector<16x1xf32>
    %398 = arith.addf %394, %397 : vector<16x1xf32>
    %399 = math.rsqrt %398 : vector<16x1xf32>
    %400 = vector.broadcast %399 : vector<16x1xf32> to vector<16x32xf32>
    %401 = arith.mulf %396, %400 : vector<16x32xf32>
    %402 = vector.broadcast %382 : vector<1x32xf32> to vector<16x32xf32>
    %403 = arith.mulf %401, %402 : vector<16x32xf32>
    %404 = vector.broadcast %383 : vector<1x32xf32> to vector<16x32xf32>
    %405 = arith.addf %403, %404 : vector<16x32xf32>
    %c0_144 = arith.constant 0 : index
    %c0_145 = arith.constant 0 : index
    %406 = vector.load %arg26[%c0_144, %c0_145] : memref<32x16xf32, #tpu.memory_space<vmem>>, vector<32x16xf32>
    %cst_146 = arith.constant dense<0.000000e+00> : vector<16x16xf32>
    %407 = tpu.matmul %405, %406, %cst_146 {dimension_numbers = #tpu.dot_dimension_numbers<[1], [0], [0], [1], [0, 0, 1, 1], [], []>} : vector<16x32xf32>, vector<32x16xf32>, vector<16x16xf32> -> vector<16x16xf32>
    %c0_147 = arith.constant 0 : index
    %c0_148 = arith.constant 0 : index
    %408 = vector.load %arg27[%c0_147, %c0_148] : memref<1x16xf32, #tpu.memory_space<vmem>>, vector<1x16xf32>
    %409 = vector.broadcast %408 : vector<1x16xf32> to vector<16x16xf32>
    %410 = arith.addf %407, %409 : vector<16x16xf32>
    %c0_149 = arith.constant 0 : index
    %c0_150 = arith.constant 0 : index
    %c0_151 = arith.constant 0 : index
    %411 = vector.load %arg3[%c0_149, %c0_150, %c0_151] : memref<1x16x1xf32, #tpu.memory_space<vmem>>, vector<1x16x1xf32>
    %412 = vector.shape_cast %411 : vector<1x16x1xf32> to vector<16x1xf32>
    %cst_152 = arith.constant 5.000000e-01 : f32
    %413 = vector.broadcast %cst_152 : f32 to vector<16x1xf32>
    %414 = arith.cmpf ogt, %412, %413 : vector<16x1xf32>
    %cst_153 = arith.constant 0.000000e+00 : f32
    %415 = vector.shape_cast %414 : vector<16x1xi1> to vector<16x1xi1>
    %416 = vector.broadcast %415 : vector<16x1xi1> to vector<16x16xi1>
    %417 = vector.broadcast %cst_153 : f32 to vector<16x16xf32>
    %418 = arith.select %416, %417, %410 : vector<16x16xi1>, vector<16x16xf32>
    %c0_154 = arith.constant 0 : index
    %c0_155 = arith.constant 0 : index
    %c0_156 = arith.constant 0 : index
    %419 = vector.load %arg29[%c0_154, %c0_155, %c0_156] : memref<1x16x16xf32, #tpu.memory_space<vmem>>, vector<1x16x16xf32>
    %420 = vector.shape_cast %419 : vector<1x16x16xf32> to vector<16x16xf32>
    %421 = vector.shape_cast %418 : vector<16x16xf32> to vector<1x16x16xf32>
    tpu.vector_store %arg29[%c0_154, %c0_155, %c0_156], %421 {strides = array<i32>} : memref<1x16x16xf32, #tpu.memory_space<vmem>>, vector<1x16x16xf32>,
    return
  }
  func.func @transform_0(%arg0: i32) -> (i32, i32, i32) {
    %c0_i32 = arith.constant 0 : i32
    %c0_i32_0 = arith.constant 0 : i32
    %c0_i32_1 = arith.constant 0 : i32
    return %arg0, %c0_i32, %c0_i32_0 : i32, i32, i32
  }
  func.func @transform_1(%arg0: i32) -> (i32, i32, i32) {
    %c0_i32 = arith.constant 0 : i32
    %c0_i32_0 = arith.constant 0 : i32
    %c0_i32_1 = arith.constant 0 : i32
    return %arg0, %c0_i32, %c0_i32_0 : i32, i32, i32
  }
  func.func @transform_2(%arg0: i32) -> (i32, i32, i32) {
    %c0_i32 = arith.constant 0 : i32
    %c0_i32_0 = arith.constant 0 : i32
    %c0_i32_1 = arith.constant 0 : i32
    return %arg0, %c0_i32, %c0_i32_0 : i32, i32, i32
  }
  func.func @transform_3(%arg0: i32) -> (i32, i32) {
    %c0_i32 = arith.constant 0 : i32
    %c0_i32_0 = arith.constant 0 : i32
    %c0_i32_1 = arith.constant 0 : i32
    return %c0_i32, %c0_i32_0 : i32, i32
  }
  func.func @transform_4(%arg0: i32) -> (i32, i32) {
    %c0_i32 = arith.constant 0 : i32
    %c0_i32_0 = arith.constant 0 : i32
    %c0_i32_1 = arith.constant 0 : i32
    return %c0_i32, %c0_i32_0 : i32, i32
  }
  func.func @transform_5(%arg0: i32) -> (i32, i32) {
    %c0_i32 = arith.constant 0 : i32
    %c0_i32_0 = arith.constant 0 : i32
    %c0_i32_1 = arith.constant 0 : i32
    return %c0_i32, %c0_i32_0 : i32, i32
  }
  func.func @transform_6(%arg0: i32) -> (i32, i32) {
    %c0_i32 = arith.constant 0 : i32
    %c0_i32_0 = arith.constant 0 : i32
    %c0_i32_1 = arith.constant 0 : i32
    return %c0_i32, %c0_i32_0 : i32, i32
  }
  func.func @transform_7(%arg0: i32) -> (i32, i32) {
    %c0_i32 = arith.constant 0 : i32
    %c0_i32_0 = arith.constant 0 : i32
    %c0_i32_1 = arith.constant 0 : i32
    return %c0_i32, %c0_i32_0 : i32, i32
  }
  func.func @transform_8(%arg0: i32) -> (i32, i32) {
    %c0_i32 = arith.constant 0 : i32
    %c0_i32_0 = arith.constant 0 : i32
    %c0_i32_1 = arith.constant 0 : i32
    return %c0_i32, %c0_i32_0 : i32, i32
  }
  func.func @transform_9(%arg0: i32) -> (i32, i32) {
    %c0_i32 = arith.constant 0 : i32
    %c0_i32_0 = arith.constant 0 : i32
    %c0_i32_1 = arith.constant 0 : i32
    return %c0_i32, %c0_i32_0 : i32, i32
  }
  func.func @transform_10(%arg0: i32) -> (i32, i32) {
    %c0_i32 = arith.constant 0 : i32
    %c0_i32_0 = arith.constant 0 : i32
    %c0_i32_1 = arith.constant 0 : i32
    return %c0_i32, %c0_i32_0 : i32, i32
  }
  func.func @transform_11(%arg0: i32) -> (i32, i32) {
    %c0_i32 = arith.constant 0 : i32
    %c0_i32_0 = arith.constant 0 : i32
    %c0_i32_1 = arith.constant 0 : i32
    return %c0_i32, %c0_i32_0 : i32, i32
  }
  func.func @transform_12(%arg0: i32) -> (i32, i32) {
    %c0_i32 = arith.constant 0 : i32
    %c0_i32_0 = arith.constant 0 : i32
    %c0_i32_1 = arith.constant 0 : i32
    return %c0_i32, %c0_i32_0 : i32, i32
  }
  func.func @transform_13(%arg0: i32) -> (i32, i32) {
    %c0_i32 = arith.constant 0 : i32
    %c0_i32_0 = arith.constant 0 : i32
    %c0_i32_1 = arith.constant 0 : i32
    return %c0_i32, %c0_i32_0 : i32, i32
  }
  func.func @transform_14(%arg0: i32) -> (i32, i32) {
    %c0_i32 = arith.constant 0 : i32
    %c0_i32_0 = arith.constant 0 : i32
    %c0_i32_1 = arith.constant 0 : i32
    return %c0_i32, %c0_i32_0 : i32, i32
  }
  func.func @transform_15(%arg0: i32) -> (i32, i32) {
    %c0_i32 = arith.constant 0 : i32
    %c0_i32_0 = arith.constant 0 : i32
    %c0_i32_1 = arith.constant 0 : i32
    return %c0_i32, %c0_i32_0 : i32, i32
  }
  func.func @transform_16(%arg0: i32) -> (i32, i32) {
    %c0_i32 = arith.constant 0 : i32
    %c0_i32_0 = arith.constant 0 : i32
    %c0_i32_1 = arith.constant 0 : i32
    return %c0_i32, %c0_i32_0 : i32, i32
  }
  func.func @transform_17(%arg0: i32) -> (i32, i32) {
    %c0_i32 = arith.constant 0 : i32
    %c0_i32_0 = arith.constant 0 : i32
    %c0_i32_1 = arith.constant 0 : i32
    return %c0_i32, %c0_i32_0 : i32, i32
  }
  func.func @transform_18(%arg0: i32) -> (i32, i32) {
    %c0_i32 = arith.constant 0 : i32
    %c0_i32_0 = arith.constant 0 : i32
    %c0_i32_1 = arith.constant 0 : i32
    return %c0_i32, %c0_i32_0 : i32, i32
  }
  func.func @transform_19(%arg0: i32) -> (i32, i32) {
    %c0_i32 = arith.constant 0 : i32
    %c0_i32_0 = arith.constant 0 : i32
    %c0_i32_1 = arith.constant 0 : i32
    return %c0_i32, %c0_i32_0 : i32, i32
  }
  func.func @transform_20(%arg0: i32) -> (i32, i32) {
    %c0_i32 = arith.constant 0 : i32
    %c0_i32_0 = arith.constant 0 : i32
    %c0_i32_1 = arith.constant 0 : i32
    return %c0_i32, %c0_i32_0 : i32, i32
  }
  func.func @transform_21(%arg0: i32) -> (i32, i32) {
    %c0_i32 = arith.constant 0 : i32
    %c0_i32_0 = arith.constant 0 : i32
    %c0_i32_1 = arith.constant 0 : i32
    return %c0_i32, %c0_i32_0 : i32, i32
  }
  func.func @transform_22(%arg0: i32) -> (i32, i32) {
    %c0_i32 = arith.constant 0 : i32
    %c0_i32_0 = arith.constant 0 : i32
    %c0_i32_1 = arith.constant 0 : i32
    return %c0_i32, %c0_i32_0 : i32, i32
  }
  func.func @transform_23(%arg0: i32) -> (i32, i32) {
    %c0_i32 = arith.constant 0 : i32
    %c0_i32_0 = arith.constant 0 : i32
    %c0_i32_1 = arith.constant 0 : i32
    return %c0_i32, %c0_i32_0 : i32, i32
  }
  func.func @transform_24(%arg0: i32) -> (i32, i32) {
    %c0_i32 = arith.constant 0 : i32
    %c0_i32_0 = arith.constant 0 : i32
    %c0_i32_1 = arith.constant 0 : i32
    return %c0_i32, %c0_i32_0 : i32, i32
  }
  func.func @transform_25(%arg0: i32) -> (i32, i32) {
    %c0_i32 = arith.constant 0 : i32
    %c0_i32_0 = arith.constant 0 : i32
    %c0_i32_1 = arith.constant 0 : i32
    return %c0_i32, %c0_i32_0 : i32, i32
  }
  func.func @transform_26(%arg0: i32) -> (i32, i32) {
    %c0_i32 = arith.constant 0 : i32
    %c0_i32_0 = arith.constant 0 : i32
    %c0_i32_1 = arith.constant 0 : i32
    return %c0_i32, %c0_i32_0 : i32, i32
  }
  func.func @transform_27(%arg0: i32) -> (i32, i32, i32) {
    %c0_i32 = arith.constant 0 : i32
    %c0_i32_0 = arith.constant 0 : i32
    %c0_i32_1 = arith.constant 0 : i32
    return %arg0, %c0_i32, %c0_i32_0 : i32, i32, i32
  }
  func.func @transform_28(%arg0: i32) -> (i32, i32, i32) {
    %c0_i32 = arith.constant 0 : i32
    %c0_i32_0 = arith.constant 0 : i32
    %c0_i32_1 = arith.constant 0 : i32
    return %arg0, %c0_i32, %c0_i32_0 : i32, i32, i32
  }
}

</mosaic_0001>

<llo_original>
// kernel: text_encoder_forward.1
$region0: #{text_encoder_forward.1}
  #allocation0 [shape = 'u32[]', space=smem, size = 0x4, offset = 0x4, fixed_abs, tag = 'smem constant byte address 0x4 - core index']
  #allocation1 [shape = 'u32[144,128]{1,0:T(1,128)}', space=vmem, size = 0x12000, scoped, tag = 'internal scratch']
  %s0 = inlined_call_operand.vmem [shape: f32[2,16,16], index: 0, kind: input, shape index: {}]
  %s1 = inlined_call_operand.vmem [shape: f32[2,1,16], index: 1, kind: input, shape index: {}]
  %s2 = inlined_call_operand.vmem [shape: f32[2,16,1], index: 2, kind: input, shape index: {}]
  %s3 = inlined_call_operand.vmem [shape: f32[1,16], index: 3, kind: input, shape index: {}]
  %s4 = inlined_call_operand.vmem [shape: f32[1,16], index: 4, kind: input, shape index: {}]
  %s5 = inlined_call_operand.vmem [shape: f32[16,32], index: 5, kind: input, shape index: {}]
  %s6 = inlined_call_operand.vmem [shape: f32[1,32], index: 6, kind: input, shape index: {}]
  %s7 = inlined_call_operand.vmem [shape: f32[32,96], index: 7, kind: input, shape index: {}]
  %s8 = inlined_call_operand.vmem [shape: f32[1,96], index: 8, kind: input, shape index: {}]
  %s9 = inlined_call_operand.vmem [shape: f32[32,32], index: 9, kind: input, shape index: {}]
  %s10 = inlined_call_operand.vmem [shape: f32[1,32], index: 10, kind: input, shape index: {}]
  %s11 = inlined_call_operand.vmem [shape: f32[1,32], index: 11, kind: input, shape index: {}]
  %s12 = inlined_call_operand.vmem [shape: f32[1,32], index: 12, kind: input, shape index: {}]
  %s13 = inlined_call_operand.vmem [shape: f32[32,64], index: 13, kind: input, shape index: {}]
  %s14 = inlined_call_operand.vmem [shape: f32[1,64], index: 14, kind: input, shape index: {}]
  %s15 = inlined_call_operand.vmem [shape: f32[64,32], index: 15, kind: input, shape index: {}]
  %s16 = inlined_call_operand.vmem [shape: f32[1,32], index: 16, kind: input, shape index: {}]
  %s17 = inlined_call_operand.vmem [shape: f32[1,32], index: 17, kind: input, shape index: {}]
  %s18 = inlined_call_operand.vmem [shape: f32[1,32], index: 18, kind: input, shape index: {}]
  %s19 = inlined_call_operand.vmem [shape: f32[1,32], index: 19, kind: input, shape index: {}]
  %s20 = inlined_call_operand.vmem [shape: f32[1,32], index: 20, kind: input, shape index: {}]
  %s21 = inlined_call_operand.vmem [shape: f32[32,16], index: 21, kind: input, shape index: {}]
  %s22 = inlined_call_operand.vmem [shape: f32[1,16], index: 22, kind: input, shape index: {}]
  %s23 = inlined_call_operand.vmem [shape: f32[1,32], index: 23, kind: input, shape index: {}]
  %s24 = inlined_call_operand.vmem [shape: f32[1,32], index: 24, kind: input, shape index: {}]
  %s25 = inlined_call_operand.vmem [shape: f32[32,16], index: 25, kind: input, shape index: {}]
  %s26 = inlined_call_operand.vmem [shape: f32[1,16], index: 26, kind: input, shape index: {}]
  %s27 = inlined_call_operand.hbm [shape: f32[2,1,16], index: 27, kind: output, shape index: {0}]
  %s28 = inlined_call_operand.hbm [shape: f32[2,16,16], index: 28, kind: output, shape index: {1}]
  %29 = xla_tuple %s27, %s28
  %s30 = sld [smem:[#allocation0]]
  $region149: #{text_encoder_forward.1} parent=0
    _
  %s32 = ssub.s32 1, %s30
  %s33 = scalar_select 0, %s32, %s30
  $region1: #{text_encoder_forward.1} parent=0
    #allocation2 [shape = 'u8[1024]{0}', space=vmem, size = 0x400, scoped, tag = 'output window, operand 0']
    #allocation3 [shape = 's32[2]{0}', space=sflag, size = 0x8, scoped, tag = 'scoped memory for text_encoder_forward.1']
    #allocation4 [shape = 'u8[16384]{0}', space=vmem, size = 0x4000, scoped, tag = 'output window, operand 1']
    #allocation5 [shape = 's32[2]{0}', space=sflag, size = 0x8, scoped, tag = 'scoped memory for text_encoder_forward.1']
    %34 = vsyncpa [#allocation3], 0
    %s35 = scalar_lea.sflag [#allocation3], 1
    %36 = vsyncpa %s35, 0
    %37 = vsyncpa [#allocation5], 0
    %s38 = scalar_lea.sflag [#allocation5], 1
    %39 = vsyncpa %s38, 0
    loop: start=0, step=1, limit=4
    $region2: #{text_encoder_forward.1} parent=1 // loop_pre_header
      _
    $region3: #{text_encoder_forward.1} parent=1 // loop_header
      %s41 = sphi 0, %s45
      %p42 = scmp.ge.s32.totalorder %s41, 4
      %s51 = sphi 0, %s53
      %s54 = sphi 0, %s51
      %s55 = sphi 0, %s54
      %s71 = sphi 0, %s55
      %s77 = sphi 0, %s79
      %s80 = sphi 0, %s77
      %s81 = sphi 0, %s80
      %s97 = sphi 0, %s81
      %s103 = sphi 0, %s105
      %s106 = sphi 0, %s103
      %s107 = sphi 0, %s106
      %s123 = sphi 0, %s107
      %s127 = sphi 0, %s127
      %s129 = sphi 0, %s127
      %s130 = sphi 0, %s129
      %s144 = sphi 0, %s130
      %s148 = sphi 0, %s148
      %s150 = sphi 0, %s148
      %s151 = sphi 0, %s150
      %s165 = sphi 0, %s151
      %s169 = sphi 0, %s169
      %s171 = sphi 0, %s169
      %s172 = sphi 0, %s171
      %s186 = sphi 0, %s172
      %s190 = sphi 0, %s190
      %s192 = sphi 0, %s190
      %s193 = sphi 0, %s192
      %s207 = sphi 0, %s193
      %s211 = sphi 0, %s211
      %s213 = sphi 0, %s211
      %s214 = sphi 0, %s213
      %s228 = sphi 0, %s214
      %s232 = sphi 0, %s232
      %s234 = sphi 0, %s232
      %s235 = sphi 0, %s234
      %s249 = sphi 0, %s235
      %s253 = sphi 0, %s253
      %s255 = sphi 0, %s253
      %s256 = sphi 0, %s255
      %s270 = sphi 0, %s256
      %s274 = sphi 0, %s274
      %s276 = sphi 0, %s274
      %s277 = sphi 0, %s276
      %s291 = sphi 0, %s277
      %s295 = sphi 0, %s295
      %s297 = sphi 0, %s295
      %s298 = sphi 0, %s297
      %s312 = sphi 0, %s298
      %s316 = sphi 0, %s316
      %s318 = sphi 0, %s316
      %s319 = sphi 0, %s318
      %s333 = sphi 0, %s319
      %s337 = sphi 0, %s337
      %s339 = sphi 0, %s337
      %s340 = sphi 0, %s339
      %s354 = sphi 0, %s340
      %s358 = sphi 0, %s358
      %s360 = sphi 0, %s358
      %s361 = sphi 0, %s360
      %s375 = sphi 0, %s361
      %s379 = sphi 0, %s379
      %s381 = sphi 0, %s379
      %s382 = sphi 0, %s381
      %s396 = sphi 0, %s382
      %s400 = sphi 0, %s400
      %s402 = sphi 0, %s400
      %s403 = sphi 0, %s402
      %s417 = sphi 0, %s403
      %s421 = sphi 0, %s421
      %s423 = sphi 0, %s421
      %s424 = sphi 0, %s423
      %s438 = sphi 0, %s424
      %s442 = sphi 0, %s442
      %s444 = sphi 0, %s442
      %s445 = sphi 0, %s444
      %s459 = sphi 0, %s445
      %s463 = sphi 0, %s463
      %s465 = sphi 0, %s463
      %s466 = sphi 0, %s465
      %s480 = sphi 0, %s466
      %s484 = sphi 0, %s484
      %s486 = sphi 0, %s484
      %s487 = sphi 0, %s486
      %s501 = sphi 0, %s487
      %s505 = sphi 0, %s505
      %s507 = sphi 0, %s505
      %s508 = sphi 0, %s507
      %s522 = sphi 0, %s508
      %s526 = sphi 0, %s526
      %s528 = sphi 0, %s526
      %s529 = sphi 0, %s528
      %s543 = sphi 0, %s529
      %s547 = sphi 0, %s547
      %s549 = sphi 0, %s547
      %s550 = sphi 0, %s549
      %s564 = sphi 0, %s550
      %s568 = sphi 0, %s568
      %s570 = sphi 0, %s568
      %s571 = sphi 0, %s570
      %s585 = sphi 0, %s571
      %s589 = sphi 0, %s589
      %s591 = sphi 0, %s589
      %s592 = sphi 0, %s591
      %s606 = sphi 0, %s592
      %s610 = sphi 0, %s610
      %s612 = sphi 0, %s610
      %s613 = sphi 0, %s612
      %s627 = sphi 0, %s613
      %s633 = sphi 0, %s635
      %s636 = sphi 0, %s633
      %s637 = sphi 0, %s636
      %s653 = sphi 0, %s637
      %s659 = sphi 0, %s661
      %s662 = sphi 0, %s659
      %s663 = sphi 0, %s662
      %s679 = sphi 0, %s663
    $region4: #{text_encoder_forward.1} parent=1 // loop_header_branch
      %44 = sbr.rel (%p42) target = $region8
    $region5: #{text_encoder_forward.1} parent=1 // loop_body
      %s46 = ssub.s32 %s41, 1
      %s47 = ssub.s32 %s41, 2
      %s48 = sadd.s32 %s41, 1
      %s49 = ssub.s32 %s41, %s48
      %p50 = scmp.eq.s32.totalorder %s49, 0
      %s52 = sadd.s32 %s51, 1
      %s53 = scalar_select %p50, %s51, %s52
      %p56 = pneg %p50
      %p57 = scmp.eq.s32.totalorder %s41, 1
      %p58 = por %p56, %p57
      %p59 = scmp.ne.s32.totalorder %s51, %s54
      %p60 = scmp.eq.s32.totalorder %s41, 0
      %p61 = por %p59, %p60
      %p62 = scmp.ne.s32.totalorder %s51, %s54
      %p63 = scmp.eq.s32.totalorder %s46, 1
      %p64 = por %p62, %p63
      %p65 = scmp.ne.s32.totalorder %s54, %s55
      %p66 = scmp.eq.s32.totalorder %s46, 0
      %p67 = por %p65, %p66
      %p68 = scmp.ne.s32.totalorder %s54, %s55
      %p69 = scmp.eq.s32.totalorder %s47, 1
      %p70 = por %p68, %p69
      %p72 = scmp.ne.s32.totalorder %s55, %s71
      %p73 = scmp.eq.s32.totalorder %s47, 0
      %p74 = por %p72, %p73
      %s75 = ssub.s32 %s41, %s48
      %p76 = scmp.eq.s32.totalorder %s75, 0
      %s78 = sadd.s32 %s77, 1
      %s79 = scalar_select %p76, %s77, %s78
      %p82 = pneg %p76
      %p83 = scmp.eq.s32.totalorder %s41, 1
      %p84 = por %p82, %p83
      %p85 = scmp.ne.s32.totalorder %s77, %s80
      %p86 = scmp.eq.s32.totalorder %s41, 0
      %p87 = por %p85, %p86
      %p88 = scmp.ne.s32.totalorder %s77, %s80
      %p89 = scmp.eq.s32.totalorder %s46, 1
      %p90 = por %p88, %p89
      %p91 = scmp.ne.s32.totalorder %s80, %s81
      %p92 = scmp.eq.s32.totalorder %s46, 0
      %p93 = por %p91, %p92
      %p94 = scmp.ne.s32.totalorder %s80, %s81
      %p95 = scmp.eq.s32.totalorder %s47, 1
      %p96 = por %p94, %p95
      %p98 = scmp.ne.s32.totalorder %s81, %s97
      %p99 = scmp.eq.s32.totalorder %s47, 0
      %p100 = por %p98, %p99
      %s101 = ssub.s32 %s41, %s48
      %p102 = scmp.eq.s32.totalorder %s101, 0
      %s104 = sadd.s32 %s103, 1
      %s105 = scalar_select %p102, %s103, %s104
      %p108 = pneg %p102
      %p109 = scmp.eq.s32.totalorder %s41, 1
      %p110 = por %p108, %p109
      %p111 = scmp.ne.s32.totalorder %s103, %s106
      %p112 = scmp.eq.s32.totalorder %s41, 0
      %p113 = por %p111, %p112
      %p114 = scmp.ne.s32.totalorder %s103, %s106
      %p115 = scmp.eq.s32.totalorder %s46, 1
      %p116 = por %p114, %p115
      %p117 = scmp.ne.s32.totalorder %s106, %s107
      %p118 = scmp.eq.s32.totalorder %s46, 0
      %p119 = por %p117, %p118
      %p120 = scmp.ne.s32.totalorder %s106, %s107
      %p121 = scmp.eq.s32.totalorder %s47, 1
      %p122 = por %p120, %p121
      %p124 = scmp.ne.s32.totalorder %s107, %s123
      %p125 = scmp.eq.s32.totalorder %s47, 0
      %p126 = por %p124, %p125
      %s128 = sadd.s32 %s127, 1
      %p131 = scmp.eq.s32.totalorder %s41, 1
      %p132 = scmp.ne.s32.totalorder %s127, %s129
      %p133 = scmp.eq.s32.totalorder %s41, 0
      %p134 = por %p132, %p133
      %p135 = scmp.ne.s32.totalorder %s127, %s129
      %p136 = scmp.eq.s32.totalorder %s46, 1
      %p137 = por %p135, %p136
      %p138 = scmp.ne.s32.totalorder %s129, %s130
      %p139 = scmp.eq.s32.totalorder %s46, 0
      %p140 = por %p138, %p139
      %p141 = scmp.ne.s32.totalorder %s129, %s130
      %p142 = scmp.eq.s32.totalorder %s47, 1
      %p143 = por %p141, %p142
      %p145 = scmp.ne.s32.totalorder %s130, %s144
      %p146 = scmp.eq.s32.totalorder %s47, 0
      %p147 = por %p145, %p146
      %s149 = sadd.s32 %s148, 1
      %p152 = scmp.eq.s32.totalorder %s41, 1
      %p153 = scmp.ne.s32.totalorder %s148, %s150
      %p154 = scmp.eq.s32.totalorder %s41, 0
      %p155 = por %p153, %p154
      %p156 = scmp.ne.s32.totalorder %s148, %s150
      %p157 = scmp.eq.s32.totalorder %s46, 1
      %p158 = por %p156, %p157
      %p159 = scmp.ne.s32.totalorder %s150, %s151
      %p160 = scmp.eq.s32.totalorder %s46, 0
      %p161 = por %p159, %p160
      %p162 = scmp.ne.s32.totalorder %s150, %s151
      %p163 = scmp.eq.s32.totalorder %s47, 1
      %p164 = por %p162, %p163
      %p166 = scmp.ne.s32.totalorder %s151, %s165
      %p167 = scmp.eq.s32.totalorder %s47, 0
      %p168 = por %p166, %p167
      %s170 = sadd.s32 %s169, 1
      %p173 = scmp.eq.s32.totalorder %s41, 1
      %p174 = scmp.ne.s32.totalorder %s169, %s171
      %p175 = scmp.eq.s32.totalorder %s41, 0
      %p176 = por %p174, %p175
      %p177 = scmp.ne.s32.totalorder %s169, %s171
      %p178 = scmp.eq.s32.totalorder %s46, 1
      %p179 = por %p177, %p178
      %p180 = scmp.ne.s32.totalorder %s171, %s172
      %p181 = scmp.eq.s32.totalorder %s46, 0
      %p182 = por %p180, %p181
      %p183 = scmp.ne.s32.totalorder %s171, %s172
      %p184 = scmp.eq.s32.totalorder %s47, 1
      %p185 = por %p183, %p184
      %p187 = scmp.ne.s32.totalorder %s172, %s186
      %p188 = scmp.eq.s32.totalorder %s47, 0
      %p189 = por %p187, %p188
      %s191 = sadd.s32 %s190, 1
      %p194 = scmp.eq.s32.totalorder %s41, 1
      %p195 = scmp.ne.s32.totalorder %s190, %s192
      %p196 = scmp.eq.s32.totalorder %s41, 0
      %p197 = por %p195, %p196
      %p198 = scmp.ne.s32.totalorder %s190, %s192
      %p199 = scmp.eq.s32.totalorder %s46, 1
      %p200 = por %p198, %p199
      %p201 = scmp.ne.s32.totalorder %s192, %s193
      %p202 = scmp.eq.s32.totalorder %s46, 0
      %p203 = por %p201, %p202
      %p204 = scmp.ne.s32.totalorder %s192, %s193
      %p205 = scmp.eq.s32.totalorder %s47, 1
      %p206 = por %p204, %p205
      %p208 = scmp.ne.s32.totalorder %s193, %s207
      %p209 = scmp.eq.s32.totalorder %s47, 0
      %p210 = por %p208, %p209
      %s212 = sadd.s32 %s211, 1
      %p215 = scmp.eq.s32.totalorder %s41, 1
      %p216 = scmp.ne.s32.totalorder %s211, %s213
      %p217 = scmp.eq.s32.totalorder %s41, 0
      %p218 = por %p216, %p217
      %p219 = scmp.ne.s32.totalorder %s211, %s213
      %p220 = scmp.eq.s32.totalorder %s46, 1
      %p221 = por %p219, %p220
      %p222 = scmp.ne.s32.totalorder %s213, %s214
      %p223 = scmp.eq.s32.totalorder %s46, 0
      %p224 = por %p222, %p223
      %p225 = scmp.ne.s32.totalorder %s213, %s214
      %p226 = scmp.eq.s32.totalorder %s47, 1
      %p227 = por %p225, %p226
      %p229 = scmp.ne.s32.totalorder %s214, %s228
      %p230 = scmp.eq.s32.totalorder %s47, 0
      %p231 = por %p229, %p230
      %s233 = sadd.s32 %s232, 1
      %p236 = scmp.eq.s32.totalorder %s41, 1
      %p237 = scmp.ne.s32.totalorder %s232, %s234
      %p238 = scmp.eq.s32.totalorder %s41, 0
      %p239 = por %p237, %p238
      %p240 = scmp.ne.s32.totalorder %s232, %s234
      %p241 = scmp.eq.s32.totalorder %s46, 1
      %p242 = por %p240, %p241
      %p243 = scmp.ne.s32.totalorder %s234, %s235
      %p244 = scmp.eq.s32.totalorder %s46, 0
      %p245 = por %p243, %p244
      %p246 = scmp.ne.s32.totalorder %s234, %s235
      %p247 = scmp.eq.s32.totalorder %s47, 1
      %p248 = por %p246, %p247
      %p250 = scmp.ne.s32.totalorder %s235, %s249
      %p251 = scmp.eq.s32.totalorder %s47, 0
      %p252 = por %p250, %p251
      %s254 = sadd.s32 %s253, 1
      %p257 = scmp.eq.s32.totalorder %s41, 1
      %p258 = scmp.ne.s32.totalorder %s253, %s255
      %p259 = scmp.eq.s32.totalorder %s41, 0
      %p260 = por %p258, %p259
      %p261 = scmp.ne.s32.totalorder %s253, %s255
      %p262 = scmp.eq.s32.totalorder %s46, 1
      %p263 = por %p261, %p262
      %p264 = scmp.ne.s32.totalorder %s255, %s256
      %p265 = scmp.eq.s32.totalorder %s46, 0
      %p266 = por %p264, %p265
      %p267 = scmp.ne.s32.totalorder %s255, %s256
      %p268 = scmp.eq.s32.totalorder %s47, 1
      %p269 = por %p267, %p268
      %p271 = scmp.ne.s32.totalorder %s256, %s270
      %p272 = scmp.eq.s32.totalorder %s47, 0
      %p273 = por %p271, %p272
      %s275 = sadd.s32 %s274, 1
      %p278 = scmp.eq.s32.totalorder %s41, 1
      %p279 = scmp.ne.s32.totalorder %s274, %s276
      %p280 = scmp.eq.s32.totalorder %s41, 0
      %p281 = por %p279, %p280
      %p282 = scmp.ne.s32.totalorder %s274, %s276
      %p283 = scmp.eq.s32.totalorder %s46, 1
      %p284 = por %p282, %p283
      %p285 = scmp.ne.s32.totalorder %s276, %s277
      %p286 = scmp.eq.s32.totalorder %s46, 0
      %p287 = por %p285, %p286
      %p288 = scmp.ne.s32.totalorder %s276, %s277
      %p289 = scmp.eq.s32.totalorder %s47, 1
      %p290 = por %p288, %p289
      %p292 = scmp.ne.s32.totalorder %s277, %s291
      %p293 = scmp.eq.s32.totalorder %s47, 0
      %p294 = por %p292, %p293
      %s296 = sadd.s32 %s295, 1
      %p299 = scmp.eq.s32.totalorder %s41, 1
      %p300 = scmp.ne.s32.totalorder %s295, %s297
      %p301 = scmp.eq.s32.totalorder %s41, 0
      %p302 = por %p300, %p301
      %p303 = scmp.ne.s32.totalorder %s295, %s297
      %p304 = scmp.eq.s32.totalorder %s46, 1
      %p305 = por %p303, %p304
      %p306 = scmp.ne.s32.totalorder %s297, %s298
      %p307 = scmp.eq.s32.totalorder %s46, 0
      %p308 = por %p306, %p307
      %p309 = scmp.ne.s32.totalorder %s297, %s298
      %p310 = scmp.eq.s32.totalorder %s47, 1
      %p311 = por %p309, %p310
      %p313 = scmp.ne.s32.totalorder %s298, %s312
      %p314 = scmp.eq.s32.totalorder %s47, 0
      %p315 = por %p313, %p314
      %s317 = sadd.s32 %s316, 1
      %p320 = scmp.eq.s32.totalorder %s41, 1
      %p321 = scmp.ne.s32.totalorder %s316, %s318
      %p322 = scmp.eq.s32.totalorder %s41, 0
      %p323 = por %p321, %p322
      %p324 = scmp.ne.s32.totalorder %s316, %s318
      %p325 = scmp.eq.s32.totalorder %s46, 1
      %p326 = por %p324, %p325
      %p327 = scmp.ne.s32.totalorder %s318, %s319
      %p328 = scmp.eq.s32.totalorder %s46, 0
      %p329 = por %p327, %p328
      %p330 = scmp.ne.s32.totalorder %s318, %s319
      %p331 = scmp.eq.s32.totalorder %s47, 1
      %p332 = por %p330, %p331
      %p334 = scmp.ne.s32.totalorder %s319, %s333
      %p335 = scmp.eq.s32.totalorder %s47, 0
      %p336 = por %p334, %p335
      %s338 = sadd.s32 %s337, 1
      %p341 = scmp.eq.s32.totalorder %s41, 1
      %p342 = scmp.ne.s32.totalorder %s337, %s339
      %p343 = scmp.eq.s32.totalorder %s41, 0
      %p344 = por %p342, %p343
      %p345 = scmp.ne.s32.totalorder %s337, %s339
      %p346 = scmp.eq.s32.totalorder %s46, 1
      %p347 = por %p345, %p346
      %p348 = scmp.ne.s32.totalorder %s339, %s340
      %p349 = scmp.eq.s32.totalorder %s46, 0
      %p350 = por %p348, %p349
      %p351 = scmp.ne.s32.totalorder %s339, %s340
      %p352 = scmp.eq.s32.totalorder %s47, 1
      %p353 = por %p351, %p352
      %p355 = scmp.ne.s32.totalorder %s340, %s354
      %p356 = scmp.eq.s32.totalorder %s47, 0
      %p357 = por %p355, %p356
      %s359 = sadd.s32 %s358, 1
      %p362 = scmp.eq.s32.totalorder %s41, 1
      %p363 = scmp.ne.s32.totalorder %s358, %s360
      %p364 = scmp.eq.s32.totalorder %s41, 0
      %p365 = por %p363, %p364
      %p366 = scmp.ne.s32.totalorder %s358, %s360
      %p367 = scmp.eq.s32.totalorder %s46, 1
      %p368 = por %p366, %p367
      %p369 = scmp.ne.s32.totalorder %s360, %s361
      %p370 = scmp.eq.s32.totalorder %s46, 0
      %p371 = por %p369, %p370
      %p372 = scmp.ne.s32.totalorder %s360, %s361
      %p373 = scmp.eq.s32.totalorder %s47, 1
      %p374 = por %p372, %p373
      %p376 = scmp.ne.s32.totalorder %s361, %s375
      %p377 = scmp.eq.s32.totalorder %s47, 0
      %p378 = por %p376, %p377
      %s380 = sadd.s32 %s379, 1
      %p383 = scmp.eq.s32.totalorder %s41, 1
      %p384 = scmp.ne.s32.totalorder %s379, %s381
      %p385 = scmp.eq.s32.totalorder %s41, 0
      %p386 = por %p384, %p385
      %p387 = scmp.ne.s32.totalorder %s379, %s381
      %p388 = scmp.eq.s32.totalorder %s46, 1
      %p389 = por %p387, %p388
      %p390 = scmp.ne.s32.totalorder %s381, %s382
      %p391 = scmp.eq.s32.totalorder %s46, 0
      %p392 = por %p390, %p391
      %p393 = scmp.ne.s32.totalorder %s381, %s382
      %p394 = scmp.eq.s32.totalorder %s47, 1
      %p395 = por %p393, %p394
      %p397 = scmp.ne.s32.totalorder %s382, %s396
      %p398 = scmp.eq.s32.totalorder %s47, 0
      %p399 = por %p397, %p398
      %s401 = sadd.s32 %s400, 1
      %p404 = scmp.eq.s32.totalorder %s41, 1
      %p405 = scmp.ne.s32.totalorder %s400, %s402
      %p406 = scmp.eq.s32.totalorder %s41, 0
      %p407 = por %p405, %p406
      %p408 = scmp.ne.s32.totalorder %s400, %s402
      %p409 = scmp.eq.s32.totalorder %s46, 1
      %p410 = por %p408, %p409
      %p411 = scmp.ne.s32.totalorder %s402, %s403
      %p412 = scmp.eq.s32.totalorder %s46, 0
      %p413 = por %p411, %p412
      %p414 = scmp.ne.s32.totalorder %s402, %s403
      %p415 = scmp.eq.s32.totalorder %s47, 1
      %p416 = por %p414, %p415
      %p418 = scmp.ne.s32.totalorder %s403, %s417
      %p419 = scmp.eq.s32.totalorder %s47, 0
      %p420 = por %p418, %p419
      %s422 = sadd.s32 %s421, 1
      %p425 = scmp.eq.s32.totalorder %s41, 1
      %p426 = scmp.ne.s32.totalorder %s421, %s423
      %p427 = scmp.eq.s32.totalorder %s41, 0
      %p428 = por %p426, %p427
      %p429 = scmp.ne.s32.totalorder %s421, %s423
      %p430 = scmp.eq.s32.totalorder %s46, 1
      %p431 = por %p429, %p430
      %p432 = scmp.ne.s32.totalorder %s423, %s424
      %p433 = scmp.eq.s32.totalorder %s46, 0
      %p434 = por %p432, %p433
      %p435 = scmp.ne.s32.totalorder %s423, %s424
      %p436 = scmp.eq.s32.totalorder %s47, 1
      %p437 = por %p435, %p436
      %p439 = scmp.ne.s32.totalorder %s424, %s438
      %p440 = scmp.eq.s32.totalorder %s47, 0
      %p441 = por %p439, %p440
      %s443 = sadd.s32 %s442, 1
      %p446 = scmp.eq.s32.totalorder %s41, 1
      %p447 = scmp.ne.s32.totalorder %s442, %s444
      %p448 = scmp.eq.s32.totalorder %s41, 0
      %p449 = por %p447, %p448
      %p450 = scmp.ne.s32.totalorder %s442, %s444
      %p451 = scmp.eq.s32.totalorder %s46, 1
      %p452 = por %p450, %p451
      %p453 = scmp.ne.s32.totalorder %s444, %s445
      %p454 = scmp.eq.s32.totalorder %s46, 0
      %p455 = por %p453, %p454
      %p456 = scmp.ne.s32.totalorder %s444, %s445
      %p457 = scmp.eq.s32.totalorder %s47, 1
      %p458 = por %p456, %p457
      %p460 = scmp.ne.s32.totalorder %s445, %s459
      %p461 = scmp.eq.s32.totalorder %s47, 0
      %p462 = por %p460, %p461
      %s464 = sadd.s32 %s463, 1
      %p467 = scmp.eq.s32.totalorder %s41, 1
      %p468 = scmp.ne.s32.totalorder %s463, %s465
      %p469 = scmp.eq.s32.totalorder %s41, 0
      %p470 = por %p468, %p469
      %p471 = scmp.ne.s32.totalorder %s463, %s465
      %p472 = scmp.eq.s32.totalorder %s46, 1
      %p473 = por %p471, %p472
      %p474 = scmp.ne.s32.totalorder %s465, %s466
      %p475 = scmp.eq.s32.totalorder %s46, 0
      %p476 = por %p474, %p475
      %p477 = scmp.ne.s32.totalorder %s465, %s466
      %p478 = scmp.eq.s32.totalorder %s47, 1
      %p479 = por %p477, %p478
      %p481 = scmp.ne.s32.totalorder %s466, %s480
      %p482 = scmp.eq.s32.totalorder %s47, 0
      %p483 = por %p481, %p482
      %s485 = sadd.s32 %s484, 1
      %p488 = scmp.eq.s32.totalorder %s41, 1
      %p489 = scmp.ne.s32.totalorder %s484, %s486
      %p490 = scmp.eq.s32.totalorder %s41, 0
      %p491 = por %p489, %p490
      %p492 = scmp.ne.s32.totalorder %s484, %s486
      %p493 = scmp.eq.s32.totalorder %s46, 1
      %p494 = por %p492, %p493
      %p495 = scmp.ne.s32.totalorder %s486, %s487
      %p496 = scmp.eq.s32.totalorder %s46, 0
      %p497 = por %p495, %p496
      %p498 = scmp.ne.s32.totalorder %s486, %s487
      %p499 = scmp.eq.s32.totalorder %s47, 1
      %p500 = por %p498, %p499
      %p502 = scmp.ne.s32.totalorder %s487, %s501
      %p503 = scmp.eq.s32.totalorder %s47, 0
      %p504 = por %p502, %p503
      %s506 = sadd.s32 %s505, 1
      %p509 = scmp.eq.s32.totalorder %s41, 1
      %p510 = scmp.ne.s32.totalorder %s505, %s507
      %p511 = scmp.eq.s32.totalorder %s41, 0
      %p512 = por %p510, %p511
      %p513 = scmp.ne.s32.totalorder %s505, %s507
      %p514 = scmp.eq.s32.totalorder %s46, 1
      %p515 = por %p513, %p514
      %p516 = scmp.ne.s32.totalorder %s507, %s508
      %p517 = scmp.eq.s32.totalorder %s46, 0
      %p518 = por %p516, %p517
      %p519 = scmp.ne.s32.totalorder %s507, %s508
      %p520 = scmp.eq.s32.totalorder %s47, 1
      %p521 = por %p519, %p520
      %p523 = scmp.ne.s32.totalorder %s508, %s522
      %p524 = scmp.eq.s32.totalorder %s47, 0
      %p525 = por %p523, %p524
      %s527 = sadd.s32 %s526, 1
      %p530 = scmp.eq.s32.totalorder %s41, 1
      %p531 = scmp.ne.s32.totalorder %s526, %s528
      %p532 = scmp.eq.s32.totalorder %s41, 0
      %p533 = por %p531, %p532
      %p534 = scmp.ne.s32.totalorder %s526, %s528
      %p535 = scmp.eq.s32.totalorder %s46, 1
      %p536 = por %p534, %p535
      %p537 = scmp.ne.s32.totalorder %s528, %s529
      %p538 = scmp.eq.s32.totalorder %s46, 0
      %p539 = por %p537, %p538
      %p540 = scmp.ne.s32.totalorder %s528, %s529
      %p541 = scmp.eq.s32.totalorder %s47, 1
      %p542 = por %p540, %p541
      %p544 = scmp.ne.s32.totalorder %s529, %s543
      %p545 = scmp.eq.s32.totalorder %s47, 0
      %p546 = por %p544, %p545
      %s548 = sadd.s32 %s547, 1
      %p551 = scmp.eq.s32.totalorder %s41, 1
      %p552 = scmp.ne.s32.totalorder %s547, %s549
      %p553 = scmp.eq.s32.totalorder %s41, 0
      %p554 = por %p552, %p553
      %p555 = scmp.ne.s32.totalorder %s547, %s549
      %p556 = scmp.eq.s32.totalorder %s46, 1
      %p557 = por %p555, %p556
      %p558 = scmp.ne.s32.totalorder %s549, %s550
      %p559 = scmp.eq.s32.totalorder %s46, 0
      %p560 = por %p558, %p559
      %p561 = scmp.ne.s32.totalorder %s549, %s550
      %p562 = scmp.eq.s32.totalorder %s47, 1
      %p563 = por %p561, %p562
      %p565 = scmp.ne.s32.totalorder %s550, %s564
      %p566 = scmp.eq.s32.totalorder %s47, 0
      %p567 = por %p565, %p566
      %s569 = sadd.s32 %s568, 1
      %p572 = scmp.eq.s32.totalorder %s41, 1
      %p573 = scmp.ne.s32.totalorder %s568, %s570
      %p574 = scmp.eq.s32.totalorder %s41, 0
      %p575 = por %p573, %p574
      %p576 = scmp.ne.s32.totalorder %s568, %s570
      %p577 = scmp.eq.s32.totalorder %s46, 1
      %p578 = por %p576, %p577
      %p579 = scmp.ne.s32.totalorder %s570, %s571
      %p580 = scmp.eq.s32.totalorder %s46, 0
      %p581 = por %p579, %p580
      %p582 = scmp.ne.s32.totalorder %s570, %s571
      %p583 = scmp.eq.s32.totalorder %s47, 1
      %p584 = por %p582, %p583
      %p586 = scmp.ne.s32.totalorder %s571, %s585
      %p587 = scmp.eq.s32.totalorder %s47, 0
      %p588 = por %p586, %p587
      %s590 = sadd.s32 %s589, 1
      %p593 = scmp.eq.s32.totalorder %s41, 1
      %p594 = scmp.ne.s32.totalorder %s589, %s591
      %p595 = scmp.eq.s32.totalorder %s41, 0
      %p596 = por %p594, %p595
      %p597 = scmp.ne.s32.totalorder %s589, %s591
      %p598 = scmp.eq.s32.totalorder %s46, 1
      %p599 = por %p597, %p598
      %p600 = scmp.ne.s32.totalorder %s591, %s592
      %p601 = scmp.eq.s32.totalorder %s46, 0
      %p602 = por %p600, %p601
      %p603 = scmp.ne.s32.totalorder %s591, %s592
      %p604 = scmp.eq.s32.totalorder %s47, 1
      %p605 = por %p603, %p604
      %p607 = scmp.ne.s32.totalorder %s592, %s606
      %p608 = scmp.eq.s32.totalorder %s47, 0
      %p609 = por %p607, %p608
      %s611 = sadd.s32 %s610, 1
      %p614 = scmp.eq.s32.totalorder %s41, 1
      %p615 = scmp.ne.s32.totalorder %s610, %s612
      %p616 = scmp.eq.s32.totalorder %s41, 0
      %p617 = por %p615, %p616
      %p618 = scmp.ne.s32.totalorder %s610, %s612
      %p619 = scmp.eq.s32.totalorder %s46, 1
      %p620 = por %p618, %p619
      %p621 = scmp.ne.s32.totalorder %s612, %s613
      %p622 = scmp.eq.s32.totalorder %s46, 0
      %p623 = por %p621, %p622
      %p624 = scmp.ne.s32.totalorder %s612, %s613
      %p625 = scmp.eq.s32.totalorder %s47, 1
      %p626 = por %p624, %p625
      %p628 = scmp.ne.s32.totalorder %s613, %s627
      %p629 = scmp.eq.s32.totalorder %s47, 0
      %p630 = por %p628, %p629
      %s631 = ssub.s32 %s41, %s48
      %p632 = scmp.eq.s32.totalorder %s631, 0
      %s634 = sadd.s32 %s633, 1
      %s635 = scalar_select %p632, %s633, %s634
      %p638 = pneg %p632
      %p639 = scmp.eq.s32.totalorder %s41, 1
      %p640 = por %p638, %p639
      %p641 = scmp.ne.s32.totalorder %s633, %s636
      %p642 = scmp.eq.s32.totalorder %s41, 0
      %p643 = por %p641, %p642
      %p644 = scmp.ne.s32.totalorder %s633, %s636
      %p645 = scmp.eq.s32.totalorder %s46, 1
      %p646 = por %p644, %p645
      %p647 = scmp.ne.s32.totalorder %s636, %s637
      %p648 = scmp.eq.s32.totalorder %s46, 0
      %p649 = por %p647, %p648
      %p650 = scmp.ne.s32.totalorder %s636, %s637
      %p651 = scmp.eq.s32.totalorder %s47, 1
      %p652 = por %p650, %p651
      %p654 = scmp.ne.s32.totalorder %s637, %s653
      %p655 = scmp.eq.s32.totalorder %s47, 0
      %p656 = por %p654, %p655
      %s657 = ssub.s32 %s41, %s48
      %p658 = scmp.eq.s32.totalorder %s657, 0
      %s660 = sadd.s32 %s659, 1
      %s661 = scalar_select %p658, %s659, %s660
      %p664 = pneg %p658
      %p665 = scmp.eq.s32.totalorder %s41, 1
      %p666 = por %p664, %p665
      %p667 = scmp.ne.s32.totalorder %s659, %s662
      %p668 = scmp.eq.s32.totalorder %s41, 0
      %p669 = por %p667, %p668
      %p670 = scmp.ne.s32.totalorder %s659, %s662
      %p671 = scmp.eq.s32.totalorder %s46, 1
      %p672 = por %p670, %p671
      %p673 = scmp.ne.s32.totalorder %s662, %s663
      %p674 = scmp.eq.s32.totalorder %s46, 0
      %p675 = por %p673, %p674
      %p676 = scmp.ne.s32.totalorder %s662, %s663
      %p677 = scmp.eq.s32.totalorder %s47, 1
      %p678 = por %p676, %p677
      %p680 = scmp.ne.s32.totalorder %s663, %s679
      %p681 = scmp.eq.s32.totalorder %s47, 0
      %p682 = por %p680, %p681
      %p683 = scmp.le.s32.totalorder 1, %s41
      %p684 = scmp.lt.s32.totalorder %s41, 3
      %p685 = pnand %p683, %p684
      %p686 = pneg %p685
      // Predicated region
      $region9: #{text_encoder_forward.1} parent=5 // pred_check
        _
      $region10: #{text_encoder_forward.1} parent=5 // pred_check_branch
        %688 = sbr.rel (%p685) target = $region12
      $region11: #{text_encoder_forward.1} parent=5 // pred_region
        %s689 = ssub.s32 %s41, 1
        // Predicated region
        $region13: #{text_encoder_forward.1} parent=11 // pred_check
          %p690 = pneg %p140
        $region14: #{text_encoder_forward.1} parent=11 // pred_check_branch
          %692 = sbr.rel (%p690) target = $region16
        $region15: #{text_encoder_forward.1} parent=11 // pred_region
          _
        $region16: #{text_encoder_forward.1} parent=11 // pred_fallthru
          _
        // Predicated region
        $region17: #{text_encoder_forward.1} parent=11 // pred_check
          %p693 = pneg %p161
        $region18: #{text_encoder_forward.1} parent=11 // pred_check_branch
          %695 = sbr.rel (%p693) target = $region20
        $region19: #{text_encoder_forward.1} parent=11 // pred_region
          _
        $region20: #{text_encoder_forward.1} parent=11 // pred_fallthru
          _
        // Predicated region
        $region21: #{text_encoder_forward.1} parent=11 // pred_check
          %p696 = pneg %p182
        $region22: #{text_encoder_forward.1} parent=11 // pred_check_branch
          %698 = sbr.rel (%p696) target = $region24
        $region23: #{text_encoder_forward.1} parent=11 // pred_region
          _
        $region24: #{text_encoder_forward.1} parent=11 // pred_fallthru
          _
        // Predicated region
        $region25: #{text_encoder_forward.1} parent=11 // pred_check
          %p699 = pneg %p203
        $region26: #{text_encoder_forward.1} parent=11 // pred_check_branch
          %701 = sbr.rel (%p699) target = $region28
        $region27: #{text_encoder_forward.1} parent=11 // pred_region
          _
        $region28: #{text_encoder_forward.1} parent=11 // pred_fallthru
          _
        // Predicated region
        $region29: #{text_encoder_forward.1} parent=11 // pred_check
          %p702 = pneg %p224
        $region30: #{text_encoder_forward.1} parent=11 // pred_check_branch
          %704 = sbr.rel (%p702) target = $region32
        $region31: #{text_encoder_forward.1} parent=11 // pred_region
          _
        $region32: #{text_encoder_forward.1} parent=11 // pred_fallthru
          _
        // Predicated region
        $region33: #{text_encoder_forward.1} parent=11 // pred_check
          %p705 = pneg %p245
        $region34: #{text_encoder_forward.1} parent=11 // pred_check_branch
          %707 = sbr.rel (%p705) target = $region36
        $region35: #{text_encoder_forward.1} parent=11 // pred_region
          _
        $region36: #{text_encoder_forward.1} parent=11 // pred_fallthru
          _
        // Predicated region
        $region37: #{text_encoder_forward.1} parent=11 // pred_check
          %p708 = pneg %p266
        $region38: #{text_encoder_forward.1} parent=11 // pred_check_branch
          %710 = sbr.rel (%p708) target = $region40
        $region39: #{text_encoder_forward.1} parent=11 // pred_region
          _
        $region40: #{text_encoder_forward.1} parent=11 // pred_fallthru
          _
        // Predicated region
        $region41: #{text_encoder_forward.1} parent=11 // pred_check
          %p711 = pneg %p287
        $region42: #{text_encoder_forward.1} parent=11 // pred_check_branch
          %713 = sbr.rel (%p711) target = $region44
        $region43: #{text_encoder_forward.1} parent=11 // pred_region
          _
        $region44: #{text_encoder_forward.1} parent=11 // pred_fallthru
          _
        // Predicated region
        $region45: #{text_encoder_forward.1} parent=11 // pred_check
          %p714 = pneg %p308
        $region46: #{text_encoder_forward.1} parent=11 // pred_check_branch
          %716 = sbr.rel (%p714) target = $region48
        $region47: #{text_encoder_forward.1} parent=11 // pred_region
          _
        $region48: #{text_encoder_forward.1} parent=11 // pred_fallthru
          _
        // Predicated region
        $region49: #{text_encoder_forward.1} parent=11 // pred_check
          %p717 = pneg %p329
        $region50: #{text_encoder_forward.1} parent=11 // pred_check_branch
          %719 = sbr.rel (%p717) target = $region52
        $region51: #{text_encoder_forward.1} parent=11 // pred_region
          _
        $region52: #{text_encoder_forward.1} parent=11 // pred_fallthru
          _
        // Predicated region
        $region53: #{text_encoder_forward.1} parent=11 // pred_check
          %p720 = pneg %p350
        $region54: #{text_encoder_forward.1} parent=11 // pred_check_branch
          %722 = sbr.rel (%p720) target = $region56
        $region55: #{text_encoder_forward.1} parent=11 // pred_region
          _
        $region56: #{text_encoder_forward.1} parent=11 // pred_fallthru
          _
        // Predicated region
        $region57: #{text_encoder_forward.1} parent=11 // pred_check
          %p723 = pneg %p371
        $region58: #{text_encoder_forward.1} parent=11 // pred_check_branch
          %725 = sbr.rel (%p723) target = $region60
        $region59: #{text_encoder_forward.1} parent=11 // pred_region
          _
        $region60: #{text_encoder_forward.1} parent=11 // pred_fallthru
          _
        // Predicated region
        $region61: #{text_encoder_forward.1} parent=11 // pred_check
          %p726 = pneg %p392
        $region62: #{text_encoder_forward.1} parent=11 // pred_check_branch
          %728 = sbr.rel (%p726) target = $region64
        $region63: #{text_encoder_forward.1} parent=11 // pred_region
          _
        $region64: #{text_encoder_forward.1} parent=11 // pred_fallthru
          _
        // Predicated region
        $region65: #{text_encoder_forward.1} parent=11 // pred_check
          %p729 = pneg %p413
        $region66: #{text_encoder_forward.1} parent=11 // pred_check_branch
          %731 = sbr.rel (%p729) target = $region68
        $region67: #{text_encoder_forward.1} parent=11 // pred_region
          _
        $region68: #{text_encoder_forward.1} parent=11 // pred_fallthru
          _
        // Predicated region
        $region69: #{text_encoder_forward.1} parent=11 // pred_check
          %p732 = pneg %p434
        $region70: #{text_encoder_forward.1} parent=11 // pred_check_branch
          %734 = sbr.rel (%p732) target = $region72
        $region71: #{text_encoder_forward.1} parent=11 // pred_region
          _
        $region72: #{text_encoder_forward.1} parent=11 // pred_fallthru
          _
        // Predicated region
        $region73: #{text_encoder_forward.1} parent=11 // pred_check
          %p735 = pneg %p455
        $region74: #{text_encoder_forward.1} parent=11 // pred_check_branch
          %737 = sbr.rel (%p735) target = $region76
        $region75: #{text_encoder_forward.1} parent=11 // pred_region
          _
        $region76: #{text_encoder_forward.1} parent=11 // pred_fallthru
          _
        // Predicated region
        $region77: #{text_encoder_forward.1} parent=11 // pred_check
          %p738 = pneg %p476
        $region78: #{text_encoder_forward.1} parent=11 // pred_check_branch
          %740 = sbr.rel (%p738) target = $region80
        $region79: #{text_encoder_forward.1} parent=11 // pred_region
          _
        $region80: #{text_encoder_forward.1} parent=11 // pred_fallthru
          _
        // Predicated region
        $region81: #{text_encoder_forward.1} parent=11 // pred_check
          %p741 = pneg %p497
        $region82: #{text_encoder_forward.1} parent=11 // pred_check_branch
          %743 = sbr.rel (%p741) target = $region84
        $region83: #{text_encoder_forward.1} parent=11 // pred_region
          _
        $region84: #{text_encoder_forward.1} parent=11 // pred_fallthru
          _
        // Predicated region
        $region85: #{text_encoder_forward.1} parent=11 // pred_check
          %p744 = pneg %p518
        $region86: #{text_encoder_forward.1} parent=11 // pred_check_branch
          %746 = sbr.rel (%p744) target = $region88
        $region87: #{text_encoder_forward.1} parent=11 // pred_region
          _
        $region88: #{text_encoder_forward.1} parent=11 // pred_fallthru
          _
        // Predicated region
        $region89: #{text_encoder_forward.1} parent=11 // pred_check
          %p747 = pneg %p539
        $region90: #{text_encoder_forward.1} parent=11 // pred_check_branch
          %749 = sbr.rel (%p747) target = $region92
        $region91: #{text_encoder_forward.1} parent=11 // pred_region
          _
        $region92: #{text_encoder_forward.1} parent=11 // pred_fallthru
          _
        // Predicated region
        $region93: #{text_encoder_forward.1} parent=11 // pred_check
          %p750 = pneg %p560
        $region94: #{text_encoder_forward.1} parent=11 // pred_check_branch
          %752 = sbr.rel (%p750) target = $region96
        $region95: #{text_encoder_forward.1} parent=11 // pred_region
          _
        $region96: #{text_encoder_forward.1} parent=11 // pred_fallthru
          _
        // Predicated region
        $region97: #{text_encoder_forward.1} parent=11 // pred_check
          %p753 = pneg %p581
        $region98: #{text_encoder_forward.1} parent=11 // pred_check_branch
          %755 = sbr.rel (%p753) target = $region100
        $region99: #{text_encoder_forward.1} parent=11 // pred_region
          _
        $region100: #{text_encoder_forward.1} parent=11 // pred_fallthru
          _
        // Predicated region
        $region101: #{text_encoder_forward.1} parent=11 // pred_check
          %p756 = pneg %p602
        $region102: #{text_encoder_forward.1} parent=11 // pred_check_branch
          %758 = sbr.rel (%p756) target = $region104
        $region103: #{text_encoder_forward.1} parent=11 // pred_region
          _
        $region104: #{text_encoder_forward.1} parent=11 // pred_fallthru
          _
        // Predicated region
        $region105: #{text_encoder_forward.1} parent=11 // pred_check
          %p759 = pneg %p623
        $region106: #{text_encoder_forward.1} parent=11 // pred_check_branch
          %761 = sbr.rel (%p759) target = $region108
        $region107: #{text_encoder_forward.1} parent=11 // pred_region
          _
        $region108: #{text_encoder_forward.1} parent=11 // pred_fallthru
          _
      $region12: #{text_encoder_forward.1} parent=5 // pred_fallthru
        _
      %p762 = scmp.lt.s32.totalorder %s41, 2
      // Predicated region
      $region109: #{text_encoder_forward.1} parent=5 // pred_check
        %p763 = pneg %p762
      $region110: #{text_encoder_forward.1} parent=5 // pred_check_branch
        %765 = sbr.rel (%p763) target = $region112
      $region111: #{text_encoder_forward.1} parent=5 // pred_region
        // Predicated region
        $region113: #{text_encoder_forward.1} parent=111 // pred_check
          %p766 = pneg %p61
        $region114: #{text_encoder_forward.1} parent=111 // pred_check_branch
          %768 = sbr.rel (%p766) target = $region116
        $region115: #{text_encoder_forward.1} parent=111 // pred_region
          %p769 = scmp.lt.s32.totalorder %s41, 1
          %s770 = scalar_select %p769, %s41, 1
          %s771 = smul.addr %s770, 2
          %s772 = smul.addr %s771, 8
          %s773 = scalar_lea.vmem %s0, %s772
        $region116: #{text_encoder_forward.1} parent=111 // pred_fallthru
          _
        // Predicated region
        $region117: #{text_encoder_forward.1} parent=111 // pred_check
          %p774 = pneg %p87
        $region118: #{text_encoder_forward.1} parent=111 // pred_check_branch
          %776 = sbr.rel (%p774) target = $region120
        $region119: #{text_encoder_forward.1} parent=111 // pred_region
          %p777 = scmp.lt.s32.totalorder %s41, 1
          %s778 = scalar_select %p777, %s41, 1
          %s779 = scalar_lea.vmem %s1, %s778
        $region120: #{text_encoder_forward.1} parent=111 // pred_fallthru
          _
        // Predicated region
        $region121: #{text_encoder_forward.1} parent=111 // pred_check
          %p780 = pneg %p113
        $region122: #{text_encoder_forward.1} parent=111 // pred_check_branch
          %782 = sbr.rel (%p780) target = $region124
        $region123: #{text_encoder_forward.1} parent=111 // pred_region
          %p783 = scmp.lt.s32.totalorder %s41, 1
          %s784 = scalar_select %p783, %s41, 1
          %s785 = smul.addr %s784, 2
          %s786 = smul.addr %s785, 8
          %s787 = scalar_lea.vmem %s2, %s786
        $region124: #{text_encoder_forward.1} parent=111 // pred_fallthru
          _
      $region112: #{text_encoder_forward.1} parent=5 // pred_fallthru
        _
      %p788 = scmp.le.s32.totalorder 1, %s41
      %p789 = scmp.lt.s32.totalorder %s41, 3
      %p790 = pnand %p788, %p789
      %p791 = pneg %p790
      // Predicated region
      $region125: #{text_encoder_forward.1} parent=5 // pred_check
        _
      $region126: #{text_encoder_forward.1} parent=5 // pred_check_branch
        %793 = sbr.rel (%p790) target = $region128
      $region127: #{text_encoder_forward.1} parent=5 // pred_region
        %s794 = ssub.s32 %s41, 1
        %p795 = scmp.lt.s32.totalorder %s46, 1
        %s796 = scalar_select %p795, %s46, 1
        %s797 = smul.addr %s796, 2
        %s798 = smul.addr %s797, 8
        %s799 = scalar_lea.vmem %s0, %s798
        %p800 = pneg %p67
        %p801 = pneg %p64
        %p802 = scmp.lt.s32.totalorder %s46, 1
        %s803 = scalar_select %p802, %s46, 1
        %s804 = scalar_lea.vmem %s1, %s803
        %p805 = pneg %p93
        %p806 = pneg %p90
        %p807 = scmp.lt.s32.totalorder %s46, 1
        %s808 = scalar_select %p807, %s46, 1
        %s809 = smul.addr %s808, 2
        %s810 = smul.addr %s809, 8
        %s811 = scalar_lea.vmem %s2, %s810
        %p812 = pneg %p119
        %p813 = pneg %p116
        %p814 = pneg %p140
        %p815 = pneg %p137
        %p816 = pneg %p161
        %p817 = pneg %p158
        %p818 = pneg %p182
        %p819 = pneg %p179
        %p820 = pneg %p203
        %p821 = pneg %p200
        %p822 = pneg %p224
        %p823 = pneg %p221
        %p824 = pneg %p245
        %p825 = pneg %p242
        %p826 = pneg %p266
        %p827 = pneg %p263
        %p828 = pneg %p287
        %p829 = pneg %p284
        %p830 = pneg %p308
        %p831 = pneg %p305
        %p832 = pneg %p329
        %p833 = pneg %p326
        %p834 = pneg %p350
        %p835 = pneg %p347
        %p836 = pneg %p371
        %p837 = pneg %p368
        %p838 = pneg %p392
        %p839 = pneg %p389
        %p840 = pneg %p413
        %p841 = pneg %p410
        %p842 = pneg %p434
        %p843 = pneg %p431
        %p844 = pneg %p455
        %p845 = pneg %p452
        %p846 = pneg %p476
        %p847 = pneg %p473
        %p848 = pneg %p497
        %p849 = pneg %p494
        %p850 = pneg %p518
        %p851 = pneg %p515
        %p852 = pneg %p539
        %p853 = pneg %p536
        %p854 = pneg %p560
        %p855 = pneg %p557
        %p856 = pneg %p581
        %p857 = pneg %p578
        %p858 = pneg %p602
        %p859 = pneg %p599
        %p860 = pneg %p623
        %p861 = pneg %p620
        %p862 = pneg %p649
        %p863 = pneg %p646
        %s864 = sand.u32 %s636, 1
        %s865 = scalar_lea.sflag [#allocation3], %s864
        %s866 = sand.u32 %s636, 1
        %s867 = scalar_lea.vmem [#allocation2], %s866
        %p868 = pneg %p675
        %p869 = pneg %p672
        %s870 = sand.u32 %s662, 1
        %s871 = scalar_lea.sflag [#allocation5], %s870
        %s872 = sand.u32 %s662, 1
        %s873 = smul.addr %s872, 16
        %s874 = scalar_lea.vmem [#allocation4], %s873
        %p875 = scmp.lt.s32.totalorder %s46, 1
        %s876 = scalar_select %p875, %s46, 1
        %s877 = smul.addr %s876, 2
        %s878 = smul.addr %s877, 8
        %s879 = scalar_lea.vmem %s0, %s878
        %p880 = scmp.lt.s32.totalorder %s46, 1
        %s881 = scalar_select %p880, %s46, 1
        %s882 = scalar_lea.vmem %s1, %s881
        %p883 = scmp.lt.s32.totalorder %s46, 1
        %s884 = scalar_select %p883, %s46, 1
        %s885 = smul.addr %s884, 2
        %s886 = smul.addr %s885, 8
        %s887 = scalar_lea.vmem %s2, %s886
        %v888 = vld [vmem:[%s879] sm:$0xff]
        %v889 = vld [vmem:[%s879 + $0x8] sm:$0xff]
        %v890 = vld [vmem:[%s3] sm:$0x1]
        %v891 = vld [vmem:[%s4] sm:$0x1]
        %vm892 = vcmask 130048
        %v893 = vsel %vm892, %v888, 0.0
        %894 = vadd.xlane.f32.xlu0 %v893
        %v895 = vpop.xlane.xlu0 %894
        %v896 = vsel %vm892, %v889, 0.0
        %897 = vadd.xlane.f32.xlu0 %v896
        %v898 = vpop.xlane.xlu0 %897
        %v899 = vrcp.pop 16.0
        %v900 = vmul.f32 %v895, %v899
        %v901 = vmul.f32 %v898, %v899
        %v902 = vsub.f32 %v888, %v900
        %v903 = vsub.f32 %v889, %v901
        %v904 = vmul.f32 %v902, %v902
        %v905 = vmul.f32 %v903, %v903
        %v906 = vsel %vm892, %v904, 0.0
        %907 = vadd.xlane.f32.xlu0 %v906
        %v908 = vpop.xlane.xlu0 %907
        %v909 = vsel %vm892, %v905, 0.0
        %910 = vadd.xlane.f32.xlu0 %v909
        %v911 = vpop.xlane.xlu0 %910
        %v912 = vmul.f32 %v908, %v899
        %v913 = vmul.f32 %v911, %v899
        %v914 = vadd.f32 %v912, 1e-12
        %v915 = vadd.f32 %v913, 1e-12
        %v916 = vrsqrt.pop %v914
        %v917 = vrsqrt.pop %v915
        %v918 = vmul.f32 %v902, %v916
        %v919 = vmul.f32 %v903, %v917
        %v921 = vlaneseq
        %v922 = vshrl.u32 %v921, 7
        %v923 = vsub.s32 0, %v922
        %v924 = vrot.slane %v890, %v923
        %v926 = vmul.f32 %v918, %v924
        %v927 = vmul.f32 %v919, %v924
        %v929 = vlaneseq
        %v930 = vshrl.u32 %v929, 7
        %v931 = vsub.s32 0, %v930
        %v932 = vrot.slane %v891, %v931
        %v934 = vadd.f32 %v926, %v932
        %v935 = vadd.f32 %v927, %v932
        %v936 = vld [vmem:[%s5] sm:$0xff]
        %v937 = vld [vmem:[%s5 + $0x8] sm:$0xff]
        %v938 = vld [vmem:[%s6] sm:$0x1]
        %v940 = vlaneseq
        %v941 = vshrl.u32 %v940, 7
        %v942 = vsub.s32 0, %v941
        %v943 = vrot.slane %v938, %v942
        %v946 = vsel %vm892, %v934, 0
        %v949 = vsel %vm892, %v935, 0
        %951 = vmatprep.subr.mxu0 0.0
        %952 = vmatpush1.msra.mxu0 %v936
        %953 = vmatprep.subr.mxu0 0.0
        %954 = vmatpush1.msra.mxu0 %v937
        %955 = vmatprep.subr.mxu0 0.0
        %956 = vmatpush1.msra.mxu0 0.0
        %957 = vmatprep.subr.mxu0 0.0
        %958 = vmatpush1.msra.mxu0 0.0
        %959 = vmatprep.subr.mxu0 0.0
        %960 = vmatpush1.msra.mxu0 0.0
        %961 = vmatprep.subr.mxu0 0.0
        %962 = vmatpush1.msra.mxu0 0.0
        %963 = vmatprep.subr.mxu0 0.0
        %964 = vmatpush1.msra.mxu0 0.0
        %965 = vmatprep.subr.mxu0 0.0
        %966 = vmatpush1.msra.mxu0 0.0
        %967 = vmatprep.subr.mxu0 0.0
        %968 = vmatpush1.msra.mxu0 0.0
        %969 = vmatprep.subr.mxu0 0.0
        %970 = vmatpush1.msra.mxu0 0.0
        %971 = vmatprep.subr.mxu0 0.0
        %972 = vmatpush1.msra.mxu0 0.0
        %973 = vmatprep.subr.mxu0 0.0
        %974 = vmatpush1.msra.mxu0 0.0
        %975 = vmatprep.subr.mxu0 0.0
        %976 = vmatpush1.msra.mxu0 0.0
        %977 = vmatprep.subr.mxu0 0.0
        %978 = vmatpush1.msra.mxu0 0.0
        %979 = vmatprep.subr.mxu0 0.0
        %980 = vmatpush1.msra.mxu0 0.0
        %981 = vmatprep.subr.mxu0 0.0
        %982 = vmatpush1.msra.mxu0 0.0
        %983 = vmatprep.subr.mxu0 0.0
        %984 = vmatpush1.msra.mxu0 0.0
        %985 = vmatprep.subr.mxu0 0.0
        %986 = vmatpush1.msra.mxu0 0.0
        %987 = vmatprep.subr.mxu0 0.0
        %988 = vmatpush1.msra.mxu0 0.0
        %989 = vmatprep.subr.mxu0 0.0
        %990 = vmatpush1.msra.mxu0 0.0
        %991 = vmatprep.subr.mxu0 0.0
        %992 = vmatpush1.msra.mxu0 0.0
        %993 = vmatprep.subr.mxu0 0.0
        %994 = vmatpush1.msra.mxu0 0.0
        %995 = vmatprep.subr.mxu0 0.0
        %996 = vmatpush1.msra.mxu0 0.0
        %997 = vmatprep.subr.mxu0 0.0
        %998 = vmatpush1.msra.mxu0 0.0
        %999 = vmatprep.subr.mxu0 0.0
        %1000 = vmatpush1.msra.mxu0 0.0
        %1001 = vmatprep.subr.mxu0 0.0
        %1002 = vmatpush1.msra.mxu0 0.0
        %1003 = vmatprep.subr.mxu0 0.0
        %1004 = vmatpush1.msra.mxu0 0.0
        %1005 = vmatprep.subr.mxu0 0.0
        %1006 = vmatpush1.msra.mxu0 0.0
        %1007 = vmatprep.subr.mxu0 0.0
        %1008 = vmatpush1.msra.mxu0 0.0
        %1009 = vmatprep.subr.mxu0 0.0
        %1010 = vmatpush1.msra.mxu0 0.0
        %1011 = vmatprep.subr.mxu0 0.0
        %1012 = vmatpush1.msra.mxu0 0.0
        %1013 = vmatprep.subr.mxu0 0.0
        %1014 = vmatpush1.msra.mxu0 0.0
        %1015 = vmatprep.mubr.f32.mxu0 0.0
        %1016 = vmatmul.mubr.f32.gmra.mrb[0].mxu0 %v946
        %v1017 = vpop.f32.mrb[0].mxu0
        %v1018 = vadd.f32 %v943, %v1017
        %v1019 = vpop.f32.mrb[0].mxu0
        %1020 = vmatprep.mubr.f32.mxu0 0.0
        %1021 = vmatmul.mubr.f32.gmra.mrb[0].mxu0 %v949
        %v1022 = vpop.f32.mrb[0].mxu0
        %v1023 = vadd.f32 %v943, %v1022
        %v1024 = vpop.f32.mrb[0].mxu0
        %1025 = vdwg.mxu0
        %v1026 = vld [vmem:[%s882] sm:$0x1]
        %v1027 = vld [vmem:[%s7] sm:$0xff]
        %v1028 = vld [vmem:[%s7 + $0x8] sm:$0xff]
        %v1029 = vld [vmem:[%s7 + $0x10] sm:$0xff]
        %v1030 = vld [vmem:[%s7 + $0x18] sm:$0xff]
        %v1031 = vld [vmem:[%s8] sm:$0x1]
        %v1032 = vld [vmem:[%s9] sm:$0xff]
        %v1033 = vld [vmem:[%s9 + $0x8] sm:$0xff]
        %v1034 = vld [vmem:[%s9 + $0x10] sm:$0xff]
        %v1035 = vld [vmem:[%s9 + $0x18] sm:$0xff]
        %v1036 = vld [vmem:[%s10] sm:$0x1]
        %v1037 = vld [vmem:[%s11] sm:$0x1]
        %v1038 = vld [vmem:[%s12] sm:$0x1]
        %v1039 = vld [vmem:[%s13] sm:$0xff]
        %v1040 = vld [vmem:[%s13 + $0x8] sm:$0xff]
        %v1041 = vld [vmem:[%s13 + $0x10] sm:$0xff]
        %v1042 = vld [vmem:[%s13 + $0x18] sm:$0xff]
        %v1043 = vld [vmem:[%s14] sm:$0x1]
        %v1044 = vld [vmem:[%s15] sm:$0xff]
        %v1045 = vld [vmem:[%s15 + $0x8] sm:$0xff]
        %v1046 = vld [vmem:[%s15 + $0x10] sm:$0xff]
        %v1047 = vld [vmem:[%s15 + $0x18] sm:$0xff]
        %v1048 = vld [vmem:[%s15 + $0x20] sm:$0xff]
        %v1049 = vld [vmem:[%s15 + $0x28] sm:$0xff]
        %v1050 = vld [vmem:[%s15 + $0x30] sm:$0xff]
        %v1051 = vld [vmem:[%s15 + $0x38] sm:$0xff]
        %v1052 = vld [vmem:[%s16] sm:$0x1]
        %v1053 = vld [vmem:[%s17] sm:$0x1]
        %v1054 = vld [vmem:[%s18] sm:$0x1]
        %v1056 = vlaneseq
        %v1057 = vshrl.u32 %v1056, 7
        %v1058 = vsub.s32 0, %v1057
        %v1059 = vrot.slane %v1031, %v1058
        %vm1061 = vcmask 261120
        %v1063 = vsel %vm1061, %v1018, 0
        %v1066 = vsel %vm1061, %v1023, 0
        %1068 = vmatprep.subr.mxu0 0.0
        %1069 = vmatpush1.msra.mxu0 %v1027
        %1070 = vmatprep.subr.mxu0 0.0
        %1071 = vmatpush1.msra.mxu0 %v1028
        %1072 = vmatprep.subr.mxu0 0.0
        %1073 = vmatpush1.msra.mxu0 %v1029
        %1074 = vmatprep.subr.mxu0 0.0
        %1075 = vmatpush1.msra.mxu0 %v1030
        %1076 = vmatprep.subr.mxu0 0.0
        %1077 = vmatpush1.msra.mxu0 0.0
        %1078 = vmatprep.subr.mxu0 0.0
        %1079 = vmatpush1.msra.mxu0 0.0
        %1080 = vmatprep.subr.mxu0 0.0
        %1081 = vmatpush1.msra.mxu0 0.0
        %1082 = vmatprep.subr.mxu0 0.0
        %1083 = vmatpush1.msra.mxu0 0.0
        %1084 = vmatprep.subr.mxu0 0.0
        %1085 = vmatpush1.msra.mxu0 0.0
        %1086 = vmatprep.subr.mxu0 0.0
        %1087 = vmatpush1.msra.mxu0 0.0
        %1088 = vmatprep.subr.mxu0 0.0
        %1089 = vmatpush1.msra.mxu0 0.0
        %1090 = vmatprep.subr.mxu0 0.0
        %1091 = vmatpush1.msra.mxu0 0.0
        %1092 = vmatprep.subr.mxu0 0.0
        %1093 = vmatpush1.msra.mxu0 0.0
        %1094 = vmatprep.subr.mxu0 0.0
        %1095 = vmatpush1.msra.mxu0 0.0
        %1096 = vmatprep.subr.mxu0 0.0
        %1097 = vmatpush1.msra.mxu0 0.0
        %1098 = vmatprep.subr.mxu0 0.0
        %1099 = vmatpush1.msra.mxu0 0.0
        %1100 = vmatprep.subr.mxu0 0.0
        %1101 = vmatpush1.msra.mxu0 0.0
        %1102 = vmatprep.subr.mxu0 0.0
        %1103 = vmatpush1.msra.mxu0 0.0
        %1104 = vmatprep.subr.mxu0 0.0
        %1105 = vmatpush1.msra.mxu0 0.0
        %1106 = vmatprep.subr.mxu0 0.0
        %1107 = vmatpush1.msra.mxu0 0.0
        %1108 = vmatprep.subr.mxu0 0.0
        %1109 = vmatpush1.msra.mxu0 0.0
        %1110 = vmatprep.subr.mxu0 0.0
        %1111 = vmatpush1.msra.mxu0 0.0
        %1112 = vmatprep.subr.mxu0 0.0
        %1113 = vmatpush1.msra.mxu0 0.0
        %1114 = vmatprep.subr.mxu0 0.0
        %1115 = vmatpush1.msra.mxu0 0.0
        %1116 = vmatprep.subr.mxu0 0.0
        %1117 = vmatpush1.msra.mxu0 0.0
        %1118 = vmatprep.subr.mxu0 0.0
        %1119 = vmatpush1.msra.mxu0 0.0
        %1120 = vmatprep.subr.mxu0 0.0
        %1121 = vmatpush1.msra.mxu0 0.0
        %1122 = vmatprep.subr.mxu0 0.0
        %1123 = vmatpush1.msra.mxu0 0.0
        %1124 = vmatprep.subr.mxu0 0.0
        %1125 = vmatpush1.msra.mxu0 0.0
        %1126 = vmatprep.subr.mxu0 0.0
        %1127 = vmatpush1.msra.mxu0 0.0
        %1128 = vmatprep.subr.mxu0 0.0
        %1129 = vmatpush1.msra.mxu0 0.0
        %1130 = vmatprep.subr.mxu0 0.0
        %1131 = vmatpush1.msra.mxu0 0.0
        %1132 = vmatprep.mubr.f32.mxu0 0.0
        %1133 = vmatmul.mubr.f32.gmra.mrb[0].mxu0 %v1063
        %v1134 = vpop.f32.mrb[0].mxu0
        %v1135 = vadd.f32 %v1059, %v1134
        %v1136 = vpop.f32.mrb[0].mxu0
        %1137 = vmatprep.mubr.f32.mxu0 0.0
        %1138 = vmatmul.mubr.f32.gmra.mrb[0].mxu0 %v1066
        %v1139 = vpop.f32.mrb[0].mxu0
        %v1140 = vadd.f32 %v1059, %v1139
        %v1141 = vpop.f32.mrb[0].mxu0
        %1142 = vdwg.mxu0
        %1145 = vrot.lane.b32.xlu0 %v1135, 96
        %v1146 = vpop.permute.xlu0 %1145
        %1147 = vrot.lane.b32.xlu0 %v1140, 96
        %v1148 = vpop.permute.xlu0 %1147
        %vm1149 = vcmask 64512
        %v1150 = vsel %vm1149, %v1135, 0
        %v1152 = vsel %vm1149, %v1140, 0
        %v1154 = vsel %vm1149, %v1146, 0
        %v1156 = vsel %vm1149, %v1148, 0
        %1158 = vmatprep.subr.mxu0 0.0
        %1159 = vmatpush1.xpose.msra.mxu0 %v1154
        %1160 = vmatprep.subr.mxu0 0.0
        %1161 = vmatpush1.xpose.msra.mxu0 %v1156
        %1162 = vmatprep.subr.mxu0 0.0
        %1163 = vmatpush1.xpose.msra.mxu0 0.0
        %1164 = vmatprep.subr.mxu0 0.0
        %1165 = vmatpush1.xpose.msra.mxu0 0.0
        %1166 = vmatprep.subr.mxu0 0.0
        %1167 = vmatpush1.xpose.msra.mxu0 0.0
        %1168 = vmatprep.subr.mxu0 0.0
        %1169 = vmatpush1.xpose.msra.mxu0 0.0
        %1170 = vmatprep.subr.mxu0 0.0
        %1171 = vmatpush1.xpose.msra.mxu0 0.0
        %1172 = vmatprep.subr.mxu0 0.0
        %1173 = vmatpush1.xpose.msra.mxu0 0.0
        %1174 = vmatprep.subr.mxu0 0.0
        %1175 = vmatpush1.xpose.msra.mxu0 0.0
        %1176 = vmatprep.subr.mxu0 0.0
        %1177 = vmatpush1.xpose.msra.mxu0 0.0
        %1178 = vmatprep.subr.mxu0 0.0
        %1179 = vmatpush1.xpose.msra.mxu0 0.0
        %1180 = vmatprep.subr.mxu0 0.0
        %1181 = vmatpush1.xpose.msra.mxu0 0.0
        %1182 = vmatprep.subr.mxu0 0.0
        %1183 = vmatpush1.xpose.msra.mxu0 0.0
        %1184 = vmatprep.subr.mxu0 0.0
        %1185 = vmatpush1.xpose.msra.mxu0 0.0
        %1186 = vmatprep.subr.mxu0 0.0
        %1187 = vmatpush1.xpose.msra.mxu0 0.0
        %1188 = vmatprep.subr.mxu0 0.0
        %1189 = vmatpush1.xpose.msra.mxu0 0.0
        %1190 = vmatprep.subr.mxu0 0.0
        %1191 = vmatpush1.xpose.msra.mxu0 0.0
        %1192 = vmatprep.subr.mxu0 0.0
        %1193 = vmatpush1.xpose.msra.mxu0 0.0
        %1194 = vmatprep.subr.mxu0 0.0
        %1195 = vmatpush1.xpose.msra.mxu0 0.0
        %1196 = vmatprep.subr.mxu0 0.0
        %1197 = vmatpush1.xpose.msra.mxu0 0.0
        %1198 = vmatprep.subr.mxu0 0.0
        %1199 = vmatpush1.xpose.msra.mxu0 0.0
        %1200 = vmatprep.subr.mxu0 0.0
        %1201 = vmatpush1.xpose.msra.mxu0 0.0
        %1202 = vmatprep.subr.mxu0 0.0
        %1203 = vmatpush1.xpose.msra.mxu0 0.0
        %1204 = vmatprep.subr.mxu0 0.0
        %1205 = vmatpush1.xpose.msra.mxu0 0.0
        %1206 = vmatprep.subr.mxu0 0.0
        %1207 = vmatpush1.xpose.msra.mxu0 0.0
        %1208 = vmatprep.subr.mxu0 0.0
        %1209 = vmatpush1.xpose.msra.mxu0 0.0
        %1210 = vmatprep.subr.mxu0 0.0
        %1211 = vmatpush1.xpose.msra.mxu0 0.0
        %1212 = vmatprep.subr.mxu0 0.0
        %1213 = vmatpush1.xpose.msra.mxu0 0.0
        %1214 = vmatprep.subr.mxu0 0.0
        %1215 = vmatpush1.xpose.msra.mxu0 0.0
        %1216 = vmatprep.subr.mxu0 0.0
        %1217 = vmatpush1.xpose.msra.mxu0 0.0
        %1218 = vmatprep.subr.mxu0 0.0
        %1219 = vmatpush1.xpose.msra.mxu0 0.0
        %1220 = vmatprep.subr.mxu0 0.0
        %1221 = vmatpush1.xpose.msra.mxu0 0.0
        %1222 = vmatprep.mubr.f32.mxu0 0.0
        %1223 = vmatmul.mubr.f32.gmra.mrb[0].mxu0 %v1150
        %v1224 = vpop.f32.mrb[0].mxu0
        %v1225 = vadd.f32 0.0, %v1224
        %v1226 = vpop.f32.mrb[0].mxu0
        %1227 = vmatprep.mubr.f32.mxu0 0.0
        %1228 = vmatmul.mubr.f32.gmra.mrb[0].mxu0 %v1152
        %v1229 = vpop.f32.mrb[0].mxu0
        %v1230 = vadd.f32 0.0, %v1229
        %v1231 = vpop.f32.mrb[0].mxu0
        %1232 = vdwg.mxu0
        %v1233 = vmul.f32 %v1225, 0.35355338
        %v1234 = vmul.f32 %v1230, 0.35355338
        %v1236 = vlaneseq
        %v1237 = vshrl.u32 %v1236, 7
        %v1238 = vsub.s32 0, %v1237
        %v1239 = vrot.slane %v1026, %v1238
        %v1241 = vadd.f32 %v1233, %v1239
        %v1242 = vadd.f32 %v1234, %v1239
        %v1243 = vsel %vm892, %v1241, -inf
        %1244 = vmax.xlane.f32.xlu0 %v1243
        %v1245 = vpop.xlane.xlu0 %1244
        %v1246 = vsel %vm892, %v1242, -inf
        %1247 = vmax.xlane.f32.xlu0 %v1246
        %v1248 = vpop.xlane.xlu0 %1247
        %v1249 = vsub.f32 %v1241, %v1245
        %v1250 = vsub.f32 %v1242, %v1248
        %v1251 = vmul.f32 %v1249, 1.442695
        %v1252 = vpow.pop %v1251
        %v1253 = vmul.f32 %v1250, 1.442695
        %v1254 = vpow.pop %v1253
        %v1255 = vsel %vm892, %v1252, 0.0
        %1256 = vadd.xlane.f32.xlu0 %v1255
        %v1257 = vpop.xlane.xlu0 %1256
        %v1258 = vsel %vm892, %v1254, 0.0
        %1259 = vadd.xlane.f32.xlu0 %v1258
        %v1260 = vpop.xlane.xlu0 %1259
        %v1261 = vrcp.pop %v1257
        %v1262 = vrcp.pop %v1260
        %v1263 = vmul.f32 %v1252, %v1261
        %v1264 = vmul.f32 %v1254, %v1262
        %1265 = vrot.lane.b32.xlu0 %v1135, 64
        %v1266 = vpop.permute.xlu0 %1265
        %1267 = vrot.lane.b32.xlu0 %v1140, 64
        %v1268 = vpop.permute.xlu0 %1267
        %v1272 = vsel %vm892, %v1263, 0
        %v1275 = vsel %vm892, %v1264, 0
        %1277 = vmatprep.subr.mxu0 0.0
        %1278 = vmatpush1.msra.mxu0 %v1266
        %1279 = vmatprep.subr.mxu0 0.0
        %1280 = vmatpush1.msra.mxu0 %v1268
        %1281 = vmatprep.subr.mxu0 0.0
        %1282 = vmatpush1.msra.mxu0 0.0
        %1283 = vmatprep.subr.mxu0 0.0
        %1284 = vmatpush1.msra.mxu0 0.0
        %1285 = vmatprep.subr.mxu0 0.0
        %1286 = vmatpush1.msra.mxu0 0.0
        %1287 = vmatprep.subr.mxu0 0.0
        %1288 = vmatpush1.msra.mxu0 0.0
        %1289 = vmatprep.subr.mxu0 0.0
        %1290 = vmatpush1.msra.mxu0 0.0
        %1291 = vmatprep.subr.mxu0 0.0
        %1292 = vmatpush1.msra.mxu0 0.0
        %1293 = vmatprep.subr.mxu0 0.0
        %1294 = vmatpush1.msra.mxu0 0.0
        %1295 = vmatprep.subr.mxu0 0.0
        %1296 = vmatpush1.msra.mxu0 0.0
        %1297 = vmatprep.subr.mxu0 0.0
        %1298 = vmatpush1.msra.mxu0 0.0
        %1299 = vmatprep.subr.mxu0 0.0
        %1300 = vmatpush1.msra.mxu0 0.0
        %1301 = vmatprep.subr.mxu0 0.0
        %1302 = vmatpush1.msra.mxu0 0.0
        %1303 = vmatprep.subr.mxu0 0.0
        %1304 = vmatpush1.msra.mxu0 0.0
        %1305 = vmatprep.subr.mxu0 0.0
        %1306 = vmatpush1.msra.mxu0 0.0
        %1307 = vmatprep.subr.mxu0 0.0
        %1308 = vmatpush1.msra.mxu0 0.0
        %1309 = vmatprep.subr.mxu0 0.0
        %1310 = vmatpush1.msra.mxu0 0.0
        %1311 = vmatprep.subr.mxu0 0.0
        %1312 = vmatpush1.msra.mxu0 0.0
        %1313 = vmatprep.subr.mxu0 0.0
        %1314 = vmatpush1.msra.mxu0 0.0
        %1315 = vmatprep.subr.mxu0 0.0
        %1316 = vmatpush1.msra.mxu0 0.0
        %1317 = vmatprep.subr.mxu0 0.0
        %1318 = vmatpush1.msra.mxu0 0.0
        %1319 = vmatprep.subr.mxu0 0.0
        %1320 = vmatpush1.msra.mxu0 0.0
        %1321 = vmatprep.subr.mxu0 0.0
        %1322 = vmatpush1.msra.mxu0 0.0
        %1323 = vmatprep.subr.mxu0 0.0
        %1324 = vmatpush1.msra.mxu0 0.0
        %1325 = vmatprep.subr.mxu0 0.0
        %1326 = vmatpush1.msra.mxu0 0.0
        %1327 = vmatprep.subr.mxu0 0.0
        %1328 = vmatpush1.msra.mxu0 0.0
        %1329 = vmatprep.subr.mxu0 0.0
        %1330 = vmatpush1.msra.mxu0 0.0
        %1331 = vmatprep.subr.mxu0 0.0
        %1332 = vmatpush1.msra.mxu0 0.0
        %1333 = vmatprep.subr.mxu0 0.0
        %1334 = vmatpush1.msra.mxu0 0.0
        %1335 = vmatprep.subr.mxu0 0.0
        %1336 = vmatpush1.msra.mxu0 0.0
        %1337 = vmatprep.subr.mxu0 0.0
        %1338 = vmatpush1.msra.mxu0 0.0
        %1339 = vmatprep.subr.mxu0 0.0
        %1340 = vmatpush1.msra.mxu0 0.0
        %1341 = vmatprep.mubr.f32.mxu0 0.0
        %1342 = vmatmul.mubr.f32.gmra.mrb[0].mxu0 %v1272
        %v1343 = vpop.f32.mrb[0].mxu0
        %v1344 = vadd.f32 0.0, %v1343
        %v1345 = vpop.f32.mrb[0].mxu0
        %1346 = vmatprep.mubr.f32.mxu0 0.0
        %1347 = vmatmul.mubr.f32.gmra.mrb[0].mxu0 %v1275
        %v1348 = vpop.f32.mrb[0].mxu0
        %v1349 = vadd.f32 0.0, %v1348
        %v1350 = vpop.f32.mrb[0].mxu0
        %1351 = vdwg.mxu0
        %1352 = vrot.lane.b32.xlu0 %v1135, 120
        %v1353 = vpop.permute.xlu0 %1352
        %1354 = vrot.lane.b32.xlu0 %v1140, 120
        %v1355 = vpop.permute.xlu0 %1354
        %1356 = vrot.lane.b32.xlu0 %v1135, 88
        %v1357 = vpop.permute.xlu0 %1356
        %1358 = vrot.lane.b32.xlu0 %v1140, 88
        %v1359 = vpop.permute.xlu0 %1358
        %v1360 = vsel %vm1149, %v1353, 0
        %v1362 = vsel %vm1149, %v1355, 0
        %v1364 = vsel %vm1149, %v1357, 0
        %v1366 = vsel %vm1149, %v1359, 0
        %1368 = vmatprep.subr.mxu0 0.0
        %1369 = vmatpush1.xpose.msra.mxu0 %v1364
        %1370 = vmatprep.subr.mxu0 0.0
        %1371 = vmatpush1.xpose.msra.mxu0 %v1366
        %1372 = vmatprep.subr.mxu0 0.0
        %1373 = vmatpush1.xpose.msra.mxu0 0.0
        %1374 = vmatprep.subr.mxu0 0.0
        %1375 = vmatpush1.xpose.msra.mxu0 0.0
        %1376 = vmatprep.subr.mxu0 0.0
        %1377 = vmatpush1.xpose.msra.mxu0 0.0
        %1378 = vmatprep.subr.mxu0 0.0
        %1379 = vmatpush1.xpose.msra.mxu0 0.0
        %1380 = vmatprep.subr.mxu0 0.0
        %1381 = vmatpush1.xpose.msra.mxu0 0.0
        %1382 = vmatprep.subr.mxu0 0.0
        %1383 = vmatpush1.xpose.msra.mxu0 0.0
        %1384 = vmatprep.subr.mxu0 0.0
        %1385 = vmatpush1.xpose.msra.mxu0 0.0
        %1386 = vmatprep.subr.mxu0 0.0
        %1387 = vmatpush1.xpose.msra.mxu0 0.0
        %1388 = vmatprep.subr.mxu0 0.0
        %1389 = vmatpush1.xpose.msra.mxu0 0.0
        %1390 = vmatprep.subr.mxu0 0.0
        %1391 = vmatpush1.xpose.msra.mxu0 0.0
        %1392 = vmatprep.subr.mxu0 0.0
        %1393 = vmatpush1.xpose.msra.mxu0 0.0
        %1394 = vmatprep.subr.mxu0 0.0
        %1395 = vmatpush1.xpose.msra.mxu0 0.0
        %1396 = vmatprep.subr.mxu0 0.0
        %1397 = vmatpush1.xpose.msra.mxu0 0.0
        %1398 = vmatprep.subr.mxu0 0.0
        %1399 = vmatpush1.xpose.msra.mxu0 0.0
        %1400 = vmatprep.subr.mxu0 0.0
        %1401 = vmatpush1.xpose.msra.mxu0 0.0
        %1402 = vmatprep.subr.mxu0 0.0
        %1403 = vmatpush1.xpose.msra.mxu0 0.0
        %1404 = vmatprep.subr.mxu0 0.0
        %1405 = vmatpush1.xpose.msra.mxu0 0.0
        %1406 = vmatprep.subr.mxu0 0.0
        %1407 = vmatpush1.xpose.msra.mxu0 0.0
        %1408 = vmatprep.subr.mxu0 0.0
        %1409 = vmatpush1.xpose.msra.mxu0 0.0
        %1410 = vmatprep.subr.mxu0 0.0
        %1411 = vmatpush1.xpose.msra.mxu0 0.0
        %1412 = vmatprep.subr.mxu0 0.0
        %1413 = vmatpush1.xpose.msra.mxu0 0.0
        %1414 = vmatprep.subr.mxu0 0.0
        %1415 = vmatpush1.xpose.msra.mxu0 0.0
        %1416 = vmatprep.subr.mxu0 0.0
        %1417 = vmatpush1.xpose.msra.mxu0 0.0
        %1418 = vmatprep.subr.mxu0 0.0
        %1419 = vmatpush1.xpose.msra.mxu0 0.0
        %1420 = vmatprep.subr.mxu0 0.0
        %1421 = vmatpush1.xpose.msra.mxu0 0.0
        %1422 = vmatprep.subr.mxu0 0.0
        %1423 = vmatpush1.xpose.msra.mxu0 0.0
        %1424 = vmatprep.subr.mxu0 0.0
        %1425 = vmatpush1.xpose.msra.mxu0 0.0
        %1426 = vmatprep.subr.mxu0 0.0
        %1427 = vmatpush1.xpose.msra.mxu0 0.0
        %1428 = vmatprep.subr.mxu0 0.0
        %1429 = vmatpush1.xpose.msra.mxu0 0.0
        %1430 = vmatprep.subr.mxu0 0.0
        %1431 = vmatpush1.xpose.msra.mxu0 0.0
        %1432 = vmatprep.mubr.f32.mxu0 0.0
        %1433 = vmatmul.mubr.f32.gmra.mrb[0].mxu0 %v1360
        %v1434 = vpop.f32.mrb[0].mxu0
        %v1435 = vadd.f32 0.0, %v1434
        %v1436 = vpop.f32.mrb[0].mxu0
        %1437 = vmatprep.mubr.f32.mxu0 0.0
        %1438 = vmatmul.mubr.f32.gmra.mrb[0].mxu0 %v1362
        %v1439 = vpop.f32.mrb[0].mxu0
        %v1440 = vadd.f32 0.0, %v1439
        %v1441 = vpop.f32.mrb[0].mxu0
        %1442 = vdwg.mxu0
        %v1443 = vmul.f32 %v1435, 0.35355338
        %v1444 = vmul.f32 %v1440, 0.35355338
        %v1445 = vadd.f32 %v1443, %v1239
        %v1446 = vadd.f32 %v1444, %v1239
        %v1447 = vsel %vm892, %v1445, -inf
        %1448 = vmax.xlane.f32.xlu0 %v1447
        %v1449 = vpop.xlane.xlu0 %1448
        %v1450 = vsel %vm892, %v1446, -inf
        %1451 = vmax.xlane.f32.xlu0 %v1450
        %v1452 = vpop.xlane.xlu0 %1451
        %v1453 = vsub.f32 %v1445, %v1449
        %v1454 = vsub.f32 %v1446, %v1452
        %v1455 = vmul.f32 %v1453, 1.442695
        %v1456 = vpow.pop %v1455
        %v1457 = vmul.f32 %v1454, 1.442695
        %v1458 = vpow.pop %v1457
        %v1459 = vsel %vm892, %v1456, 0.0
        %1460 = vadd.xlane.f32.xlu0 %v1459
        %v1461 = vpop.xlane.xlu0 %1460
        %v1462 = vsel %vm892, %v1458, 0.0
        %1463 = vadd.xlane.f32.xlu0 %v1462
        %v1464 = vpop.xlane.xlu0 %1463
        %v1465 = vrcp.pop %v1461
        %v1466 = vrcp.pop %v1464
        %v1467 = vmul.f32 %v1456, %v1465
        %v1468 = vmul.f32 %v1458, %v1466
        %1469 = vrot.lane.b32.xlu0 %v1135, 56
        %v1470 = vpop.permute.xlu0 %1469
        %1471 = vrot.lane.b32.xlu0 %v1140, 56
        %v1472 = vpop.permute.xlu0 %1471
        %v1476 = vsel %vm892, %v1467, 0
        %v1479 = vsel %vm892, %v1468, 0
        %1481 = vmatprep.subr.mxu0 0.0
        %1482 = vmatpush1.msra.mxu0 %v1470
        %1483 = vmatprep.subr.mxu0 0.0
        %1484 = vmatpush1.msra.mxu0 %v1472
        %1485 = vmatprep.subr.mxu0 0.0
        %1486 = vmatpush1.msra.mxu0 0.0
        %1487 = vmatprep.subr.mxu0 0.0
        %1488 = vmatpush1.msra.mxu0 0.0
        %1489 = vmatprep.subr.mxu0 0.0
        %1490 = vmatpush1.msra.mxu0 0.0
        %1491 = vmatprep.subr.mxu0 0.0
        %1492 = vmatpush1.msra.mxu0 0.0
        %1493 = vmatprep.subr.mxu0 0.0
        %1494 = vmatpush1.msra.mxu0 0.0
        %1495 = vmatprep.subr.mxu0 0.0
        %1496 = vmatpush1.msra.mxu0 0.0
        %1497 = vmatprep.subr.mxu0 0.0
        %1498 = vmatpush1.msra.mxu0 0.0
        %1499 = vmatprep.subr.mxu0 0.0
        %1500 = vmatpush1.msra.mxu0 0.0
        %1501 = vmatprep.subr.mxu0 0.0
        %1502 = vmatpush1.msra.mxu0 0.0
        %1503 = vmatprep.subr.mxu0 0.0
        %1504 = vmatpush1.msra.mxu0 0.0
        %1505 = vmatprep.subr.mxu0 0.0
        %1506 = vmatpush1.msra.mxu0 0.0
        %1507 = vmatprep.subr.mxu0 0.0
        %1508 = vmatpush1.msra.mxu0 0.0
        %1509 = vmatprep.subr.mxu0 0.0
        %1510 = vmatpush1.msra.mxu0 0.0
        %1511 = vmatprep.subr.mxu0 0.0
        %1512 = vmatpush1.msra.mxu0 0.0
        %1513 = vmatprep.subr.mxu0 0.0
        %1514 = vmatpush1.msra.mxu0 0.0
        %1515 = vmatprep.subr.mxu0 0.0
        %1516 = vmatpush1.msra.mxu0 0.0
        %1517 = vmatprep.subr.mxu0 0.0
        %1518 = vmatpush1.msra.mxu0 0.0
        %1519 = vmatprep.subr.mxu0 0.0
        %1520 = vmatpush1.msra.mxu0 0.0
        %1521 = vmatprep.subr.mxu0 0.0
        %1522 = vmatpush1.msra.mxu0 0.0
        %1523 = vmatprep.subr.mxu0 0.0
        %1524 = vmatpush1.msra.mxu0 0.0
        %1525 = vmatprep.subr.mxu0 0.0
        %1526 = vmatpush1.msra.mxu0 0.0
        %1527 = vmatprep.subr.mxu0 0.0
        %1528 = vmatpush1.msra.mxu0 0.0
        %1529 = vmatprep.subr.mxu0 0.0
        %1530 = vmatpush1.msra.mxu0 0.0
        %1531 = vmatprep.subr.mxu0 0.0
        %1532 = vmatpush1.msra.mxu0 0.0
        %1533 = vmatprep.subr.mxu0 0.0
        %1534 = vmatpush1.msra.mxu0 0.0
        %1535 = vmatprep.subr.mxu0 0.0
        %1536 = vmatpush1.msra.mxu0 0.0
        %1537 = vmatprep.subr.mxu0 0.0
        %1538 = vmatpush1.msra.mxu0 0.0
        %1539 = vmatprep.subr.mxu0 0.0
        %1540 = vmatpush1.msra.mxu0 0.0
        %1541 = vmatprep.subr.mxu0 0.0
        %1542 = vmatpush1.msra.mxu0 0.0
        %1543 = vmatprep.subr.mxu0 0.0
        %1544 = vmatpush1.msra.mxu0 0.0
        %1545 = vmatprep.mubr.f32.mxu0 0.0
        %1546 = vmatmul.mubr.f32.gmra.mrb[0].mxu0 %v1476
        %v1547 = vpop.f32.mrb[0].mxu0
        %v1548 = vadd.f32 0.0, %v1547
        %v1549 = vpop.f32.mrb[0].mxu0
        %1550 = vmatprep.mubr.f32.mxu0 0.0
        %1551 = vmatmul.mubr.f32.gmra.mrb[0].mxu0 %v1479
        %v1552 = vpop.f32.mrb[0].mxu0
        %v1553 = vadd.f32 0.0, %v1552
        %v1554 = vpop.f32.mrb[0].mxu0
        %1555 = vdwg.mxu0
        %1556 = vrot.lane.b32.xlu0 %v1135, 112
        %v1557 = vpop.permute.xlu0 %1556
        %1558 = vrot.lane.b32.xlu0 %v1140, 112
        %v1559 = vpop.permute.xlu0 %1558
        %1560 = vrot.lane.b32.xlu0 %v1135, 80
        %v1561 = vpop.permute.xlu0 %1560
        %1562 = vrot.lane.b32.xlu0 %v1140, 80
        %v1563 = vpop.permute.xlu0 %1562
        %v1564 = vsel %vm1149, %v1557, 0
        %v1566 = vsel %vm1149, %v1559, 0
        %v1568 = vsel %vm1149, %v1561, 0
        %v1570 = vsel %vm1149, %v1563, 0
        %1572 = vmatprep.subr.mxu0 0.0
        %1573 = vmatpush1.xpose.msra.mxu0 %v1568
        %1574 = vmatprep.subr.mxu0 0.0
        %1575 = vmatpush1.xpose.msra.mxu0 %v1570
        %1576 = vmatprep.subr.mxu0 0.0
        %1577 = vmatpush1.xpose.msra.mxu0 0.0
        %1578 = vmatprep.subr.mxu0 0.0
        %1579 = vmatpush1.xpose.msra.mxu0 0.0
        %1580 = vmatprep.subr.mxu0 0.0
        %1581 = vmatpush1.xpose.msra.mxu0 0.0
        %1582 = vmatprep.subr.mxu0 0.0
        %1583 = vmatpush1.xpose.msra.mxu0 0.0
        %1584 = vmatprep.subr.mxu0 0.0
        %1585 = vmatpush1.xpose.msra.mxu0 0.0
        %1586 = vmatprep.subr.mxu0 0.0
        %1587 = vmatpush1.xpose.msra.mxu0 0.0
        %1588 = vmatprep.subr.mxu0 0.0
        %1589 = vmatpush1.xpose.msra.mxu0 0.0
        %1590 = vmatprep.subr.mxu0 0.0
        %1591 = vmatpush1.xpose.msra.mxu0 0.0
        %1592 = vmatprep.subr.mxu0 0.0
        %1593 = vmatpush1.xpose.msra.mxu0 0.0
        %1594 = vmatprep.subr.mxu0 0.0
        %1595 = vmatpush1.xpose.msra.mxu0 0.0
        %1596 = vmatprep.subr.mxu0 0.0
        %1597 = vmatpush1.xpose.msra.mxu0 0.0
        %1598 = vmatprep.subr.mxu0 0.0
        %1599 = vmatpush1.xpose.msra.mxu0 0.0
        %1600 = vmatprep.subr.mxu0 0.0
        %1601 = vmatpush1.xpose.msra.mxu0 0.0
        %1602 = vmatprep.subr.mxu0 0.0
        %1603 = vmatpush1.xpose.msra.mxu0 0.0
        %1604 = vmatprep.subr.mxu0 0.0
        %1605 = vmatpush1.xpose.msra.mxu0 0.0
        %1606 = vmatprep.subr.mxu0 0.0
        %1607 = vmatpush1.xpose.msra.mxu0 0.0
        %1608 = vmatprep.subr.mxu0 0.0
        %1609 = vmatpush1.xpose.msra.mxu0 0.0
        %1610 = vmatprep.subr.mxu0 0.0
        %1611 = vmatpush1.xpose.msra.mxu0 0.0
        %1612 = vmatprep.subr.mxu0 0.0
        %1613 = vmatpush1.xpose.msra.mxu0 0.0
        %1614 = vmatprep.subr.mxu0 0.0
        %1615 = vmatpush1.xpose.msra.mxu0 0.0
        %1616 = vmatprep.subr.mxu0 0.0
        %1617 = vmatpush1.xpose.msra.mxu0 0.0
        %1618 = vmatprep.subr.mxu0 0.0
        %1619 = vmatpush1.xpose.msra.mxu0 0.0
        %1620 = vmatprep.subr.mxu0 0.0
        %1621 = vmatpush1.xpose.msra.mxu0 0.0
        %1622 = vmatprep.subr.mxu0 0.0
        %1623 = vmatpush1.xpose.msra.mxu0 0.0
        %1624 = vmatprep.subr.mxu0 0.0
        %1625 = vmatpush1.xpose.msra.mxu0 0.0
        %1626 = vmatprep.subr.mxu0 0.0
        %1627 = vmatpush1.xpose.msra.mxu0 0.0
        %1628 = vmatprep.subr.mxu0 0.0
        %1629 = vmatpush1.xpose.msra.mxu0 0.0
        %1630 = vmatprep.subr.mxu0 0.0
        %1631 = vmatpush1.xpose.msra.mxu0 0.0
        %1632 = vmatprep.subr.mxu0 0.0
        %1633 = vmatpush1.xpose.msra.mxu0 0.0
        %1634 = vmatprep.subr.mxu0 0.0
        %1635 = vmatpush1.xpose.msra.mxu0 0.0
        %1636 = vmatprep.mubr.f32.mxu0 0.0
        %1637 = vmatmul.mubr.f32.gmra.mrb[0].mxu0 %v1564
        %v1638 = vpop.f32.mrb[0].mxu0
        %v1639 = vadd.f32 0.0, %v1638
        %v1640 = vpop.f32.mrb[0].mxu0
        %1641 = vmatprep.mubr.f32.mxu0 0.0
        %1642 = vmatmul.mubr.f32.gmra.mrb[0].mxu0 %v1566
        %v1643 = vpop.f32.mrb[0].mxu0
        %v1644 = vadd.f32 0.0, %v1643
        %v1645 = vpop.f32.mrb[0].mxu0
        %1646 = vdwg.mxu0
        %v1647 = vmul.f32 %v1639, 0.35355338
        %v1648 = vmul.f32 %v1644, 0.35355338
        %v1649 = vadd.f32 %v1647, %v1239
        %v1650 = vadd.f32 %v1648, %v1239
        %v1651 = vsel %vm892, %v1649, -inf
        %1652 = vmax.xlane.f32.xlu0 %v1651
        %v1653 = vpop.xlane.xlu0 %1652
        %v1654 = vsel %vm892, %v1650, -inf
        %1655 = vmax.xlane.f32.xlu0 %v1654
        %v1656 = vpop.xlane.xlu0 %1655
        %v1657 = vsub.f32 %v1649, %v1653
        %v1658 = vsub.f32 %v1650, %v1656
        %v1659 = vmul.f32 %v1657, 1.442695
        %v1660 = vpow.pop %v1659
        %v1661 = vmul.f32 %v1658, 1.442695
        %v1662 = vpow.pop %v1661
        %v1663 = vsel %vm892, %v1660, 0.0
        %1664 = vadd.xlane.f32.xlu0 %v1663
        %v1665 = vpop.xlane.xlu0 %1664
        %v1666 = vsel %vm892, %v1662, 0.0
        %1667 = vadd.xlane.f32.xlu0 %v1666
        %v1668 = vpop.xlane.xlu0 %1667
        %v1669 = vrcp.pop %v1665
        %v1670 = vrcp.pop %v1668
        %v1671 = vmul.f32 %v1660, %v1669
        %v1672 = vmul.f32 %v1662, %v1670
        %1673 = vrot.lane.b32.xlu0 %v1135, 48
        %v1674 = vpop.permute.xlu0 %1673
        %1675 = vrot.lane.b32.xlu0 %v1140, 48
        %v1676 = vpop.permute.xlu0 %1675
        %v1680 = vsel %vm892, %v1671, 0
        %v1683 = vsel %vm892, %v1672, 0
        %1685 = vmatprep.subr.mxu0 0.0
        %1686 = vmatpush1.msra.mxu0 %v1674
        %1687 = vmatprep.subr.mxu0 0.0
        %1688 = vmatpush1.msra.mxu0 %v1676
        %1689 = vmatprep.subr.mxu0 0.0
        %1690 = vmatpush1.msra.mxu0 0.0
        %1691 = vmatprep.subr.mxu0 0.0
        %1692 = vmatpush1.msra.mxu0 0.0
        %1693 = vmatprep.subr.mxu0 0.0
        %1694 = vmatpush1.msra.mxu0 0.0
        %1695 = vmatprep.subr.mxu0 0.0
        %1696 = vmatpush1.msra.mxu0 0.0
        %1697 = vmatprep.subr.mxu0 0.0
        %1698 = vmatpush1.msra.mxu0 0.0
        %1699 = vmatprep.subr.mxu0 0.0
        %1700 = vmatpush1.msra.mxu0 0.0
        %1701 = vmatprep.subr.mxu0 0.0
        %1702 = vmatpush1.msra.mxu0 0.0
        %1703 = vmatprep.subr.mxu0 0.0
        %1704 = vmatpush1.msra.mxu0 0.0
        %1705 = vmatprep.subr.mxu0 0.0
        %1706 = vmatpush1.msra.mxu0 0.0
        %1707 = vmatprep.subr.mxu0 0.0
        %1708 = vmatpush1.msra.mxu0 0.0
        %1709 = vmatprep.subr.mxu0 0.0
        %1710 = vmatpush1.msra.mxu0 0.0
        %1711 = vmatprep.subr.mxu0 0.0
        %1712 = vmatpush1.msra.mxu0 0.0
        %1713 = vmatprep.subr.mxu0 0.0
        %1714 = vmatpush1.msra.mxu0 0.0
        %1715 = vmatprep.subr.mxu0 0.0
        %1716 = vmatpush1.msra.mxu0 0.0
        %1717 = vmatprep.subr.mxu0 0.0
        %1718 = vmatpush1.msra.mxu0 0.0
        %1719 = vmatprep.subr.mxu0 0.0
        %1720 = vmatpush1.msra.mxu0 0.0
        %1721 = vmatprep.subr.mxu0 0.0
        %1722 = vmatpush1.msra.mxu0 0.0
        %1723 = vmatprep.subr.mxu0 0.0
        %1724 = vmatpush1.msra.mxu0 0.0
        %1725 = vmatprep.subr.mxu0 0.0
        %1726 = vmatpush1.msra.mxu0 0.0
        %1727 = vmatprep.subr.mxu0 0.0
        %1728 = vmatpush1.msra.mxu0 0.0
        %1729 = vmatprep.subr.mxu0 0.0
        %1730 = vmatpush1.msra.mxu0 0.0
        %1731 = vmatprep.subr.mxu0 0.0
        %1732 = vmatpush1.msra.mxu0 0.0
        %1733 = vmatprep.subr.mxu0 0.0
        %1734 = vmatpush1.msra.mxu0 0.0
        %1735 = vmatprep.subr.mxu0 0.0
        %1736 = vmatpush1.msra.mxu0 0.0
        %1737 = vmatprep.subr.mxu0 0.0
        %1738 = vmatpush1.msra.mxu0 0.0
        %1739 = vmatprep.subr.mxu0 0.0
        %1740 = vmatpush1.msra.mxu0 0.0
        %1741 = vmatprep.subr.mxu0 0.0
        %1742 = vmatpush1.msra.mxu0 0.0
        %1743 = vmatprep.subr.mxu0 0.0
        %1744 = vmatpush1.msra.mxu0 0.0
        %1745 = vmatprep.subr.mxu0 0.0
        %1746 = vmatpush1.msra.mxu0 0.0
        %1747 = vmatprep.subr.mxu0 0.0
        %1748 = vmatpush1.msra.mxu0 0.0
        %1749 = vmatprep.mubr.f32.mxu0 0.0
        %1750 = vmatmul.mubr.f32.gmra.mrb[0].mxu0 %v1680
        %v1751 = vpop.f32.mrb[0].mxu0
        %v1752 = vadd.f32 0.0, %v1751
        %v1753 = vpop.f32.mrb[0].mxu0
        %1754 = vmatprep.mubr.f32.mxu0 0.0
        %1755 = vmatmul.mubr.f32.gmra.mrb[0].mxu0 %v1683
        %v1756 = vpop.f32.mrb[0].mxu0
        %v1757 = vadd.f32 0.0, %v1756
        %v1758 = vpop.f32.mrb[0].mxu0
        %1759 = vdwg.mxu0
        %1760 = vrot.lane.b32.xlu0 %v1135, 104
        %v1761 = vpop.permute.xlu0 %1760
        %1762 = vrot.lane.b32.xlu0 %v1140, 104
        %v1763 = vpop.permute.xlu0 %1762
        %1764 = vrot.lane.b32.xlu0 %v1135, 72
        %v1765 = vpop.permute.xlu0 %1764
        %1766 = vrot.lane.b32.xlu0 %v1140, 72
        %v1767 = vpop.permute.xlu0 %1766
        %v1768 = vsel %vm1149, %v1761, 0
        %v1770 = vsel %vm1149, %v1763, 0
        %v1772 = vsel %vm1149, %v1765, 0
        %v1774 = vsel %vm1149, %v1767, 0
        %1776 = vmatprep.subr.mxu0 0.0
        %1777 = vmatpush1.xpose.msra.mxu0 %v1772
        %1778 = vmatprep.subr.mxu0 0.0
        %1779 = vmatpush1.xpose.msra.mxu0 %v1774
        %1780 = vmatprep.subr.mxu0 0.0
        %1781 = vmatpush1.xpose.msra.mxu0 0.0
        %1782 = vmatprep.subr.mxu0 0.0
        %1783 = vmatpush1.xpose.msra.mxu0 0.0
        %1784 = vmatprep.subr.mxu0 0.0
        %1785 = vmatpush1.xpose.msra.mxu0 0.0
        %1786 = vmatprep.subr.mxu0 0.0
        %1787 = vmatpush1.xpose.msra.mxu0 0.0
        %1788 = vmatprep.subr.mxu0 0.0
        %1789 = vmatpush1.xpose.msra.mxu0 0.0
        %1790 = vmatprep.subr.mxu0 0.0
        %1791 = vmatpush1.xpose.msra.mxu0 0.0
        %1792 = vmatprep.subr.mxu0 0.0
        %1793 = vmatpush1.xpose.msra.mxu0 0.0
        %1794 = vmatprep.subr.mxu0 0.0
        %1795 = vmatpush1.xpose.msra.mxu0 0.0
        %1796 = vmatprep.subr.mxu0 0.0
        %1797 = vmatpush1.xpose.msra.mxu0 0.0
        %1798 = vmatprep.subr.mxu0 0.0
        %1799 = vmatpush1.xpose.msra.mxu0 0.0
        %1800 = vmatprep.subr.mxu0 0.0
        %1801 = vmatpush1.xpose.msra.mxu0 0.0
        %1802 = vmatprep.subr.mxu0 0.0
        %1803 = vmatpush1.xpose.msra.mxu0 0.0
        %1804 = vmatprep.subr.mxu0 0.0
        %1805 = vmatpush1.xpose.msra.mxu0 0.0
        %1806 = vmatprep.subr.mxu0 0.0
        %1807 = vmatpush1.xpose.msra.mxu0 0.0
        %1808 = vmatprep.subr.mxu0 0.0
        %1809 = vmatpush1.xpose.msra.mxu0 0.0
        %1810 = vmatprep.subr.mxu0 0.0
        %1811 = vmatpush1.xpose.msra.mxu0 0.0
        %1812 = vmatprep.subr.mxu0 0.0
        %1813 = vmatpush1.xpose.msra.mxu0 0.0
        %1814 = vmatprep.subr.mxu0 0.0
        %1815 = vmatpush1.xpose.msra.mxu0 0.0
        %1816 = vmatprep.subr.mxu0 0.0
        %1817 = vmatpush1.xpose.msra.mxu0 0.0
        %1818 = vmatprep.subr.mxu0 0.0
        %1819 = vmatpush1.xpose.msra.mxu0 0.0
        %1820 = vmatprep.subr.mxu0 0.0
        %1821 = vmatpush1.xpose.msra.mxu0 0.0
        %1822 = vmatprep.subr.mxu0 0.0
        %1823 = vmatpush1.xpose.msra.mxu0 0.0
        %1824 = vmatprep.subr.mxu0 0.0
        %1825 = vmatpush1.xpose.msra.mxu0 0.0
        %1826 = vmatprep.subr.mxu0 0.0
        %1827 = vmatpush1.xpose.msra.mxu0 0.0
        %1828 = vmatprep.subr.mxu0 0.0
        %1829 = vmatpush1.xpose.msra.mxu0 0.0
        %1830 = vmatprep.subr.mxu0 0.0
        %1831 = vmatpush1.xpose.msra.mxu0 0.0
        %1832 = vmatprep.subr.mxu0 0.0
        %1833 = vmatpush1.xpose.msra.mxu0 0.0
        %1834 = vmatprep.subr.mxu0 0.0
        %1835 = vmatpush1.xpose.msra.mxu0 0.0
        %1836 = vmatprep.subr.mxu0 0.0
        %1837 = vmatpush1.xpose.msra.mxu0 0.0
        %1838 = vmatprep.subr.mxu0 0.0
        %1839 = vmatpush1.xpose.msra.mxu0 0.0
        %1840 = vmatprep.mubr.f32.mxu0 0.0
        %1841 = vmatmul.mubr.f32.gmra.mrb[0].mxu0 %v1768
        %v1842 = vpop.f32.mrb[0].mxu0
        %v1843 = vadd.f32 0.0, %v1842
        %v1844 = vpop.f32.mrb[0].mxu0
        %1845 = vmatprep.mubr.f32.mxu0 0.0
        %1846 = vmatmul.mubr.f32.gmra.mrb[0].mxu0 %v1770
        %v1847 = vpop.f32.mrb[0].mxu0
        %v1848 = vadd.f32 0.0, %v1847
        %v1849 = vpop.f32.mrb[0].mxu0
        %1850 = vdwg.mxu0
        %v1851 = vmul.f32 %v1843, 0.35355338
        %v1852 = vmul.f32 %v1848, 0.35355338
        %v1853 = vadd.f32 %v1851, %v1239
        %v1854 = vadd.f32 %v1852, %v1239
        %v1855 = vsel %vm892, %v1853, -inf
        %1856 = vmax.xlane.f32.xlu0 %v1855
        %v1857 = vpop.xlane.xlu0 %1856
        %v1858 = vsel %vm892, %v1854, -inf
        %1859 = vmax.xlane.f32.xlu0 %v1858
        %v1860 = vpop.xlane.xlu0 %1859
        %v1861 = vsub.f32 %v1853, %v1857
        %v1862 = vsub.f32 %v1854, %v1860
        %v1863 = vmul.f32 %v1861, 1.442695
        %v1864 = vpow.pop %v1863
        %v1865 = vmul.f32 %v1862, 1.442695
        %v1866 = vpow.pop %v1865
        %v1867 = vsel %vm892, %v1864, 0.0
        %1868 = vadd.xlane.f32.xlu0 %v1867
        %v1869 = vpop.xlane.xlu0 %1868
        %v1870 = vsel %vm892, %v1866, 0.0
        %1871 = vadd.xlane.f32.xlu0 %v1870
        %v1872 = vpop.xlane.xlu0 %1871
        %v1873 = vrcp.pop %v1869
        %v1874 = vrcp.pop %v1872
        %v1875 = vmul.f32 %v1864, %v1873
        %v1876 = vmul.f32 %v1866, %v1874
        %1877 = vrot.lane.b32.xlu0 %v1135, 40
        %v1878 = vpop.permute.xlu0 %1877
        %1879 = vrot.lane.b32.xlu0 %v1140, 40
        %v1880 = vpop.permute.xlu0 %1879
        %v1884 = vsel %vm892, %v1875, 0
        %v1887 = vsel %vm892, %v1876, 0
        %1889 = vmatprep.subr.mxu0 0.0
        %1890 = vmatpush1.msra.mxu0 %v1878
        %1891 = vmatprep.subr.mxu0 0.0
        %1892 = vmatpush1.msra.mxu0 %v1880
        %1893 = vmatprep.subr.mxu0 0.0
        %1894 = vmatpush1.msra.mxu0 0.0
        %1895 = vmatprep.subr.mxu0 0.0
        %1896 = vmatpush1.msra.mxu0 0.0
        %1897 = vmatprep.subr.mxu0 0.0
        %1898 = vmatpush1.msra.mxu0 0.0
        %1899 = vmatprep.subr.mxu0 0.0
        %1900 = vmatpush1.msra.mxu0 0.0
        %1901 = vmatprep.subr.mxu0 0.0
        %1902 = vmatpush1.msra.mxu0 0.0
        %1903 = vmatprep.subr.mxu0 0.0
        %1904 = vmatpush1.msra.mxu0 0.0
        %1905 = vmatprep.subr.mxu0 0.0
        %1906 = vmatpush1.msra.mxu0 0.0
        %1907 = vmatprep.subr.mxu0 0.0
        %1908 = vmatpush1.msra.mxu0 0.0
        %1909 = vmatprep.subr.mxu0 0.0
        %1910 = vmatpush1.msra.mxu0 0.0
        %1911 = vmatprep.subr.mxu0 0.0
        %1912 = vmatpush1.msra.mxu0 0.0
        %1913 = vmatprep.subr.mxu0 0.0
        %1914 = vmatpush1.msra.mxu0 0.0
        %1915 = vmatprep.subr.mxu0 0.0
        %1916 = vmatpush1.msra.mxu0 0.0
        %1917 = vmatprep.subr.mxu0 0.0
        %1918 = vmatpush1.msra.mxu0 0.0
        %1919 = vmatprep.subr.mxu0 0.0
        %1920 = vmatpush1.msra.mxu0 0.0
        %1921 = vmatprep.subr.mxu0 0.0
        %1922 = vmatpush1.msra.mxu0 0.0
        %1923 = vmatprep.subr.mxu0 0.0
        %1924 = vmatpush1.msra.mxu0 0.0
        %1925 = vmatprep.subr.mxu0 0.0
        %1926 = vmatpush1.msra.mxu0 0.0
        %1927 = vmatprep.subr.mxu0 0.0
        %1928 = vmatpush1.msra.mxu0 0.0
        %1929 = vmatprep.subr.mxu0 0.0
        %1930 = vmatpush1.msra.mxu0 0.0
        %1931 = vmatprep.subr.mxu0 0.0
        %1932 = vmatpush1.msra.mxu0 0.0
        %1933 = vmatprep.subr.mxu0 0.0
        %1934 = vmatpush1.msra.mxu0 0.0
        %1935 = vmatprep.subr.mxu0 0.0
        %1936 = vmatpush1.msra.mxu0 0.0
        %1937 = vmatprep.subr.mxu0 0.0
        %1938 = vmatpush1.msra.mxu0 0.0
        %1939 = vmatprep.subr.mxu0 0.0
        %1940 = vmatpush1.msra.mxu0 0.0
        %1941 = vmatprep.subr.mxu0 0.0
        %1942 = vmatpush1.msra.mxu0 0.0
        %1943 = vmatprep.subr.mxu0 0.0
        %1944 = vmatpush1.msra.mxu0 0.0
        %1945 = vmatprep.subr.mxu0 0.0
        %1946 = vmatpush1.msra.mxu0 0.0
        %1947 = vmatprep.subr.mxu0 0.0
        %1948 = vmatpush1.msra.mxu0 0.0
        %1949 = vmatprep.subr.mxu0 0.0
        %1950 = vmatpush1.msra.mxu0 0.0
        %1951 = vmatprep.subr.mxu0 0.0
        %1952 = vmatpush1.msra.mxu0 0.0
        %1953 = vmatprep.mubr.f32.mxu0 0.0
        %1954 = vmatmul.mubr.f32.gmra.mrb[0].mxu0 %v1884
        %v1955 = vpop.f32.mrb[0].mxu0
        %v1956 = vadd.f32 0.0, %v1955
        %v1957 = vpop.f32.mrb[0].mxu0
        %1958 = vmatprep.mubr.f32.mxu0 0.0
        %1959 = vmatmul.mubr.f32.gmra.mrb[0].mxu0 %v1887
        %v1960 = vpop.f32.mrb[0].mxu0
        %v1961 = vadd.f32 0.0, %v1960
        %v1962 = vpop.f32.mrb[0].mxu0
        %1963 = vdwg.mxu0
        %1966 = vrot.lane.b32.xlu0 %v1548, 8
        %v1967 = vpop.permute.xlu0 %1966
        %1968 = vrot.lane.b32.xlu0 %v1553, 8
        %v1969 = vpop.permute.xlu0 %1968
        %1974 = vrot.lane.b32.xlu0 %v1752, 16
        %v1975 = vpop.permute.xlu0 %1974
        %1976 = vrot.lane.b32.xlu0 %v1757, 16
        %v1977 = vpop.permute.xlu0 %1976
        %1982 = vrot.lane.b32.xlu0 %v1956, 24
        %v1983 = vpop.permute.xlu0 %1982
        %1984 = vrot.lane.b32.xlu0 %v1961, 24
        %v1985 = vpop.permute.xlu0 %1984
        %v1988 = vsel %vm1149, %v1344, %v1967
        %v1989 = vsel %vm1149, %v1349, %v1969
        %v1990 = vsel %vm892, %v1988, %v1975
        %v1991 = vsel %vm892, %v1989, %v1977
        %vm1992 = vcmask 195584
        %v1993 = vsel %vm1992, %v1990, %v1983
        %v1994 = vsel %vm1992, %v1991, %v1985
        %v1996 = vlaneseq
        %v1997 = vshrl.u32 %v1996, 7
        %v1998 = vsub.s32 0, %v1997
        %v1999 = vrot.slane %v1036, %v1998
        %v2002 = vsel %vm1061, %v1993, 0
        %v2005 = vsel %vm1061, %v1994, 0
        %2007 = vmatprep.subr.mxu0 0.0
        %2008 = vmatpush1.msra.mxu0 %v1032
        %2009 = vmatprep.subr.mxu0 0.0
        %2010 = vmatpush1.msra.mxu0 %v1033
        %2011 = vmatprep.subr.mxu0 0.0
        %2012 = vmatpush1.msra.mxu0 %v1034
        %2013 = vmatprep.subr.mxu0 0.0
        %2014 = vmatpush1.msra.mxu0 %v1035
        %2015 = vmatprep.subr.mxu0 0.0
        %2016 = vmatpush1.msra.mxu0 0.0
        %2017 = vmatprep.subr.mxu0 0.0
        %2018 = vmatpush1.msra.mxu0 0.0
        %2019 = vmatprep.subr.mxu0 0.0
        %2020 = vmatpush1.msra.mxu0 0.0
        %2021 = vmatprep.subr.mxu0 0.0
        %2022 = vmatpush1.msra.mxu0 0.0
        %2023 = vmatprep.subr.mxu0 0.0
        %2024 = vmatpush1.msra.mxu0 0.0
        %2025 = vmatprep.subr.mxu0 0.0
        %2026 = vmatpush1.msra.mxu0 0.0
        %2027 = vmatprep.subr.mxu0 0.0
        %2028 = vmatpush1.msra.mxu0 0.0
        %2029 = vmatprep.subr.mxu0 0.0
        %2030 = vmatpush1.msra.mxu0 0.0
        %2031 = vmatprep.subr.mxu0 0.0
        %2032 = vmatpush1.msra.mxu0 0.0
        %2033 = vmatprep.subr.mxu0 0.0
        %2034 = vmatpush1.msra.mxu0 0.0
        %2035 = vmatprep.subr.mxu0 0.0
        %2036 = vmatpush1.msra.mxu0 0.0
        %2037 = vmatprep.subr.mxu0 0.0
        %2038 = vmatpush1.msra.mxu0 0.0
        %2039 = vmatprep.subr.mxu0 0.0
        %2040 = vmatpush1.msra.mxu0 0.0
        %2041 = vmatprep.subr.mxu0 0.0
        %2042 = vmatpush1.msra.mxu0 0.0
        %2043 = vmatprep.subr.mxu0 0.0
        %2044 = vmatpush1.msra.mxu0 0.0
        %2045 = vmatprep.subr.mxu0 0.0
        %2046 = vmatpush1.msra.mxu0 0.0
        %2047 = vmatprep.subr.mxu0 0.0
        %2048 = vmatpush1.msra.mxu0 0.0
        %2049 = vmatprep.subr.mxu0 0.0
        %2050 = vmatpush1.msra.mxu0 0.0
        %2051 = vmatprep.subr.mxu0 0.0
        %2052 = vmatpush1.msra.mxu0 0.0
        %2053 = vmatprep.subr.mxu0 0.0
        %2054 = vmatpush1.msra.mxu0 0.0
        %2055 = vmatprep.subr.mxu0 0.0
        %2056 = vmatpush1.msra.mxu0 0.0
        %2057 = vmatprep.subr.mxu0 0.0
        %2058 = vmatpush1.msra.mxu0 0.0
        %2059 = vmatprep.subr.mxu0 0.0
        %2060 = vmatpush1.msra.mxu0 0.0
        %2061 = vmatprep.subr.mxu0 0.0
        %2062 = vmatpush1.msra.mxu0 0.0
        %2063 = vmatprep.subr.mxu0 0.0
        %2064 = vmatpush1.msra.mxu0 0.0
        %2065 = vmatprep.subr.mxu0 0.0
        %2066 = vmatpush1.msra.mxu0 0.0
        %2067 = vmatprep.subr.mxu0 0.0
        %2068 = vmatpush1.msra.mxu0 0.0
        %2069 = vmatprep.subr.mxu0 0.0
        %2070 = vmatpush1.msra.mxu0 0.0
        %2071 = vmatprep.mubr.f32.mxu0 0.0
        %2072 = vmatmul.mubr.f32.gmra.mrb[0].mxu0 %v2002
        %v2073 = vpop.f32.mrb[0].mxu0
        %v2074 = vadd.f32 %v1999, %v2073
        %v2075 = vpop.f32.mrb[0].mxu0
        %2076 = vmatprep.mubr.f32.mxu0 0.0
        %2077 = vmatmul.mubr.f32.gmra.mrb[0].mxu0 %v2005
        %v2078 = vpop.f32.mrb[0].mxu0
        %v2079 = vadd.f32 %v1999, %v2078
        %v2080 = vpop.f32.mrb[0].mxu0
        %2081 = vdwg.mxu0
        %v2082 = vadd.f32 %v1018, %v2074
        %v2083 = vadd.f32 %v1023, %v2079
        %v2084 = vsel %vm1061, %v2082, 0.0
        %2085 = vadd.xlane.f32.xlu0 %v2084
        %v2086 = vpop.xlane.xlu0 %2085
        %v2087 = vsel %vm1061, %v2083, 0.0
        %2088 = vadd.xlane.f32.xlu0 %v2087
        %v2089 = vpop.xlane.xlu0 %2088
        %v2090 = vrcp.pop 32.0
        %v2091 = vmul.f32 %v2086, %v2090
        %v2092 = vmul.f32 %v2089, %v2090
        %v2093 = vsub.f32 %v2082, %v2091
        %v2094 = vsub.f32 %v2083, %v2092
        %v2095 = vmul.f32 %v2093, %v2093
        %v2096 = vmul.f32 %v2094, %v2094
        %v2097 = vsel %vm1061, %v2095, 0.0
        %2098 = vadd.xlane.f32.xlu0 %v2097
        %v2099 = vpop.xlane.xlu0 %2098
        %v2100 = vsel %vm1061, %v2096, 0.0
        %2101 = vadd.xlane.f32.xlu0 %v2100
        %v2102 = vpop.xlane.xlu0 %2101
        %v2103 = vmul.f32 %v2099, %v2090
        %v2104 = vmul.f32 %v2102, %v2090
        %v2105 = vadd.f32 %v2103, 1e-12
        %v2106 = vadd.f32 %v2104, 1e-12
        %v2107 = vrsqrt.pop %v2105
        %v2108 = vrsqrt.pop %v2106
        %v2109 = vmul.f32 %v2093, %v2107
        %v2110 = vmul.f32 %v2094, %v2108
        %v2112 = vlaneseq
        %v2113 = vshrl.u32 %v2112, 7
        %v2114 = vsub.s32 0, %v2113
        %v2115 = vrot.slane %v1037, %v2114
        %v2117 = vmul.f32 %v2109, %v2115
        %v2118 = vmul.f32 %v2110, %v2115
        %v2120 = vlaneseq
        %v2121 = vshrl.u32 %v2120, 7
        %v2122 = vsub.s32 0, %v2121
        %v2123 = vrot.slane %v1038, %v2122
        %v2125 = vadd.f32 %v2117, %v2123
        %v2126 = vadd.f32 %v2118, %v2123
        %v2128 = vlaneseq
        %v2129 = vshrl.u32 %v2128, 7
        %v2130 = vsub.s32 0, %v2129
        %v2131 = vrot.slane %v1043, %v2130
        %v2134 = vsel %vm1061, %v2125, 0
        %v2137 = vsel %vm1061, %v2126, 0
        %2139 = vmatprep.subr.mxu0 0.0
        %2140 = vmatpush1.msra.mxu0 %v1039
        %2141 = vmatprep.subr.mxu0 0.0
        %2142 = vmatpush1.msra.mxu0 %v1040
        %2143 = vmatprep.subr.mxu0 0.0
        %2144 = vmatpush1.msra.mxu0 %v1041
        %2145 = vmatprep.subr.mxu0 0.0
        %2146 = vmatpush1.msra.mxu0 %v1042
        %2147 = vmatprep.subr.mxu0 0.0
        %2148 = vmatpush1.msra.mxu0 0.0
        %2149 = vmatprep.subr.mxu0 0.0
        %2150 = vmatpush1.msra.mxu0 0.0
        %2151 = vmatprep.subr.mxu0 0.0
        %2152 = vmatpush1.msra.mxu0 0.0
        %2153 = vmatprep.subr.mxu0 0.0
        %2154 = vmatpush1.msra.mxu0 0.0
        %2155 = vmatprep.subr.mxu0 0.0
        %2156 = vmatpush1.msra.mxu0 0.0
        %2157 = vmatprep.subr.mxu0 0.0
        %2158 = vmatpush1.msra.mxu0 0.0
        %2159 = vmatprep.subr.mxu0 0.0
        %2160 = vmatpush1.msra.mxu0 0.0
        %2161 = vmatprep.subr.mxu0 0.0
        %2162 = vmatpush1.msra.mxu0 0.0
        %2163 = vmatprep.subr.mxu0 0.0
        %2164 = vmatpush1.msra.mxu0 0.0
        %2165 = vmatprep.subr.mxu0 0.0
        %2166 = vmatpush1.msra.mxu0 0.0
        %2167 = vmatprep.subr.mxu0 0.0
        %2168 = vmatpush1.msra.mxu0 0.0
        %2169 = vmatprep.subr.mxu0 0.0
        %2170 = vmatpush1.msra.mxu0 0.0
        %2171 = vmatprep.subr.mxu0 0.0
        %2172 = vmatpush1.msra.mxu0 0.0
        %2173 = vmatprep.subr.mxu0 0.0
        %2174 = vmatpush1.msra.mxu0 0.0
        %2175 = vmatprep.subr.mxu0 0.0
        %2176 = vmatpush1.msra.mxu0 0.0
        %2177 = vmatprep.subr.mxu0 0.0
        %2178 = vmatpush1.msra.mxu0 0.0
        %2179 = vmatprep.subr.mxu0 0.0
        %2180 = vmatpush1.msra.mxu0 0.0
        %2181 = vmatprep.subr.mxu0 0.0
        %2182 = vmatpush1.msra.mxu0 0.0
        %2183 = vmatprep.subr.mxu0 0.0
        %2184 = vmatpush1.msra.mxu0 0.0
        %2185 = vmatprep.subr.mxu0 0.0
        %2186 = vmatpush1.msra.mxu0 0.0
        %2187 = vmatprep.subr.mxu0 0.0
        %2188 = vmatpush1.msra.mxu0 0.0
        %2189 = vmatprep.subr.mxu0 0.0
        %2190 = vmatpush1.msra.mxu0 0.0
        %2191 = vmatprep.subr.mxu0 0.0
        %2192 = vmatpush1.msra.mxu0 0.0
        %2193 = vmatprep.subr.mxu0 0.0
        %2194 = vmatpush1.msra.mxu0 0.0
        %2195 = vmatprep.subr.mxu0 0.0
        %2196 = vmatpush1.msra.mxu0 0.0
        %2197 = vmatprep.subr.mxu0 0.0
        %2198 = vmatpush1.msra.mxu0 0.0
        %2199 = vmatprep.subr.mxu0 0.0
        %2200 = vmatpush1.msra.mxu0 0.0
        %2201 = vmatprep.subr.mxu0 0.0
        %2202 = vmatpush1.msra.mxu0 0.0
        %2203 = vmatprep.mubr.f32.mxu0 0.0
        %2204 = vmatmul.mubr.f32.gmra.mrb[0].mxu0 %v2134
        %v2205 = vpop.f32.mrb[0].mxu0
        %v2206 = vadd.f32 %v2131, %v2205
        %v2207 = vpop.f32.mrb[0].mxu0
        %2208 = vmatprep.mubr.f32.mxu0 0.0
        %2209 = vmatmul.mubr.f32.gmra.mrb[0].mxu0 %v2137
        %v2210 = vpop.f32.mrb[0].mxu0
        %v2211 = vadd.f32 %v2131, %v2210
        %v2212 = vpop.f32.mrb[0].mxu0
        %2213 = vdwg.mxu0
        %v2214 = vmul.f32 %v2206, %v2206
        %v2215 = vmul.f32 %v2211, %v2211
        %v2216 = vmul.f32 %v2206, %v2214
        %v2217 = vmul.f32 %v2211, %v2215
        %v2218 = vmul.f32 %v2216, 0.044715
        %v2219 = vmul.f32 %v2217, 0.044715
        %v2220 = vadd.f32 %v2206, %v2218
        %v2221 = vadd.f32 %v2211, %v2219
        %v2222 = vmul.f32 %v2220, 0.7978846
        %v2223 = vmul.f32 %v2221, 0.7978846
        %v2224 = vtanh.pop %v2222
        %v2225 = vtanh.pop %v2223
        %v2226 = vadd.f32 %v2224, 1.0
        %v2227 = vadd.f32 %v2225, 1.0
        %v2228 = vmul.f32 %v2226, 0.5
        %v2229 = vmul.f32 %v2227, 0.5
        %v2230 = vmul.f32 %v2206, %v2228
        %v2231 = vmul.f32 %v2211, %v2229
        %v2233 = vlaneseq
        %v2234 = vshrl.u32 %v2233, 7
        %v2235 = vsub.s32 0, %v2234
        %v2236 = vrot.slane %v1052, %v2235
        %vm2238 = vcmask 523264
        %v2240 = vsel %vm2238, %v2230, 0
        %v2243 = vsel %vm2238, %v2231, 0
        %2245 = vmatprep.subr.mxu0 0.0
        %2246 = vmatpush1.msra.mxu0 %v1044
        %2247 = vmatprep.subr.mxu0 0.0
        %2248 = vmatpush1.msra.mxu0 %v1045
        %2249 = vmatprep.subr.mxu0 0.0
        %2250 = vmatpush1.msra.mxu0 %v1046
        %2251 = vmatprep.subr.mxu0 0.0
        %2252 = vmatpush1.msra.mxu0 %v1047
        %2253 = vmatprep.subr.mxu0 0.0
        %2254 = vmatpush1.msra.mxu0 %v1048
        %2255 = vmatprep.subr.mxu0 0.0
        %2256 = vmatpush1.msra.mxu0 %v1049
        %2257 = vmatprep.subr.mxu0 0.0
        %2258 = vmatpush1.msra.mxu0 %v1050
        %2259 = vmatprep.subr.mxu0 0.0
        %2260 = vmatpush1.msra.mxu0 %v1051
        %2261 = vmatprep.subr.mxu0 0.0
        %2262 = vmatpush1.msra.mxu0 0.0
        %2263 = vmatprep.subr.mxu0 0.0
        %2264 = vmatpush1.msra.mxu0 0.0
        %2265 = vmatprep.subr.mxu0 0.0
        %2266 = vmatpush1.msra.mxu0 0.0
        %2267 = vmatprep.subr.mxu0 0.0
        %2268 = vmatpush1.msra.mxu0 0.0
        %2269 = vmatprep.subr.mxu0 0.0
        %2270 = vmatpush1.msra.mxu0 0.0
        %2271 = vmatprep.subr.mxu0 0.0
        %2272 = vmatpush1.msra.mxu0 0.0
        %2273 = vmatprep.subr.mxu0 0.0
        %2274 = vmatpush1.msra.mxu0 0.0
        %2275 = vmatprep.subr.mxu0 0.0
        %2276 = vmatpush1.msra.mxu0 0.0
        %2277 = vmatprep.subr.mxu0 0.0
        %2278 = vmatpush1.msra.mxu0 0.0
        %2279 = vmatprep.subr.mxu0 0.0
        %2280 = vmatpush1.msra.mxu0 0.0
        %2281 = vmatprep.subr.mxu0 0.0
        %2282 = vmatpush1.msra.mxu0 0.0
        %2283 = vmatprep.subr.mxu0 0.0
        %2284 = vmatpush1.msra.mxu0 0.0
        %2285 = vmatprep.subr.mxu0 0.0
        %2286 = vmatpush1.msra.mxu0 0.0
        %2287 = vmatprep.subr.mxu0 0.0
        %2288 = vmatpush1.msra.mxu0 0.0
        %2289 = vmatprep.subr.mxu0 0.0
        %2290 = vmatpush1.msra.mxu0 0.0
        %2291 = vmatprep.subr.mxu0 0.0
        %2292 = vmatpush1.msra.mxu0 0.0
        %2293 = vmatprep.subr.mxu0 0.0
        %2294 = vmatpush1.msra.mxu0 0.0
        %2295 = vmatprep.subr.mxu0 0.0
        %2296 = vmatpush1.msra.mxu0 0.0
        %2297 = vmatprep.subr.mxu0 0.0
        %2298 = vmatpush1.msra.mxu0 0.0
        %2299 = vmatprep.subr.mxu0 0.0
        %2300 = vmatpush1.msra.mxu0 0.0
        %2301 = vmatprep.subr.mxu0 0.0
        %2302 = vmatpush1.msra.mxu0 0.0
        %2303 = vmatprep.subr.mxu0 0.0
        %2304 = vmatpush1.msra.mxu0 0.0
        %2305 = vmatprep.subr.mxu0 0.0
        %2306 = vmatpush1.msra.mxu0 0.0
        %2307 = vmatprep.subr.mxu0 0.0
        %2308 = vmatpush1.msra.mxu0 0.0
        %2309 = vmatprep.mubr.f32.mxu0 0.0
        %2310 = vmatmul.mubr.f32.gmra.mrb[0].mxu0 %v2240
        %v2311 = vpop.f32.mrb[0].mxu0
        %v2312 = vadd.f32 %v2236, %v2311
        %v2313 = vpop.f32.mrb[0].mxu0
        %2314 = vmatprep.mubr.f32.mxu0 0.0
        %2315 = vmatmul.mubr.f32.gmra.mrb[0].mxu0 %v2243
        %v2316 = vpop.f32.mrb[0].mxu0
        %v2317 = vadd.f32 %v2236, %v2316
        %v2318 = vpop.f32.mrb[0].mxu0
        %2319 = vdwg.mxu0
        %v2320 = vadd.f32 %v2125, %v2312
        %v2321 = vadd.f32 %v2126, %v2317
        %v2322 = vsel %vm1061, %v2320, 0.0
        %2323 = vadd.xlane.f32.xlu0 %v2322
        %v2324 = vpop.xlane.xlu0 %2323
        %v2325 = vsel %vm1061, %v2321, 0.0
        %2326 = vadd.xlane.f32.xlu0 %v2325
        %v2327 = vpop.xlane.xlu0 %2326
        %v2328 = vmul.f32 %v2324, %v2090
        %v2329 = vmul.f32 %v2327, %v2090
        %v2330 = vsub.f32 %v2320, %v2328
        %v2331 = vsub.f32 %v2321, %v2329
        %v2332 = vmul.f32 %v2330, %v2330
        %v2333 = vmul.f32 %v2331, %v2331
        %v2334 = vsel %vm1061, %v2332, 0.0
        %2335 = vadd.xlane.f32.xlu0 %v2334
        %v2336 = vpop.xlane.xlu0 %2335
        %v2337 = vsel %vm1061, %v2333, 0.0
        %2338 = vadd.xlane.f32.xlu0 %v2337
        %v2339 = vpop.xlane.xlu0 %2338
        %v2340 = vmul.f32 %v2336, %v2090
        %v2341 = vmul.f32 %v2339, %v2090
        %v2342 = vadd.f32 %v2340, 1e-12
        %v2343 = vadd.f32 %v2341, 1e-12
        %v2344 = vrsqrt.pop %v2342
        %v2345 = vrsqrt.pop %v2343
        %v2346 = vmul.f32 %v2330, %v2344
        %v2347 = vmul.f32 %v2331, %v2345
        %v2349 = vlaneseq
        %v2350 = vshrl.u32 %v2349, 7
        %v2351 = vsub.s32 0, %v2350
        %v2352 = vrot.slane %v1053, %v2351
        %v2354 = vmul.f32 %v2346, %v2352
        %v2355 = vmul.f32 %v2347, %v2352
        %v2357 = vlaneseq
        %v2358 = vshrl.u32 %v2357, 7
        %v2359 = vsub.s32 0, %v2358
        %v2360 = vrot.slane %v1054, %v2359
        %v2362 = vadd.f32 %v2354, %v2360
        %v2363 = vadd.f32 %v2355, %v2360
        %v2365 = vsel %vm1061, %v2362, 0
        %v2368 = vsel %vm1061, %v2363, 0
        %2370 = vmatprep.subr.mxu0 0.0
        %2371 = vmatpush1.msra.mxu0 %v1027
        %2372 = vmatprep.subr.mxu0 0.0
        %2373 = vmatpush1.msra.mxu0 %v1028
        %2374 = vmatprep.subr.mxu0 0.0
        %2375 = vmatpush1.msra.mxu0 %v1029
        %2376 = vmatprep.subr.mxu0 0.0
        %2377 = vmatpush1.msra.mxu0 %v1030
        %2378 = vmatprep.subr.mxu0 0.0
        %2379 = vmatpush1.msra.mxu0 0.0
        %2380 = vmatprep.subr.mxu0 0.0
        %2381 = vmatpush1.msra.mxu0 0.0
        %2382 = vmatprep.subr.mxu0 0.0
        %2383 = vmatpush1.msra.mxu0 0.0
        %2384 = vmatprep.subr.mxu0 0.0
        %2385 = vmatpush1.msra.mxu0 0.0
        %2386 = vmatprep.subr.mxu0 0.0
        %2387 = vmatpush1.msra.mxu0 0.0
        %2388 = vmatprep.subr.mxu0 0.0
        %2389 = vmatpush1.msra.mxu0 0.0
        %2390 = vmatprep.subr.mxu0 0.0
        %2391 = vmatpush1.msra.mxu0 0.0
        %2392 = vmatprep.subr.mxu0 0.0
        %2393 = vmatpush1.msra.mxu0 0.0
        %2394 = vmatprep.subr.mxu0 0.0
        %2395 = vmatpush1.msra.mxu0 0.0
        %2396 = vmatprep.subr.mxu0 0.0
        %2397 = vmatpush1.msra.mxu0 0.0
        %2398 = vmatprep.subr.mxu0 0.0
        %2399 = vmatpush1.msra.mxu0 0.0
        %2400 = vmatprep.subr.mxu0 0.0
        %2401 = vmatpush1.msra.mxu0 0.0
        %2402 = vmatprep.subr.mxu0 0.0
        %2403 = vmatpush1.msra.mxu0 0.0
        %2404 = vmatprep.subr.mxu0 0.0
        %2405 = vmatpush1.msra.mxu0 0.0
        %2406 = vmatprep.subr.mxu0 0.0
        %2407 = vmatpush1.msra.mxu0 0.0
        %2408 = vmatprep.subr.mxu0 0.0
        %2409 = vmatpush1.msra.mxu0 0.0
        %2410 = vmatprep.subr.mxu0 0.0
        %2411 = vmatpush1.msra.mxu0 0.0
        %2412 = vmatprep.subr.mxu0 0.0
        %2413 = vmatpush1.msra.mxu0 0.0
        %2414 = vmatprep.subr.mxu0 0.0
        %2415 = vmatpush1.msra.mxu0 0.0
        %2416 = vmatprep.subr.mxu0 0.0
        %2417 = vmatpush1.msra.mxu0 0.0
        %2418 = vmatprep.subr.mxu0 0.0
        %2419 = vmatpush1.msra.mxu0 0.0
        %2420 = vmatprep.subr.mxu0 0.0
        %2421 = vmatpush1.msra.mxu0 0.0
        %2422 = vmatprep.subr.mxu0 0.0
        %2423 = vmatpush1.msra.mxu0 0.0
        %2424 = vmatprep.subr.mxu0 0.0
        %2425 = vmatpush1.msra.mxu0 0.0
        %2426 = vmatprep.subr.mxu0 0.0
        %2427 = vmatpush1.msra.mxu0 0.0
        %2428 = vmatprep.subr.mxu0 0.0
        %2429 = vmatpush1.msra.mxu0 0.0
        %2430 = vmatprep.subr.mxu0 0.0
        %2431 = vmatpush1.msra.mxu0 0.0
        %2432 = vmatprep.subr.mxu0 0.0
        %2433 = vmatpush1.msra.mxu0 0.0
        %2434 = vmatprep.mubr.f32.mxu0 0.0
        %2435 = vmatmul.mubr.f32.gmra.mrb[0].mxu0 %v2365
        %v2436 = vpop.f32.mrb[0].mxu0
        %v2437 = vadd.f32 %v1059, %v2436
        %v2438 = vpop.f32.mrb[0].mxu0
        %2439 = vmatprep.mubr.f32.mxu0 0.0
        %2440 = vmatmul.mubr.f32.gmra.mrb[0].mxu0 %v2368
        %v2441 = vpop.f32.mrb[0].mxu0
        %v2442 = vadd.f32 %v1059, %v2441
        %v2443 = vpop.f32.mrb[0].mxu0
        %2444 = vdwg.mxu0
        %2447 = vrot.lane.b32.xlu0 %v2437, 96
        %v2448 = vpop.permute.xlu0 %2447
        %2449 = vrot.lane.b32.xlu0 %v2442, 96
        %v2450 = vpop.permute.xlu0 %2449
        %v2451 = vsel %vm1149, %v2437, 0
        %v2453 = vsel %vm1149, %v2442, 0
        %v2455 = vsel %vm1149, %v2448, 0
        %v2457 = vsel %vm1149, %v2450, 0
        %2459 = vmatprep.subr.mxu0 0.0
        %2460 = vmatpush1.xpose.msra.mxu0 %v2455
        %2461 = vmatprep.subr.mxu0 0.0
        %2462 = vmatpush1.xpose.msra.mxu0 %v2457
        %2463 = vmatprep.subr.mxu0 0.0
        %2464 = vmatpush1.xpose.msra.mxu0 0.0
        %2465 = vmatprep.subr.mxu0 0.0
        %2466 = vmatpush1.xpose.msra.mxu0 0.0
        %2467 = vmatprep.subr.mxu0 0.0
        %2468 = vmatpush1.xpose.msra.mxu0 0.0
        %2469 = vmatprep.subr.mxu0 0.0
        %2470 = vmatpush1.xpose.msra.mxu0 0.0
        %2471 = vmatprep.subr.mxu0 0.0
        %2472 = vmatpush1.xpose.msra.mxu0 0.0
        %2473 = vmatprep.subr.mxu0 0.0
        %2474 = vmatpush1.xpose.msra.mxu0 0.0
        %2475 = vmatprep.subr.mxu0 0.0
        %2476 = vmatpush1.xpose.msra.mxu0 0.0
        %2477 = vmatprep.subr.mxu0 0.0
        %2478 = vmatpush1.xpose.msra.mxu0 0.0
        %2479 = vmatprep.subr.mxu0 0.0
        %2480 = vmatpush1.xpose.msra.mxu0 0.0
        %2481 = vmatprep.subr.mxu0 0.0
        %2482 = vmatpush1.xpose.msra.mxu0 0.0
        %2483 = vmatprep.subr.mxu0 0.0
        %2484 = vmatpush1.xpose.msra.mxu0 0.0
        %2485 = vmatprep.subr.mxu0 0.0
        %2486 = vmatpush1.xpose.msra.mxu0 0.0
        %2487 = vmatprep.subr.mxu0 0.0
        %2488 = vmatpush1.xpose.msra.mxu0 0.0
        %2489 = vmatprep.subr.mxu0 0.0
        %2490 = vmatpush1.xpose.msra.mxu0 0.0
        %2491 = vmatprep.subr.mxu0 0.0
        %2492 = vmatpush1.xpose.msra.mxu0 0.0
        %2493 = vmatprep.subr.mxu0 0.0
        %2494 = vmatpush1.xpose.msra.mxu0 0.0
        %2495 = vmatprep.subr.mxu0 0.0
        %2496 = vmatpush1.xpose.msra.mxu0 0.0
        %2497 = vmatprep.subr.mxu0 0.0
        %2498 = vmatpush1.xpose.msra.mxu0 0.0
        %2499 = vmatprep.subr.mxu0 0.0
        %2500 = vmatpush1.xpose.msra.mxu0 0.0
        %2501 = vmatprep.subr.mxu0 0.0
        %2502 = vmatpush1.xpose.msra.mxu0 0.0
        %2503 = vmatprep.subr.mxu0 0.0
        %2504 = vmatpush1.xpose.msra.mxu0 0.0
        %2505 = vmatprep.subr.mxu0 0.0
        %2506 = vmatpush1.xpose.msra.mxu0 0.0
        %2507 = vmatprep.subr.mxu0 0.0
        %2508 = vmatpush1.xpose.msra.mxu0 0.0
        %2509 = vmatprep.subr.mxu0 0.0
        %2510 = vmatpush1.xpose.msra.mxu0 0.0
        %2511 = vmatprep.subr.mxu0 0.0
        %2512 = vmatpush1.xpose.msra.mxu0 0.0
        %2513 = vmatprep.subr.mxu0 0.0
        %2514 = vmatpush1.xpose.msra.mxu0 0.0
        %2515 = vmatprep.subr.mxu0 0.0
        %2516 = vmatpush1.xpose.msra.mxu0 0.0
        %2517 = vmatprep.subr.mxu0 0.0
        %2518 = vmatpush1.xpose.msra.mxu0 0.0
        %2519 = vmatprep.subr.mxu0 0.0
        %2520 = vmatpush1.xpose.msra.mxu0 0.0
        %2521 = vmatprep.subr.mxu0 0.0
        %2522 = vmatpush1.xpose.msra.mxu0 0.0
        %2523 = vmatprep.mubr.f32.mxu0 0.0
        %2524 = vmatmul.mubr.f32.gmra.mrb[0].mxu0 %v2451
        %v2525 = vpop.f32.mrb[0].mxu0
        %v2526 = vadd.f32 0.0, %v2525
        %v2527 = vpop.f32.mrb[0].mxu0
        %2528 = vmatprep.mubr.f32.mxu0 0.0
        %2529 = vmatmul.mubr.f32.gmra.mrb[0].mxu0 %v2453
        %v2530 = vpop.f32.mrb[0].mxu0
        %v2531 = vadd.f32 0.0, %v2530
        %v2532 = vpop.f32.mrb[0].mxu0
        %2533 = vdwg.mxu0
        %v2534 = vmul.f32 %v2526, 0.35355338
        %v2535 = vmul.f32 %v2531, 0.35355338
        %v2536 = vadd.f32 %v2534, %v1239
        %v2537 = vadd.f32 %v2535, %v1239
        %v2538 = vsel %vm892, %v2536, -inf
        %2539 = vmax.xlane.f32.xlu0 %v2538
        %v2540 = vpop.xlane.xlu0 %2539
        %v2541 = vsel %vm892, %v2537, -inf
        %2542 = vmax.xlane.f32.xlu0 %v2541
        %v2543 = vpop.xlane.xlu0 %2542
        %v2544 = vsub.f32 %v2536, %v2540
        %v2545 = vsub.f32 %v2537, %v2543
        %v2546 = vmul.f32 %v2544, 1.442695
        %v2547 = vpow.pop %v2546
        %v2548 = vmul.f32 %v2545, 1.442695
        %v2549 = vpow.pop %v2548
        %v2550 = vsel %vm892, %v2547, 0.0
        %2551 = vadd.xlane.f32.xlu0 %v2550
        %v2552 = vpop.xlane.xlu0 %2551
        %v2553 = vsel %vm892, %v2549, 0.0
        %2554 = vadd.xlane.f32.xlu0 %v2553
        %v2555 = vpop.xlane.xlu0 %2554
        %v2556 = vrcp.pop %v2552
        %v2557 = vrcp.pop %v2555
        %v2558 = vmul.f32 %v2547, %v2556
        %v2559 = vmul.f32 %v2549, %v2557
        %2560 = vrot.lane.b32.xlu0 %v2437, 64
        %v2561 = vpop.permute.xlu0 %2560
        %2562 = vrot.lane.b32.xlu0 %v2442, 64
        %v2563 = vpop.permute.xlu0 %2562
        %v2567 = vsel %vm892, %v2558, 0
        %v2570 = vsel %vm892, %v2559, 0
        %2572 = vmatprep.subr.mxu0 0.0
        %2573 = vmatpush1.msra.mxu0 %v2561
        %2574 = vmatprep.subr.mxu0 0.0
        %2575 = vmatpush1.msra.mxu0 %v2563
        %2576 = vmatprep.subr.mxu0 0.0
        %2577 = vmatpush1.msra.mxu0 0.0
        %2578 = vmatprep.subr.mxu0 0.0
        %2579 = vmatpush1.msra.mxu0 0.0
        %2580 = vmatprep.subr.mxu0 0.0
        %2581 = vmatpush1.msra.mxu0 0.0
        %2582 = vmatprep.subr.mxu0 0.0
        %2583 = vmatpush1.msra.mxu0 0.0
        %2584 = vmatprep.subr.mxu0 0.0
        %2585 = vmatpush1.msra.mxu0 0.0
        %2586 = vmatprep.subr.mxu0 0.0
        %2587 = vmatpush1.msra.mxu0 0.0
        %2588 = vmatprep.subr.mxu0 0.0
        %2589 = vmatpush1.msra.mxu0 0.0
        %2590 = vmatprep.subr.mxu0 0.0
        %2591 = vmatpush1.msra.mxu0 0.0
        %2592 = vmatprep.subr.mxu0 0.0
        %2593 = vmatpush1.msra.mxu0 0.0
        %2594 = vmatprep.subr.mxu0 0.0
        %2595 = vmatpush1.msra.mxu0 0.0
        %2596 = vmatprep.subr.mxu0 0.0
        %2597 = vmatpush1.msra.mxu0 0.0
        %2598 = vmatprep.subr.mxu0 0.0
        %2599 = vmatpush1.msra.mxu0 0.0
        %2600 = vmatprep.subr.mxu0 0.0
        %2601 = vmatpush1.msra.mxu0 0.0
        %2602 = vmatprep.subr.mxu0 0.0
        %2603 = vmatpush1.msra.mxu0 0.0
        %2604 = vmatprep.subr.mxu0 0.0
        %2605 = vmatpush1.msra.mxu0 0.0
        %2606 = vmatprep.subr.mxu0 0.0
        %2607 = vmatpush1.msra.mxu0 0.0
        %2608 = vmatprep.subr.mxu0 0.0
        %2609 = vmatpush1.msra.mxu0 0.0
        %2610 = vmatprep.subr.mxu0 0.0
        %2611 = vmatpush1.msra.mxu0 0.0
        %2612 = vmatprep.subr.mxu0 0.0
        %2613 = vmatpush1.msra.mxu0 0.0
        %2614 = vmatprep.subr.mxu0 0.0
        %2615 = vmatpush1.msra.mxu0 0.0
        %2616 = vmatprep.subr.mxu0 0.0
        %2617 = vmatpush1.msra.mxu0 0.0
        %2618 = vmatprep.subr.mxu0 0.0
        %2619 = vmatpush1.msra.mxu0 0.0
        %2620 = vmatprep.subr.mxu0 0.0
        %2621 = vmatpush1.msra.mxu0 0.0
        %2622 = vmatprep.subr.mxu0 0.0
        %2623 = vmatpush1.msra.mxu0 0.0
        %2624 = vmatprep.subr.mxu0 0.0
        %2625 = vmatpush1.msra.mxu0 0.0
        %2626 = vmatprep.subr.mxu0 0.0
        %2627 = vmatpush1.msra.mxu0 0.0
        %2628 = vmatprep.subr.mxu0 0.0
        %2629 = vmatpush1.msra.mxu0 0.0
        %2630 = vmatprep.subr.mxu0 0.0
        %2631 = vmatpush1.msra.mxu0 0.0
        %2632 = vmatprep.subr.mxu0 0.0
        %2633 = vmatpush1.msra.mxu0 0.0
        %2634 = vmatprep.subr.mxu0 0.0
        %2635 = vmatpush1.msra.mxu0 0.0
        %2636 = vmatprep.mubr.f32.mxu0 0.0
        %2637 = vmatmul.mubr.f32.gmra.mrb[0].mxu0 %v2567
        %v2638 = vpop.f32.mrb[0].mxu0
        %v2639 = vadd.f32 0.0, %v2638
        %v2640 = vpop.f32.mrb[0].mxu0
        %2641 = vmatprep.mubr.f32.mxu0 0.0
        %2642 = vmatmul.mubr.f32.gmra.mrb[0].mxu0 %v2570
        %v2643 = vpop.f32.mrb[0].mxu0
        %v2644 = vadd.f32 0.0, %v2643
        %v2645 = vpop.f32.mrb[0].mxu0
        %2646 = vdwg.mxu0
        %2647 = vrot.lane.b32.xlu0 %v2437, 120
        %v2648 = vpop.permute.xlu0 %2647
        %2649 = vrot.lane.b32.xlu0 %v2442, 120
        %v2650 = vpop.permute.xlu0 %2649
        %2651 = vrot.lane.b32.xlu0 %v2437, 88
        %v2652 = vpop.permute.xlu0 %2651
        %2653 = vrot.lane.b32.xlu0 %v2442, 88
        %v2654 = vpop.permute.xlu0 %2653
        %v2655 = vsel %vm1149, %v2648, 0
        %v2657 = vsel %vm1149, %v2650, 0
        %v2659 = vsel %vm1149, %v2652, 0
        %v2661 = vsel %vm1149, %v2654, 0
        %2663 = vmatprep.subr.mxu0 0.0
        %2664 = vmatpush1.xpose.msra.mxu0 %v2659
        %2665 = vmatprep.subr.mxu0 0.0
        %2666 = vmatpush1.xpose.msra.mxu0 %v2661
        %2667 = vmatprep.subr.mxu0 0.0
        %2668 = vmatpush1.xpose.msra.mxu0 0.0
        %2669 = vmatprep.subr.mxu0 0.0
        %2670 = vmatpush1.xpose.msra.mxu0 0.0
        %2671 = vmatprep.subr.mxu0 0.0
        %2672 = vmatpush1.xpose.msra.mxu0 0.0
        %2673 = vmatprep.subr.mxu0 0.0
        %2674 = vmatpush1.xpose.msra.mxu0 0.0
        %2675 = vmatprep.subr.mxu0 0.0
        %2676 = vmatpush1.xpose.msra.mxu0 0.0
        %2677 = vmatprep.subr.mxu0 0.0
        %2678 = vmatpush1.xpose.msra.mxu0 0.0
        %2679 = vmatprep.subr.mxu0 0.0
        %2680 = vmatpush1.xpose.msra.mxu0 0.0
        %2681 = vmatprep.subr.mxu0 0.0
        %2682 = vmatpush1.xpose.msra.mxu0 0.0
        %2683 = vmatprep.subr.mxu0 0.0
        %2684 = vmatpush1.xpose.msra.mxu0 0.0
        %2685 = vmatprep.subr.mxu0 0.0
        %2686 = vmatpush1.xpose.msra.mxu0 0.0
        %2687 = vmatprep.subr.mxu0 0.0
        %2688 = vmatpush1.xpose.msra.mxu0 0.0
        %2689 = vmatprep.subr.mxu0 0.0
        %2690 = vmatpush1.xpose.msra.mxu0 0.0
        %2691 = vmatprep.subr.mxu0 0.0
        %2692 = vmatpush1.xpose.msra.mxu0 0.0
        %2693 = vmatprep.subr.mxu0 0.0
        %2694 = vmatpush1.xpose.msra.mxu0 0.0
        %2695 = vmatprep.subr.mxu0 0.0
        %2696 = vmatpush1.xpose.msra.mxu0 0.0
        %2697 = vmatprep.subr.mxu0 0.0
        %2698 = vmatpush1.xpose.msra.mxu0 0.0
        %2699 = vmatprep.subr.mxu0 0.0
        %2700 = vmatpush1.xpose.msra.mxu0 0.0
        %2701 = vmatprep.subr.mxu0 0.0
        %2702 = vmatpush1.xpose.msra.mxu0 0.0
        %2703 = vmatprep.subr.mxu0 0.0
        %2704 = vmatpush1.xpose.msra.mxu0 0.0
        %2705 = vmatprep.subr.mxu0 0.0
        %2706 = vmatpush1.xpose.msra.mxu0 0.0
        %2707 = vmatprep.subr.mxu0 0.0
        %2708 = vmatpush1.xpose.msra.mxu0 0.0
        %2709 = vmatprep.subr.mxu0 0.0
        %2710 = vmatpush1.xpose.msra.mxu0 0.0
        %2711 = vmatprep.subr.mxu0 0.0
        %2712 = vmatpush1.xpose.msra.mxu0 0.0
        %2713 = vmatprep.subr.mxu0 0.0
        %2714 = vmatpush1.xpose.msra.mxu0 0.0
        %2715 = vmatprep.subr.mxu0 0.0
        %2716 = vmatpush1.xpose.msra.mxu0 0.0
        %2717 = vmatprep.subr.mxu0 0.0
        %2718 = vmatpush1.xpose.msra.mxu0 0.0
        %2719 = vmatprep.subr.mxu0 0.0
        %2720 = vmatpush1.xpose.msra.mxu0 0.0
        %2721 = vmatprep.subr.mxu0 0.0
        %2722 = vmatpush1.xpose.msra.mxu0 0.0
        %2723 = vmatprep.subr.mxu0 0.0
        %2724 = vmatpush1.xpose.msra.mxu0 0.0
        %2725 = vmatprep.subr.mxu0 0.0
        %2726 = vmatpush1.xpose.msra.mxu0 0.0
        %2727 = vmatprep.mubr.f32.mxu0 0.0
        %2728 = vmatmul.mubr.f32.gmra.mrb[0].mxu0 %v2655
        %v2729 = vpop.f32.mrb[0].mxu0
        %v2730 = vadd.f32 0.0, %v2729
        %v2731 = vpop.f32.mrb[0].mxu0
        %2732 = vmatprep.mubr.f32.mxu0 0.0
        %2733 = vmatmul.mubr.f32.gmra.mrb[0].mxu0 %v2657
        %v2734 = vpop.f32.mrb[0].mxu0
        %v2735 = vadd.f32 0.0, %v2734
        %v2736 = vpop.f32.mrb[0].mxu0
        %2737 = vdwg.mxu0
        %v2738 = vmul.f32 %v2730, 0.35355338
        %v2739 = vmul.f32 %v2735, 0.35355338
        %v2740 = vadd.f32 %v2738, %v1239
        %v2741 = vadd.f32 %v2739, %v1239
        %v2742 = vsel %vm892, %v2740, -inf
        %2743 = vmax.xlane.f32.xlu0 %v2742
        %v2744 = vpop.xlane.xlu0 %2743
        %v2745 = vsel %vm892, %v2741, -inf
        %2746 = vmax.xlane.f32.xlu0 %v2745
        %v2747 = vpop.xlane.xlu0 %2746
        %v2748 = vsub.f32 %v2740, %v2744
        %v2749 = vsub.f32 %v2741, %v2747
        %v2750 = vmul.f32 %v2748, 1.442695
        %v2751 = vpow.pop %v2750
        %v2752 = vmul.f32 %v2749, 1.442695
        %v2753 = vpow.pop %v2752
        %v2754 = vsel %vm892, %v2751, 0.0
        %2755 = vadd.xlane.f32.xlu0 %v2754
        %v2756 = vpop.xlane.xlu0 %2755
        %v2757 = vsel %vm892, %v2753, 0.0
        %2758 = vadd.xlane.f32.xlu0 %v2757
        %v2759 = vpop.xlane.xlu0 %2758
        %v2760 = vrcp.pop %v2756
        %v2761 = vrcp.pop %v2759
        %v2762 = vmul.f32 %v2751, %v2760
        %v2763 = vmul.f32 %v2753, %v2761
        %2764 = vrot.lane.b32.xlu0 %v2437, 56
        %v2765 = vpop.permute.xlu0 %2764
        %2766 = vrot.lane.b32.xlu0 %v2442, 56
        %v2767 = vpop.permute.xlu0 %2766
        %v2771 = vsel %vm892, %v2762, 0
        %v2774 = vsel %vm892, %v2763, 0
        %2776 = vmatprep.subr.mxu0 0.0
        %2777 = vmatpush1.msra.mxu0 %v2765
        %2778 = vmatprep.subr.mxu0 0.0
        %2779 = vmatpush1.msra.mxu0 %v2767
        %2780 = vmatprep.subr.mxu0 0.0
        %2781 = vmatpush1.msra.mxu0 0.0
        %2782 = vmatprep.subr.mxu0 0.0
        %2783 = vmatpush1.msra.mxu0 0.0
        %2784 = vmatprep.subr.mxu0 0.0
        %2785 = vmatpush1.msra.mxu0 0.0
        %2786 = vmatprep.subr.mxu0 0.0
        %2787 = vmatpush1.msra.mxu0 0.0
        %2788 = vmatprep.subr.mxu0 0.0
        %2789 = vmatpush1.msra.mxu0 0.0
        %2790 = vmatprep.subr.mxu0 0.0
        %2791 = vmatpush1.msra.mxu0 0.0
        %2792 = vmatprep.subr.mxu0 0.0
        %2793 = vmatpush1.msra.mxu0 0.0
        %2794 = vmatprep.subr.mxu0 0.0
        %2795 = vmatpush1.msra.mxu0 0.0
        %2796 = vmatprep.subr.mxu0 0.0
        %2797 = vmatpush1.msra.mxu0 0.0
        %2798 = vmatprep.subr.mxu0 0.0
        %2799 = vmatpush1.msra.mxu0 0.0
        %2800 = vmatprep.subr.mxu0 0.0
        %2801 = vmatpush1.msra.mxu0 0.0
        %2802 = vmatprep.subr.mxu0 0.0
        %2803 = vmatpush1.msra.mxu0 0.0
        %2804 = vmatprep.subr.mxu0 0.0
        %2805 = vmatpush1.msra.mxu0 0.0
        %2806 = vmatprep.subr.mxu0 0.0
        %2807 = vmatpush1.msra.mxu0 0.0
        %2808 = vmatprep.subr.mxu0 0.0
        %2809 = vmatpush1.msra.mxu0 0.0
        %2810 = vmatprep.subr.mxu0 0.0
        %2811 = vmatpush1.msra.mxu0 0.0
        %2812 = vmatprep.subr.mxu0 0.0
        %2813 = vmatpush1.msra.mxu0 0.0
        %2814 = vmatprep.subr.mxu0 0.0
        %2815 = vmatpush1.msra.mxu0 0.0
        %2816 = vmatprep.subr.mxu0 0.0
        %2817 = vmatpush1.msra.mxu0 0.0
        %2818 = vmatprep.subr.mxu0 0.0
        %2819 = vmatpush1.msra.mxu0 0.0
        %2820 = vmatprep.subr.mxu0 0.0
        %2821 = vmatpush1.msra.mxu0 0.0
        %2822 = vmatprep.subr.mxu0 0.0
        %2823 = vmatpush1.msra.mxu0 0.0
        %2824 = vmatprep.subr.mxu0 0.0
        %2825 = vmatpush1.msra.mxu0 0.0
        %2826 = vmatprep.subr.mxu0 0.0
        %2827 = vmatpush1.msra.mxu0 0.0
        %2828 = vmatprep.subr.mxu0 0.0
        %2829 = vmatpush1.msra.mxu0 0.0
        %2830 = vmatprep.subr.mxu0 0.0
        %2831 = vmatpush1.msra.mxu0 0.0
        %2832 = vmatprep.subr.mxu0 0.0
        %2833 = vmatpush1.msra.mxu0 0.0
        %2834 = vmatprep.subr.mxu0 0.0
        %2835 = vmatpush1.msra.mxu0 0.0
        %2836 = vmatprep.subr.mxu0 0.0
        %2837 = vmatpush1.msra.mxu0 0.0
        %2838 = vmatprep.subr.mxu0 0.0
        %2839 = vmatpush1.msra.mxu0 0.0
        %2840 = vmatprep.mubr.f32.mxu0 0.0
        %2841 = vmatmul.mubr.f32.gmra.mrb[0].mxu0 %v2771
        %v2842 = vpop.f32.mrb[0].mxu0
        %v2843 = vadd.f32 0.0, %v2842
        %v2844 = vpop.f32.mrb[0].mxu0
        %2845 = vmatprep.mubr.f32.mxu0 0.0
        %2846 = vmatmul.mubr.f32.gmra.mrb[0].mxu0 %v2774
        %v2847 = vpop.f32.mrb[0].mxu0
        %v2848 = vadd.f32 0.0, %v2847
        %v2849 = vpop.f32.mrb[0].mxu0
        %2850 = vdwg.mxu0
        %2851 = vrot.lane.b32.xlu0 %v2437, 112
        %v2852 = vpop.permute.xlu0 %2851
        %2853 = vrot.lane.b32.xlu0 %v2442, 112
        %v2854 = vpop.permute.xlu0 %2853
        %2855 = vrot.lane.b32.xlu0 %v2437, 80
        %v2856 = vpop.permute.xlu0 %2855
        %2857 = vrot.lane.b32.xlu0 %v2442, 80
        %v2858 = vpop.permute.xlu0 %2857
        %v2859 = vsel %vm1149, %v2852, 0
        %v2861 = vsel %vm1149, %v2854, 0
        %v2863 = vsel %vm1149, %v2856, 0
        %v2865 = vsel %vm1149, %v2858, 0
        %2867 = vmatprep.subr.mxu0 0.0
        %2868 = vmatpush1.xpose.msra.mxu0 %v2863
        %2869 = vmatprep.subr.mxu0 0.0
        %2870 = vmatpush1.xpose.msra.mxu0 %v2865
        %2871 = vmatprep.subr.mxu0 0.0
        %2872 = vmatpush1.xpose.msra.mxu0 0.0
        %2873 = vmatprep.subr.mxu0 0.0
        %2874 = vmatpush1.xpose.msra.mxu0 0.0
        %2875 = vmatprep.subr.mxu0 0.0
        %2876 = vmatpush1.xpose.msra.mxu0 0.0
        %2877 = vmatprep.subr.mxu0 0.0
        %2878 = vmatpush1.xpose.msra.mxu0 0.0
        %2879 = vmatprep.subr.mxu0 0.0
        %2880 = vmatpush1.xpose.msra.mxu0 0.0
        %2881 = vmatprep.subr.mxu0 0.0
        %2882 = vmatpush1.xpose.msra.mxu0 0.0
        %2883 = vmatprep.subr.mxu0 0.0
        %2884 = vmatpush1.xpose.msra.mxu0 0.0
        %2885 = vmatprep.subr.mxu0 0.0
        %2886 = vmatpush1.xpose.msra.mxu0 0.0
        %2887 = vmatprep.subr.mxu0 0.0
        %2888 = vmatpush1.xpose.msra.mxu0 0.0
        %2889 = vmatprep.subr.mxu0 0.0
        %2890 = vmatpush1.xpose.msra.mxu0 0.0
        %2891 = vmatprep.subr.mxu0 0.0
        %2892 = vmatpush1.xpose.msra.mxu0 0.0
        %2893 = vmatprep.subr.mxu0 0.0
        %2894 = vmatpush1.xpose.msra.mxu0 0.0
        %2895 = vmatprep.subr.mxu0 0.0
        %2896 = vmatpush1.xpose.msra.mxu0 0.0
        %2897 = vmatprep.subr.mxu0 0.0
        %2898 = vmatpush1.xpose.msra.mxu0 0.0
        %2899 = vmatprep.subr.mxu0 0.0
        %2900 = vmatpush1.xpose.msra.mxu0 0.0
        %2901 = vmatprep.subr.mxu0 0.0
        %2902 = vmatpush1.xpose.msra.mxu0 0.0
        %2903 = vmatprep.subr.mxu0 0.0
        %2904 = vmatpush1.xpose.msra.mxu0 0.0
        %2905 = vmatprep.subr.mxu0 0.0
        %2906 = vmatpush1.xpose.msra.mxu0 0.0
        %2907 = vmatprep.subr.mxu0 0.0
        %2908 = vmatpush1.xpose.msra.mxu0 0.0
        %2909 = vmatprep.subr.mxu0 0.0
        %2910 = vmatpush1.xpose.msra.mxu0 0.0
        %2911 = vmatprep.subr.mxu0 0.0
        %2912 = vmatpush1.xpose.msra.mxu0 0.0
        %2913 = vmatprep.subr.mxu0 0.0
        %2914 = vmatpush1.xpose.msra.mxu0 0.0
        %2915 = vmatprep.subr.mxu0 0.0
        %2916 = vmatpush1.xpose.msra.mxu0 0.0
        %2917 = vmatprep.subr.mxu0 0.0
        %2918 = vmatpush1.xpose.msra.mxu0 0.0
        %2919 = vmatprep.subr.mxu0 0.0
        %2920 = vmatpush1.xpose.msra.mxu0 0.0
        %2921 = vmatprep.subr.mxu0 0.0
        %2922 = vmatpush1.xpose.msra.mxu0 0.0
        %2923 = vmatprep.subr.mxu0 0.0
        %2924 = vmatpush1.xpose.msra.mxu0 0.0
        %2925 = vmatprep.subr.mxu0 0.0
        %2926 = vmatpush1.xpose.msra.mxu0 0.0
        %2927 = vmatprep.subr.mxu0 0.0
        %2928 = vmatpush1.xpose.msra.mxu0 0.0
        %2929 = vmatprep.subr.mxu0 0.0
        %2930 = vmatpush1.xpose.msra.mxu0 0.0
        %2931 = vmatprep.mubr.f32.mxu0 0.0
        %2932 = vmatmul.mubr.f32.gmra.mrb[0].mxu0 %v2859
        %v2933 = vpop.f32.mrb[0].mxu0
        %v2934 = vadd.f32 0.0, %v2933
        %v2935 = vpop.f32.mrb[0].mxu0
        %2936 = vmatprep.mubr.f32.mxu0 0.0
        %2937 = vmatmul.mubr.f32.gmra.mrb[0].mxu0 %v2861
        %v2938 = vpop.f32.mrb[0].mxu0
        %v2939 = vadd.f32 0.0, %v2938
        %v2940 = vpop.f32.mrb[0].mxu0
        %2941 = vdwg.mxu0
        %v2942 = vmul.f32 %v2934, 0.35355338
        %v2943 = vmul.f32 %v2939, 0.35355338
        %v2944 = vadd.f32 %v2942, %v1239
        %v2945 = vadd.f32 %v2943, %v1239
        %v2946 = vsel %vm892, %v2944, -inf
        %2947 = vmax.xlane.f32.xlu0 %v2946
        %v2948 = vpop.xlane.xlu0 %2947
        %v2949 = vsel %vm892, %v2945, -inf
        %2950 = vmax.xlane.f32.xlu0 %v2949
        %v2951 = vpop.xlane.xlu0 %2950
        %v2952 = vsub.f32 %v2944, %v2948
        %v2953 = vsub.f32 %v2945, %v2951
        %v2954 = vmul.f32 %v2952, 1.442695
        %v2955 = vpow.pop %v2954
        %v2956 = vmul.f32 %v2953, 1.442695
        %v2957 = vpow.pop %v2956
        %v2958 = vsel %vm892, %v2955, 0.0
        %2959 = vadd.xlane.f32.xlu0 %v2958
        %v2960 = vpop.xlane.xlu0 %2959
        %v2961 = vsel %vm892, %v2957, 0.0
        %2962 = vadd.xlane.f32.xlu0 %v2961
        %v2963 = vpop.xlane.xlu0 %2962
        %v2964 = vrcp.pop %v2960
        %v2965 = vrcp.pop %v2963
        %v2966 = vmul.f32 %v2955, %v2964
        %v2967 = vmul.f32 %v2957, %v2965
        %2968 = vrot.lane.b32.xlu0 %v2437, 48
        %v2969 = vpop.permute.xlu0 %2968
        %2970 = vrot.lane.b32.xlu0 %v2442, 48
        %v2971 = vpop.permute.xlu0 %2970
        %v2975 = vsel %vm892, %v2966, 0
        %v2978 = vsel %vm892, %v2967, 0
        %2980 = vmatprep.subr.mxu0 0.0
        %2981 = vmatpush1.msra.mxu0 %v2969
        %2982 = vmatprep.subr.mxu0 0.0
        %2983 = vmatpush1.msra.mxu0 %v2971
        %2984 = vmatprep.subr.mxu0 0.0
        %2985 = vmatpush1.msra.mxu0 0.0
        %2986 = vmatprep.subr.mxu0 0.0
        %2987 = vmatpush1.msra.mxu0 0.0
        %2988 = vmatprep.subr.mxu0 0.0
        %2989 = vmatpush1.msra.mxu0 0.0
        %2990 = vmatprep.subr.mxu0 0.0
        %2991 = vmatpush1.msra.mxu0 0.0
        %2992 = vmatprep.subr.mxu0 0.0
        %2993 = vmatpush1.msra.mxu0 0.0
        %2994 = vmatprep.subr.mxu0 0.0
        %2995 = vmatpush1.msra.mxu0 0.0
        %2996 = vmatprep.subr.mxu0 0.0
        %2997 = vmatpush1.msra.mxu0 0.0
        %2998 = vmatprep.subr.mxu0 0.0
        %2999 = vmatpush1.msra.mxu0 0.0
        %3000 = vmatprep.subr.mxu0 0.0
        %3001 = vmatpush1.msra.mxu0 0.0
        %3002 = vmatprep.subr.mxu0 0.0
        %3003 = vmatpush1.msra.mxu0 0.0
        %3004 = vmatprep.subr.mxu0 0.0
        %3005 = vmatpush1.msra.mxu0 0.0
        %3006 = vmatprep.subr.mxu0 0.0
        %3007 = vmatpush1.msra.mxu0 0.0
        %3008 = vmatprep.subr.mxu0 0.0
        %3009 = vmatpush1.msra.mxu0 0.0
        %3010 = vmatprep.subr.mxu0 0.0
        %3011 = vmatpush1.msra.mxu0 0.0
        %3012 = vmatprep.subr.mxu0 0.0
        %3013 = vmatpush1.msra.mxu0 0.0
        %3014 = vmatprep.subr.mxu0 0.0
        %3015 = vmatpush1.msra.mxu0 0.0
        %3016 = vmatprep.subr.mxu0 0.0
        %3017 = vmatpush1.msra.mxu0 0.0
        %3018 = vmatprep.subr.mxu0 0.0
        %3019 = vmatpush1.msra.mxu0 0.0
        %3020 = vmatprep.subr.mxu0 0.0
        %3021 = vmatpush1.msra.mxu0 0.0
        %3022 = vmatprep.subr.mxu0 0.0
        %3023 = vmatpush1.msra.mxu0 0.0
        %3024 = vmatprep.subr.mxu0 0.0
        %3025 = vmatpush1.msra.mxu0 0.0
        %3026 = vmatprep.subr.mxu0 0.0
        %3027 = vmatpush1.msra.mxu0 0.0
        %3028 = vmatprep.subr.mxu0 0.0
        %3029 = vmatpush1.msra.mxu0 0.0
        %3030 = vmatprep.subr.mxu0 0.0
        %3031 = vmatpush1.msra.mxu0 0.0
        %3032 = vmatprep.subr.mxu0 0.0
        %3033 = vmatpush1.msra.mxu0 0.0
        %3034 = vmatprep.subr.mxu0 0.0
        %3035 = vmatpush1.msra.mxu0 0.0
        %3036 = vmatprep.subr.mxu0 0.0
        %3037 = vmatpush1.msra.mxu0 0.0
        %3038 = vmatprep.subr.mxu0 0.0
        %3039 = vmatpush1.msra.mxu0 0.0
        %3040 = vmatprep.subr.mxu0 0.0
        %3041 = vmatpush1.msra.mxu0 0.0
        %3042 = vmatprep.subr.mxu0 0.0
        %3043 = vmatpush1.msra.mxu0 0.0
        %3044 = vmatprep.mubr.f32.mxu0 0.0
        %3045 = vmatmul.mubr.f32.gmra.mrb[0].mxu0 %v2975
        %v3046 = vpop.f32.mrb[0].mxu0
        %v3047 = vadd.f32 0.0, %v3046
        %v3048 = vpop.f32.mrb[0].mxu0
        %3049 = vmatprep.mubr.f32.mxu0 0.0
        %3050 = vmatmul.mubr.f32.gmra.mrb[0].mxu0 %v2978
        %v3051 = vpop.f32.mrb[0].mxu0
        %v3052 = vadd.f32 0.0, %v3051
        %v3053 = vpop.f32.mrb[0].mxu0
        %3054 = vdwg.mxu0
        %3055 = vrot.lane.b32.xlu0 %v2437, 104
        %v3056 = vpop.permute.xlu0 %3055
        %3057 = vrot.lane.b32.xlu0 %v2442, 104
        %v3058 = vpop.permute.xlu0 %3057
        %3059 = vrot.lane.b32.xlu0 %v2437, 72
        %v3060 = vpop.permute.xlu0 %3059
        %3061 = vrot.lane.b32.xlu0 %v2442, 72
        %v3062 = vpop.permute.xlu0 %3061
        %v3063 = vsel %vm1149, %v3056, 0
        %v3065 = vsel %vm1149, %v3058, 0
        %v3067 = vsel %vm1149, %v3060, 0
        %v3069 = vsel %vm1149, %v3062, 0
        %3071 = vmatprep.subr.mxu0 0.0
        %3072 = vmatpush1.xpose.msra.mxu0 %v3067
        %3073 = vmatprep.subr.mxu0 0.0
        %3074 = vmatpush1.xpose.msra.mxu0 %v3069
        %3075 = vmatprep.subr.mxu0 0.0
        %3076 = vmatpush1.xpose.msra.mxu0 0.0
        %3077 = vmatprep.subr.mxu0 0.0
        %3078 = vmatpush1.xpose.msra.mxu0 0.0
        %3079 = vmatprep.subr.mxu0 0.0
        %3080 = vmatpush1.xpose.msra.mxu0 0.0
        %3081 = vmatprep.subr.mxu0 0.0
        %3082 = vmatpush1.xpose.msra.mxu0 0.0
        %3083 = vmatprep.subr.mxu0 0.0
        %3084 = vmatpush1.xpose.msra.mxu0 0.0
        %3085 = vmatprep.subr.mxu0 0.0
        %3086 = vmatpush1.xpose.msra.mxu0 0.0
        %3087 = vmatprep.subr.mxu0 0.0
        %3088 = vmatpush1.xpose.msra.mxu0 0.0
        %3089 = vmatprep.subr.mxu0 0.0
        %3090 = vmatpush1.xpose.msra.mxu0 0.0
        %3091 = vmatprep.subr.mxu0 0.0
        %3092 = vmatpush1.xpose.msra.mxu0 0.0
        %3093 = vmatprep.subr.mxu0 0.0
        %3094 = vmatpush1.xpose.msra.mxu0 0.0
        %3095 = vmatprep.subr.mxu0 0.0
        %3096 = vmatpush1.xpose.msra.mxu0 0.0
        %3097 = vmatprep.subr.mxu0 0.0
        %3098 = vmatpush1.xpose.msra.mxu0 0.0
        %3099 = vmatprep.subr.mxu0 0.0
        %3100 = vmatpush1.xpose.msra.mxu0 0.0
        %3101 = vmatprep.subr.mxu0 0.0
        %3102 = vmatpush1.xpose.msra.mxu0 0.0
        %3103 = vmatprep.subr.mxu0 0.0
        %3104 = vmatpush1.xpose.msra.mxu0 0.0
        %3105 = vmatprep.subr.mxu0 0.0
        %3106 = vmatpush1.xpose.msra.mxu0 0.0
        %3107 = vmatprep.subr.mxu0 0.0
        %3108 = vmatpush1.xpose.msra.mxu0 0.0
        %3109 = vmatprep.subr.mxu0 0.0
        %3110 = vmatpush1.xpose.msra.mxu0 0.0
        %3111 = vmatprep.subr.mxu0 0.0
        %3112 = vmatpush1.xpose.msra.mxu0 0.0
        %3113 = vmatprep.subr.mxu0 0.0
        %3114 = vmatpush1.xpose.msra.mxu0 0.0
        %3115 = vmatprep.subr.mxu0 0.0
        %3116 = vmatpush1.xpose.msra.mxu0 0.0
        %3117 = vmatprep.subr.mxu0 0.0
        %3118 = vmatpush1.xpose.msra.mxu0 0.0
        %3119 = vmatprep.subr.mxu0 0.0
        %3120 = vmatpush1.xpose.msra.mxu0 0.0
        %3121 = vmatprep.subr.mxu0 0.0
        %3122 = vmatpush1.xpose.msra.mxu0 0.0
        %3123 = vmatprep.subr.mxu0 0.0
        %3124 = vmatpush1.xpose.msra.mxu0 0.0
        %3125 = vmatprep.subr.mxu0 0.0
        %3126 = vmatpush1.xpose.msra.mxu0 0.0
        %3127 = vmatprep.subr.mxu0 0.0
        %3128 = vmatpush1.xpose.msra.mxu0 0.0
        %3129 = vmatprep.subr.mxu0 0.0
        %3130 = vmatpush1.xpose.msra.mxu0 0.0
        %3131 = vmatprep.subr.mxu0 0.0
        %3132 = vmatpush1.xpose.msra.mxu0 0.0
        %3133 = vmatprep.subr.mxu0 0.0
        %3134 = vmatpush1.xpose.msra.mxu0 0.0
        %3135 = vmatprep.mubr.f32.mxu0 0.0
        %3136 = vmatmul.mubr.f32.gmra.mrb[0].mxu0 %v3063
        %v3137 = vpop.f32.mrb[0].mxu0
        %v3138 = vadd.f32 0.0, %v3137
        %v3139 = vpop.f32.mrb[0].mxu0
        %3140 = vmatprep.mubr.f32.mxu0 0.0
        %3141 = vmatmul.mubr.f32.gmra.mrb[0].mxu0 %v3065
        %v3142 = vpop.f32.mrb[0].mxu0
        %v3143 = vadd.f32 0.0, %v3142
        %v3144 = vpop.f32.mrb[0].mxu0
        %3145 = vdwg.mxu0
        %v3146 = vmul.f32 %v3138, 0.35355338
        %v3147 = vmul.f32 %v3143, 0.35355338
        %v3148 = vadd.f32 %v3146, %v1239
        %v3149 = vadd.f32 %v3147, %v1239
        %v3150 = vsel %vm892, %v3148, -inf
        %3151 = vmax.xlane.f32.xlu0 %v3150
        %v3152 = vpop.xlane.xlu0 %3151
        %v3153 = vsel %vm892, %v3149, -inf
        %3154 = vmax.xlane.f32.xlu0 %v3153
        %v3155 = vpop.xlane.xlu0 %3154
        %v3156 = vsub.f32 %v3148, %v3152
        %v3157 = vsub.f32 %v3149, %v3155
        %v3158 = vmul.f32 %v3156, 1.442695
        %v3159 = vpow.pop %v3158
        %v3160 = vmul.f32 %v3157, 1.442695
        %v3161 = vpow.pop %v3160
        %v3162 = vsel %vm892, %v3159, 0.0
        %3163 = vadd.xlane.f32.xlu0 %v3162
        %v3164 = vpop.xlane.xlu0 %3163
        %v3165 = vsel %vm892, %v3161, 0.0
        %3166 = vadd.xlane.f32.xlu0 %v3165
        %v3167 = vpop.xlane.xlu0 %3166
        %v3168 = vrcp.pop %v3164
        %v3169 = vrcp.pop %v3167
        %v3170 = vmul.f32 %v3159, %v3168
        %v3171 = vmul.f32 %v3161, %v3169
        %3172 = vrot.lane.b32.xlu0 %v2437, 40
        %v3173 = vpop.permute.xlu0 %3172
        %3174 = vrot.lane.b32.xlu0 %v2442, 40
        %v3175 = vpop.permute.xlu0 %3174
        %v3179 = vsel %vm892, %v3170, 0
        %v3182 = vsel %vm892, %v3171, 0
        %3184 = vmatprep.subr.mxu0 0.0
        %3185 = vmatpush1.msra.mxu0 %v3173
        %3186 = vmatprep.subr.mxu0 0.0
        %3187 = vmatpush1.msra.mxu0 %v3175
        %3188 = vmatprep.subr.mxu0 0.0
        %3189 = vmatpush1.msra.mxu0 0.0
        %3190 = vmatprep.subr.mxu0 0.0
        %3191 = vmatpush1.msra.mxu0 0.0
        %3192 = vmatprep.subr.mxu0 0.0
        %3193 = vmatpush1.msra.mxu0 0.0
        %3194 = vmatprep.subr.mxu0 0.0
        %3195 = vmatpush1.msra.mxu0 0.0
        %3196 = vmatprep.subr.mxu0 0.0
        %3197 = vmatpush1.msra.mxu0 0.0
        %3198 = vmatprep.subr.mxu0 0.0
        %3199 = vmatpush1.msra.mxu0 0.0
        %3200 = vmatprep.subr.mxu0 0.0
        %3201 = vmatpush1.msra.mxu0 0.0
        %3202 = vmatprep.subr.mxu0 0.0
        %3203 = vmatpush1.msra.mxu0 0.0
        %3204 = vmatprep.subr.mxu0 0.0
        %3205 = vmatpush1.msra.mxu0 0.0
        %3206 = vmatprep.subr.mxu0 0.0
        %3207 = vmatpush1.msra.mxu0 0.0
        %3208 = vmatprep.subr.mxu0 0.0
        %3209 = vmatpush1.msra.mxu0 0.0
        %3210 = vmatprep.subr.mxu0 0.0
        %3211 = vmatpush1.msra.mxu0 0.0
        %3212 = vmatprep.subr.mxu0 0.0
        %3213 = vmatpush1.msra.mxu0 0.0
        %3214 = vmatprep.subr.mxu0 0.0
        %3215 = vmatpush1.msra.mxu0 0.0
        %3216 = vmatprep.subr.mxu0 0.0
        %3217 = vmatpush1.msra.mxu0 0.0
        %3218 = vmatprep.subr.mxu0 0.0
        %3219 = vmatpush1.msra.mxu0 0.0
        %3220 = vmatprep.subr.mxu0 0.0
        %3221 = vmatpush1.msra.mxu0 0.0
        %3222 = vmatprep.subr.mxu0 0.0
        %3223 = vmatpush1.msra.mxu0 0.0
        %3224 = vmatprep.subr.mxu0 0.0
        %3225 = vmatpush1.msra.mxu0 0.0
        %3226 = vmatprep.subr.mxu0 0.0
        %3227 = vmatpush1.msra.mxu0 0.0
        %3228 = vmatprep.subr.mxu0 0.0
        %3229 = vmatpush1.msra.mxu0 0.0
        %3230 = vmatprep.subr.mxu0 0.0
        %3231 = vmatpush1.msra.mxu0 0.0
        %3232 = vmatprep.subr.mxu0 0.0
        %3233 = vmatpush1.msra.mxu0 0.0
        %3234 = vmatprep.subr.mxu0 0.0
        %3235 = vmatpush1.msra.mxu0 0.0
        %3236 = vmatprep.subr.mxu0 0.0
        %3237 = vmatpush1.msra.mxu0 0.0
        %3238 = vmatprep.subr.mxu0 0.0
        %3239 = vmatpush1.msra.mxu0 0.0
        %3240 = vmatprep.subr.mxu0 0.0
        %3241 = vmatpush1.msra.mxu0 0.0
        %3242 = vmatprep.subr.mxu0 0.0
        %3243 = vmatpush1.msra.mxu0 0.0
        %3244 = vmatprep.subr.mxu0 0.0
        %3245 = vmatpush1.msra.mxu0 0.0
        %3246 = vmatprep.subr.mxu0 0.0
        %3247 = vmatpush1.msra.mxu0 0.0
        %3248 = vmatprep.mubr.f32.mxu0 0.0
        %3249 = vmatmul.mubr.f32.gmra.mrb[0].mxu0 %v3179
        %v3250 = vpop.f32.mrb[0].mxu0
        %v3251 = vadd.f32 0.0, %v3250
        %v3252 = vpop.f32.mrb[0].mxu0
        %3253 = vmatprep.mubr.f32.mxu0 0.0
        %3254 = vmatmul.mubr.f32.gmra.mrb[0].mxu0 %v3182
        %v3255 = vpop.f32.mrb[0].mxu0
        %v3256 = vadd.f32 0.0, %v3255
        %v3257 = vpop.f32.mrb[0].mxu0
        %3258 = vdwg.mxu0
        %3261 = vrot.lane.b32.xlu0 %v2843, 8
        %v3262 = vpop.permute.xlu0 %3261
        %3263 = vrot.lane.b32.xlu0 %v2848, 8
        %v3264 = vpop.permute.xlu0 %3263
        %3269 = vrot.lane.b32.xlu0 %v3047, 16
        %v3270 = vpop.permute.xlu0 %3269
        %3271 = vrot.lane.b32.xlu0 %v3052, 16
        %v3272 = vpop.permute.xlu0 %3271
        %3277 = vrot.lane.b32.xlu0 %v3251, 24
        %v3278 = vpop.permute.xlu0 %3277
        %3279 = vrot.lane.b32.xlu0 %v3256, 24
        %v3280 = vpop.permute.xlu0 %3279
        %v3283 = vsel %vm1149, %v2639, %v3262
        %v3284 = vsel %vm1149, %v2644, %v3264
        %v3285 = vsel %vm892, %v3283, %v3270
        %v3286 = vsel %vm892, %v3284, %v3272
        %v3287 = vsel %vm1992, %v3285, %v3278
        %v3288 = vsel %vm1992, %v3286, %v3280
        %v3290 = vsel %vm1061, %v3287, 0
        %v3293 = vsel %vm1061, %v3288, 0
        %3295 = vmatprep.subr.mxu0 0.0
        %3296 = vmatpush1.msra.mxu0 %v1032
        %3297 = vmatprep.subr.mxu0 0.0
        %3298 = vmatpush1.msra.mxu0 %v1033
        %3299 = vmatprep.subr.mxu0 0.0
        %3300 = vmatpush1.msra.mxu0 %v1034
        %3301 = vmatprep.subr.mxu0 0.0
        %3302 = vmatpush1.msra.mxu0 %v1035
        %3303 = vmatprep.subr.mxu0 0.0
        %3304 = vmatpush1.msra.mxu0 0.0
        %3305 = vmatprep.subr.mxu0 0.0
        %3306 = vmatpush1.msra.mxu0 0.0
        %3307 = vmatprep.subr.mxu0 0.0
        %3308 = vmatpush1.msra.mxu0 0.0
        %3309 = vmatprep.subr.mxu0 0.0
        %3310 = vmatpush1.msra.mxu0 0.0
        %3311 = vmatprep.subr.mxu0 0.0
        %3312 = vmatpush1.msra.mxu0 0.0
        %3313 = vmatprep.subr.mxu0 0.0
        %3314 = vmatpush1.msra.mxu0 0.0
        %3315 = vmatprep.subr.mxu0 0.0
        %3316 = vmatpush1.msra.mxu0 0.0
        %3317 = vmatprep.subr.mxu0 0.0
        %3318 = vmatpush1.msra.mxu0 0.0
        %3319 = vmatprep.subr.mxu0 0.0
        %3320 = vmatpush1.msra.mxu0 0.0
        %3321 = vmatprep.subr.mxu0 0.0
        %3322 = vmatpush1.msra.mxu0 0.0
        %3323 = vmatprep.subr.mxu0 0.0
        %3324 = vmatpush1.msra.mxu0 0.0
        %3325 = vmatprep.subr.mxu0 0.0
        %3326 = vmatpush1.msra.mxu0 0.0
        %3327 = vmatprep.subr.mxu0 0.0
        %3328 = vmatpush1.msra.mxu0 0.0
        %3329 = vmatprep.subr.mxu0 0.0
        %3330 = vmatpush1.msra.mxu0 0.0
        %3331 = vmatprep.subr.mxu0 0.0
        %3332 = vmatpush1.msra.mxu0 0.0
        %3333 = vmatprep.subr.mxu0 0.0
        %3334 = vmatpush1.msra.mxu0 0.0
        %3335 = vmatprep.subr.mxu0 0.0
        %3336 = vmatpush1.msra.mxu0 0.0
        %3337 = vmatprep.subr.mxu0 0.0
        %3338 = vmatpush1.msra.mxu0 0.0
        %3339 = vmatprep.subr.mxu0 0.0
        %3340 = vmatpush1.msra.mxu0 0.0
        %3341 = vmatprep.subr.mxu0 0.0
        %3342 = vmatpush1.msra.mxu0 0.0
        %3343 = vmatprep.subr.mxu0 0.0
        %3344 = vmatpush1.msra.mxu0 0.0
        %3345 = vmatprep.subr.mxu0 0.0
        %3346 = vmatpush1.msra.mxu0 0.0
        %3347 = vmatprep.subr.mxu0 0.0
        %3348 = vmatpush1.msra.mxu0 0.0
        %3349 = vmatprep.subr.mxu0 0.0
        %3350 = vmatpush1.msra.mxu0 0.0
        %3351 = vmatprep.subr.mxu0 0.0
        %3352 = vmatpush1.msra.mxu0 0.0
        %3353 = vmatprep.subr.mxu0 0.0
        %3354 = vmatpush1.msra.mxu0 0.0
        %3355 = vmatprep.subr.mxu0 0.0
        %3356 = vmatpush1.msra.mxu0 0.0
        %3357 = vmatprep.subr.mxu0 0.0
        %3358 = vmatpush1.msra.mxu0 0.0
        %3359 = vmatprep.mubr.f32.mxu0 0.0
        %3360 = vmatmul.mubr.f32.gmra.mrb[0].mxu0 %v3290
        %v3361 = vpop.f32.mrb[0].mxu0
        %v3362 = vadd.f32 %v1999, %v3361
        %v3363 = vpop.f32.mrb[0].mxu0
        %3364 = vmatprep.mubr.f32.mxu0 0.0
        %3365 = vmatmul.mubr.f32.gmra.mrb[0].mxu0 %v3293
        %v3366 = vpop.f32.mrb[0].mxu0
        %v3367 = vadd.f32 %v1999, %v3366
        %v3368 = vpop.f32.mrb[0].mxu0
        %3369 = vdwg.mxu0
        %v3370 = vadd.f32 %v2362, %v3362
        %v3371 = vadd.f32 %v2363, %v3367
        %v3372 = vsel %vm1061, %v3370, 0.0
        %3373 = vadd.xlane.f32.xlu0 %v3372
        %v3374 = vpop.xlane.xlu0 %3373
        %v3375 = vsel %vm1061, %v3371, 0.0
        %3376 = vadd.xlane.f32.xlu0 %v3375
        %v3377 = vpop.xlane.xlu0 %3376
        %v3378 = vmul.f32 %v3374, %v2090
        %v3379 = vmul.f32 %v3377, %v2090
        %v3380 = vsub.f32 %v3370, %v3378
        %v3381 = vsub.f32 %v3371, %v3379
        %v3382 = vmul.f32 %v3380, %v3380
        %v3383 = vmul.f32 %v3381, %v3381
        %v3384 = vsel %vm1061, %v3382, 0.0
        %3385 = vadd.xlane.f32.xlu0 %v3384
        %v3386 = vpop.xlane.xlu0 %3385
        %v3387 = vsel %vm1061, %v3383, 0.0
        %3388 = vadd.xlane.f32.xlu0 %v3387
        %v3389 = vpop.xlane.xlu0 %3388
        %v3390 = vmul.f32 %v3386, %v2090
        %v3391 = vmul.f32 %v3389, %v2090
        %v3392 = vadd.f32 %v3390, 1e-12
        %v3393 = vadd.f32 %v3391, 1e-12
        %v3394 = vrsqrt.pop %v3392
        %v3395 = vrsqrt.pop %v3393
        %v3396 = vmul.f32 %v3380, %v3394
        %v3397 = vmul.f32 %v3381, %v3395
        %v3398 = vmul.f32 %v3396, %v2115
        %v3399 = vmul.f32 %v3397, %v2115
        %v3400 = vadd.f32 %v3398, %v2123
        %v3401 = vadd.f32 %v3399, %v2123
        %v3403 = vsel %vm1061, %v3400, 0
        %v3406 = vsel %vm1061, %v3401, 0
        %3408 = vmatprep.subr.mxu0 0.0
        %3409 = vmatpush1.msra.mxu0 %v1039
        %3410 = vmatprep.subr.mxu0 0.0
        %3411 = vmatpush1.msra.mxu0 %v1040
        %3412 = vmatprep.subr.mxu0 0.0
        %3413 = vmatpush1.msra.mxu0 %v1041
        %3414 = vmatprep.subr.mxu0 0.0
        %3415 = vmatpush1.msra.mxu0 %v1042
        %3416 = vmatprep.subr.mxu0 0.0
        %3417 = vmatpush1.msra.mxu0 0.0
        %3418 = vmatprep.subr.mxu0 0.0
        %3419 = vmatpush1.msra.mxu0 0.0
        %3420 = vmatprep.subr.mxu0 0.0
        %3421 = vmatpush1.msra.mxu0 0.0
        %3422 = vmatprep.subr.mxu0 0.0
        %3423 = vmatpush1.msra.mxu0 0.0
        %3424 = vmatprep.subr.mxu0 0.0
        %3425 = vmatpush1.msra.mxu0 0.0
        %3426 = vmatprep.subr.mxu0 0.0
        %3427 = vmatpush1.msra.mxu0 0.0
        %3428 = vmatprep.subr.mxu0 0.0
        %3429 = vmatpush1.msra.mxu0 0.0
        %3430 = vmatprep.subr.mxu0 0.0
        %3431 = vmatpush1.msra.mxu0 0.0
        %3432 = vmatprep.subr.mxu0 0.0
        %3433 = vmatpush1.msra.mxu0 0.0
        %3434 = vmatprep.subr.mxu0 0.0
        %3435 = vmatpush1.msra.mxu0 0.0
        %3436 = vmatprep.subr.mxu0 0.0
        %3437 = vmatpush1.msra.mxu0 0.0
        %3438 = vmatprep.subr.mxu0 0.0
        %3439 = vmatpush1.msra.mxu0 0.0
        %3440 = vmatprep.subr.mxu0 0.0
        %3441 = vmatpush1.msra.mxu0 0.0
        %3442 = vmatprep.subr.mxu0 0.0
        %3443 = vmatpush1.msra.mxu0 0.0
        %3444 = vmatprep.subr.mxu0 0.0
        %3445 = vmatpush1.msra.mxu0 0.0
        %3446 = vmatprep.subr.mxu0 0.0
        %3447 = vmatpush1.msra.mxu0 0.0
        %3448 = vmatprep.subr.mxu0 0.0
        %3449 = vmatpush1.msra.mxu0 0.0
        %3450 = vmatprep.subr.mxu0 0.0
        %3451 = vmatpush1.msra.mxu0 0.0
        %3452 = vmatprep.subr.mxu0 0.0
        %3453 = vmatpush1.msra.mxu0 0.0
        %3454 = vmatprep.subr.mxu0 0.0
        %3455 = vmatpush1.msra.mxu0 0.0
        %3456 = vmatprep.subr.mxu0 0.0
        %3457 = vmatpush1.msra.mxu0 0.0
        %3458 = vmatprep.subr.mxu0 0.0
        %3459 = vmatpush1.msra.mxu0 0.0
        %3460 = vmatprep.subr.mxu0 0.0
        %3461 = vmatpush1.msra.mxu0 0.0
        %3462 = vmatprep.subr.mxu0 0.0
        %3463 = vmatpush1.msra.mxu0 0.0
        %3464 = vmatprep.subr.mxu0 0.0
        %3465 = vmatpush1.msra.mxu0 0.0
        %3466 = vmatprep.subr.mxu0 0.0
        %3467 = vmatpush1.msra.mxu0 0.0
        %3468 = vmatprep.subr.mxu0 0.0
        %3469 = vmatpush1.msra.mxu0 0.0
        %3470 = vmatprep.subr.mxu0 0.0
        %3471 = vmatpush1.msra.mxu0 0.0
        %3472 = vmatprep.mubr.f32.mxu0 0.0
        %3473 = vmatmul.mubr.f32.gmra.mrb[0].mxu0 %v3403
        %v3474 = vpop.f32.mrb[0].mxu0
        %v3475 = vadd.f32 %v2131, %v3474
        %v3476 = vpop.f32.mrb[0].mxu0
        %3477 = vmatprep.mubr.f32.mxu0 0.0
        %3478 = vmatmul.mubr.f32.gmra.mrb[0].mxu0 %v3406
        %v3479 = vpop.f32.mrb[0].mxu0
        %v3480 = vadd.f32 %v2131, %v3479
        %v3481 = vpop.f32.mrb[0].mxu0
        %3482 = vdwg.mxu0
        %v3483 = vmul.f32 %v3475, %v3475
        %v3484 = vmul.f32 %v3480, %v3480
        %v3485 = vmul.f32 %v3475, %v3483
        %v3486 = vmul.f32 %v3480, %v3484
        %v3487 = vmul.f32 %v3485, 0.044715
        %v3488 = vmul.f32 %v3486, 0.044715
        %v3489 = vadd.f32 %v3475, %v3487
        %v3490 = vadd.f32 %v3480, %v3488
        %v3491 = vmul.f32 %v3489, 0.7978846
        %v3492 = vmul.f32 %v3490, 0.7978846
        %v3493 = vtanh.pop %v3491
        %v3494 = vtanh.pop %v3492
        %v3495 = vadd.f32 %v3493, 1.0
        %v3496 = vadd.f32 %v3494, 1.0
        %v3497 = vmul.f32 %v3495, 0.5
        %v3498 = vmul.f32 %v3496, 0.5
        %v3499 = vmul.f32 %v3475, %v3497
        %v3500 = vmul.f32 %v3480, %v3498
        %v3502 = vsel %vm2238, %v3499, 0
        %v3505 = vsel %vm2238, %v3500, 0
        %3507 = vmatprep.subr.mxu0 0.0
        %3508 = vmatpush1.msra.mxu0 %v1044
        %3509 = vmatprep.subr.mxu0 0.0
        %3510 = vmatpush1.msra.mxu0 %v1045
        %3511 = vmatprep.subr.mxu0 0.0
        %3512 = vmatpush1.msra.mxu0 %v1046
        %3513 = vmatprep.subr.mxu0 0.0
        %3514 = vmatpush1.msra.mxu0 %v1047
        %3515 = vmatprep.subr.mxu0 0.0
        %3516 = vmatpush1.msra.mxu0 %v1048
        %3517 = vmatprep.subr.mxu0 0.0
        %3518 = vmatpush1.msra.mxu0 %v1049
        %3519 = vmatprep.subr.mxu0 0.0
        %3520 = vmatpush1.msra.mxu0 %v1050
        %3521 = vmatprep.subr.mxu0 0.0
        %3522 = vmatpush1.msra.mxu0 %v1051
        %3523 = vmatprep.subr.mxu0 0.0
        %3524 = vmatpush1.msra.mxu0 0.0
        %3525 = vmatprep.subr.mxu0 0.0
        %3526 = vmatpush1.msra.mxu0 0.0
        %3527 = vmatprep.subr.mxu0 0.0
        %3528 = vmatpush1.msra.mxu0 0.0
        %3529 = vmatprep.subr.mxu0 0.0
        %3530 = vmatpush1.msra.mxu0 0.0
        %3531 = vmatprep.subr.mxu0 0.0
        %3532 = vmatpush1.msra.mxu0 0.0
        %3533 = vmatprep.subr.mxu0 0.0
        %3534 = vmatpush1.msra.mxu0 0.0
        %3535 = vmatprep.subr.mxu0 0.0
        %3536 = vmatpush1.msra.mxu0 0.0
        %3537 = vmatprep.subr.mxu0 0.0
        %3538 = vmatpush1.msra.mxu0 0.0
        %3539 = vmatprep.subr.mxu0 0.0
        %3540 = vmatpush1.msra.mxu0 0.0
        %3541 = vmatprep.subr.mxu0 0.0
        %3542 = vmatpush1.msra.mxu0 0.0
        %3543 = vmatprep.subr.mxu0 0.0
        %3544 = vmatpush1.msra.mxu0 0.0
        %3545 = vmatprep.subr.mxu0 0.0
        %3546 = vmatpush1.msra.mxu0 0.0
        %3547 = vmatprep.subr.mxu0 0.0
        %3548 = vmatpush1.msra.mxu0 0.0
        %3549 = vmatprep.subr.mxu0 0.0
        %3550 = vmatpush1.msra.mxu0 0.0
        %3551 = vmatprep.subr.mxu0 0.0
        %3552 = vmatpush1.msra.mxu0 0.0
        %3553 = vmatprep.subr.mxu0 0.0
        %3554 = vmatpush1.msra.mxu0 0.0
        %3555 = vmatprep.subr.mxu0 0.0
        %3556 = vmatpush1.msra.mxu0 0.0
        %3557 = vmatprep.subr.mxu0 0.0
        %3558 = vmatpush1.msra.mxu0 0.0
        %3559 = vmatprep.subr.mxu0 0.0
        %3560 = vmatpush1.msra.mxu0 0.0
        %3561 = vmatprep.subr.mxu0 0.0
        %3562 = vmatpush1.msra.mxu0 0.0
        %3563 = vmatprep.subr.mxu0 0.0
        %3564 = vmatpush1.msra.mxu0 0.0
        %3565 = vmatprep.subr.mxu0 0.0
        %3566 = vmatpush1.msra.mxu0 0.0
        %3567 = vmatprep.subr.mxu0 0.0
        %3568 = vmatpush1.msra.mxu0 0.0
        %3569 = vmatprep.subr.mxu0 0.0
        %3570 = vmatpush1.msra.mxu0 0.0
        %3571 = vmatprep.mubr.f32.mxu0 0.0
        %3572 = vmatmul.mubr.f32.gmra.mrb[0].mxu0 %v3502
        %v3573 = vpop.f32.mrb[0].mxu0
        %v3574 = vadd.f32 %v2236, %v3573
        %v3575 = vpop.f32.mrb[0].mxu0
        %3576 = vmatprep.mubr.f32.mxu0 0.0
        %3577 = vmatmul.mubr.f32.gmra.mrb[0].mxu0 %v3505
        %v3578 = vpop.f32.mrb[0].mxu0
        %v3579 = vadd.f32 %v2236, %v3578
        %v3580 = vpop.f32.mrb[0].mxu0
        %3581 = vdwg.mxu0
        %v3582 = vadd.f32 %v3400, %v3574
        %v3583 = vadd.f32 %v3401, %v3579
        %v3584 = vsel %vm1061, %v3582, 0.0
        %3585 = vadd.xlane.f32.xlu0 %v3584
        %v3586 = vpop.xlane.xlu0 %3585
        %v3587 = vsel %vm1061, %v3583, 0.0
        %3588 = vadd.xlane.f32.xlu0 %v3587
        %v3589 = vpop.xlane.xlu0 %3588
        %v3590 = vmul.f32 %v3586, %v2090
        %v3591 = vmul.f32 %v3589, %v2090
        %v3592 = vsub.f32 %v3582, %v3590
        %v3593 = vsub.f32 %v3583, %v3591
        %v3594 = vmul.f32 %v3592, %v3592
        %v3595 = vmul.f32 %v3593, %v3593
        %v3596 = vsel %vm1061, %v3594, 0.0
        %3597 = vadd.xlane.f32.xlu0 %v3596
        %v3598 = vpop.xlane.xlu0 %3597
        %v3599 = vsel %vm1061, %v3595, 0.0
        %3600 = vadd.xlane.f32.xlu0 %v3599
        %v3601 = vpop.xlane.xlu0 %3600
        %v3602 = vmul.f32 %v3598, %v2090
        %v3603 = vmul.f32 %v3601, %v2090
        %v3604 = vadd.f32 %v3602, 1e-12
        %v3605 = vadd.f32 %v3603, 1e-12
        %v3606 = vrsqrt.pop %v3604
        %v3607 = vrsqrt.pop %v3605
        %v3608 = vmul.f32 %v3592, %v3606
        %v3609 = vmul.f32 %v3593, %v3607
        %v3610 = vmul.f32 %v3608, %v2352
        %v3611 = vmul.f32 %v3609, %v2352
        %v3612 = vadd.f32 %v3610, %v2360
        %v3613 = vadd.f32 %v3611, %v2360
        %v3614 = vld [vmem:[%s19] sm:$0x1]
        %v3615 = vld [vmem:[%s20] sm:$0x1]
        %v3616 = vsel %vm1061, %v3612, 0.0
        %3617 = vadd.xlane.f32.xlu0 %v3616
        %v3618 = vpop.xlane.xlu0 %3617
        %v3619 = vsel %vm1061, %v3613, 0.0
        %3620 = vadd.xlane.f32.xlu0 %v3619
        %v3621 = vpop.xlane.xlu0 %3620
        %v3622 = vmul.f32 %v3618, %v2090
        %v3623 = vmul.f32 %v3621, %v2090
        %v3624 = vsub.f32 %v3612, %v3622
        %v3625 = vsub.f32 %v3613, %v3623
        %v3626 = vmul.f32 %v3624, %v3624
        %v3627 = vmul.f32 %v3625, %v3625
        %v3628 = vsel %vm1061, %v3626, 0.0
        %3629 = vadd.xlane.f32.xlu0 %v3628
        %v3630 = vpop.xlane.xlu0 %3629
        %v3631 = vsel %vm1061, %v3627, 0.0
        %3632 = vadd.xlane.f32.xlu0 %v3631
        %v3633 = vpop.xlane.xlu0 %3632
        %v3634 = vmul.f32 %v3630, %v2090
        %v3635 = vmul.f32 %v3633, %v2090
        %v3636 = vadd.f32 %v3634, 1e-05
        %v3637 = vadd.f32 %v3635, 1e-05
        %v3638 = vrsqrt.pop %v3636
        %v3639 = vrsqrt.pop %v3637
        %v3640 = vmul.f32 %v3624, %v3638
        %v3641 = vmul.f32 %v3625, %v3639
        %v3643 = vlaneseq
        %v3644 = vshrl.u32 %v3643, 7
        %v3645 = vsub.s32 0, %v3644
        %v3646 = vrot.slane %v3614, %v3645
        %v3648 = vmul.f32 %v3640, %v3646
        %v3649 = vmul.f32 %v3641, %v3646
        %v3651 = vlaneseq
        %v3652 = vshrl.u32 %v3651, 7
        %v3653 = vsub.s32 0, %v3652
        %v3654 = vrot.slane %v3615, %v3653
        %v3656 = vadd.f32 %v3648, %v3654
        %v3657 = vadd.f32 %v3649, %v3654
        %v3658 = vld [vmem:[%s21] sm:$0xff]
        %v3659 = vld [vmem:[%s21 + $0x8] sm:$0xff]
        %v3660 = vld [vmem:[%s21 + $0x10] sm:$0xff]
        %v3661 = vld [vmem:[%s21 + $0x18] sm:$0xff]
        %v3662 = vld [vmem:[%s22] sm:$0x1]
        %v3664 = vlaneseq
        %v3665 = vshrl.u32 %v3664, 7
        %v3666 = vsub.s32 0, %v3665
        %v3667 = vrot.slane %v3662, %v3666
        %v3670 = vsel %vm1061, %v3656, 0
        %v3673 = vsel %vm1061, %v3657, 0
        %3675 = vmatprep.subr.mxu0 0.0
        %3676 = vmatpush1.msra.mxu0 %v3658
        %3677 = vmatprep.subr.mxu0 0.0
        %3678 = vmatpush1.msra.mxu0 %v3659
        %3679 = vmatprep.subr.mxu0 0.0
        %3680 = vmatpush1.msra.mxu0 %v3660
        %3681 = vmatprep.subr.mxu0 0.0
        %3682 = vmatpush1.msra.mxu0 %v3661
        %3683 = vmatprep.subr.mxu0 0.0
        %3684 = vmatpush1.msra.mxu0 0.0
        %3685 = vmatprep.subr.mxu0 0.0
        %3686 = vmatpush1.msra.mxu0 0.0
        %3687 = vmatprep.subr.mxu0 0.0
        %3688 = vmatpush1.msra.mxu0 0.0
        %3689 = vmatprep.subr.mxu0 0.0
        %3690 = vmatpush1.msra.mxu0 0.0
        %3691 = vmatprep.subr.mxu0 0.0
        %3692 = vmatpush1.msra.mxu0 0.0
        %3693 = vmatprep.subr.mxu0 0.0
        %3694 = vmatpush1.msra.mxu0 0.0
        %3695 = vmatprep.subr.mxu0 0.0
        %3696 = vmatpush1.msra.mxu0 0.0
        %3697 = vmatprep.subr.mxu0 0.0
        %3698 = vmatpush1.msra.mxu0 0.0
        %3699 = vmatprep.subr.mxu0 0.0
        %3700 = vmatpush1.msra.mxu0 0.0
        %3701 = vmatprep.subr.mxu0 0.0
        %3702 = vmatpush1.msra.mxu0 0.0
        %3703 = vmatprep.subr.mxu0 0.0
        %3704 = vmatpush1.msra.mxu0 0.0
        %3705 = vmatprep.subr.mxu0 0.0
        %3706 = vmatpush1.msra.mxu0 0.0
        %3707 = vmatprep.subr.mxu0 0.0
        %3708 = vmatpush1.msra.mxu0 0.0
        %3709 = vmatprep.subr.mxu0 0.0
        %3710 = vmatpush1.msra.mxu0 0.0
        %3711 = vmatprep.subr.mxu0 0.0
        %3712 = vmatpush1.msra.mxu0 0.0
        %3713 = vmatprep.subr.mxu0 0.0
        %3714 = vmatpush1.msra.mxu0 0.0
        %3715 = vmatprep.subr.mxu0 0.0
        %3716 = vmatpush1.msra.mxu0 0.0
        %3717 = vmatprep.subr.mxu0 0.0
        %3718 = vmatpush1.msra.mxu0 0.0
        %3719 = vmatprep.subr.mxu0 0.0
        %3720 = vmatpush1.msra.mxu0 0.0
        %3721 = vmatprep.subr.mxu0 0.0
        %3722 = vmatpush1.msra.mxu0 0.0
        %3723 = vmatprep.subr.mxu0 0.0
        %3724 = vmatpush1.msra.mxu0 0.0
        %3725 = vmatprep.subr.mxu0 0.0
        %3726 = vmatpush1.msra.mxu0 0.0
        %3727 = vmatprep.subr.mxu0 0.0
        %3728 = vmatpush1.msra.mxu0 0.0
        %3729 = vmatprep.subr.mxu0 0.0
        %3730 = vmatpush1.msra.mxu0 0.0
        %3731 = vmatprep.subr.mxu0 0.0
        %3732 = vmatpush1.msra.mxu0 0.0
        %3733 = vmatprep.subr.mxu0 0.0
        %3734 = vmatpush1.msra.mxu0 0.0
        %3735 = vmatprep.subr.mxu0 0.0
        %3736 = vmatpush1.msra.mxu0 0.0
        %3737 = vmatprep.subr.mxu0 0.0
        %3738 = vmatpush1.msra.mxu0 0.0
        %3739 = vmatprep.mubr.f32.mxu0 0.0
        %3740 = vmatmul.mubr.f32.gmra.mrb[0].mxu0 %v3670
        %v3741 = vpop.f32.mrb[0].mxu0
        %v3742 = vadd.f32 %v3667, %v3741
        %v3743 = vpop.f32.mrb[0].mxu0
        %3744 = vmatprep.mubr.f32.mxu0 0.0
        %3745 = vmatmul.mubr.f32.gmra.mrb[0].mxu0 %v3673
        %v3746 = vpop.f32.mrb[0].mxu0
        %v3747 = vpop.f32.mrb[0].mxu0
        %3748 = vdwg.mxu0
        %vm3749 = vcmask 122880
        %3750 = vst.msk [vmem:[%s867] sm:$0x1] %vm3749, %v3742
        %v3751 = vld [vmem:[%s23] sm:$0x1]
        %v3752 = vld [vmem:[%s24] sm:$0x1]
        %v3754 = vlaneseq
        %v3755 = vshrl.u32 %v3754, 7
        %v3756 = vsub.s32 0, %v3755
        %v3757 = vrot.slane %v3751, %v3756
        %v3759 = vmul.f32 %v3640, %v3757
        %v3760 = vmul.f32 %v3641, %v3757
        %v3762 = vlaneseq
        %v3763 = vshrl.u32 %v3762, 7
        %v3764 = vsub.s32 0, %v3763
        %v3765 = vrot.slane %v3752, %v3764
        %v3767 = vadd.f32 %v3759, %v3765
        %v3768 = vadd.f32 %v3760, %v3765
        %v3769 = vld [vmem:[%s25] sm:$0xff]
        %v3770 = vld [vmem:[%s25 + $0x8] sm:$0xff]
        %v3771 = vld [vmem:[%s25 + $0x10] sm:$0xff]
        %v3772 = vld [vmem:[%s25 + $0x18] sm:$0xff]
        %v3773 = vld [vmem:[%s26] sm:$0x1]
        %v3775 = vlaneseq
        %v3776 = vshrl.u32 %v3775, 7
        %v3777 = vsub.s32 0, %v3776
        %v3778 = vrot.slane %v3773, %v3777
        %v3781 = vsel %vm1061, %v3767, 0
        %v3784 = vsel %vm1061, %v3768, 0
        %3786 = vmatprep.subr.mxu0 0.0
        %3787 = vmatpush1.msra.mxu0 %v3769
        %3788 = vmatprep.subr.mxu0 0.0
        %3789 = vmatpush1.msra.mxu0 %v3770
        %3790 = vmatprep.subr.mxu0 0.0
        %3791 = vmatpush1.msra.mxu0 %v3771
        %3792 = vmatprep.subr.mxu0 0.0
        %3793 = vmatpush1.msra.mxu0 %v3772
        %3794 = vmatprep.subr.mxu0 0.0
        %3795 = vmatpush1.msra.mxu0 0.0
        %3796 = vmatprep.subr.mxu0 0.0
        %3797 = vmatpush1.msra.mxu0 0.0
        %3798 = vmatprep.subr.mxu0 0.0
        %3799 = vmatpush1.msra.mxu0 0.0
        %3800 = vmatprep.subr.mxu0 0.0
        %3801 = vmatpush1.msra.mxu0 0.0
        %3802 = vmatprep.subr.mxu0 0.0
        %3803 = vmatpush1.msra.mxu0 0.0
        %3804 = vmatprep.subr.mxu0 0.0
        %3805 = vmatpush1.msra.mxu0 0.0
        %3806 = vmatprep.subr.mxu0 0.0
        %3807 = vmatpush1.msra.mxu0 0.0
        %3808 = vmatprep.subr.mxu0 0.0
        %3809 = vmatpush1.msra.mxu0 0.0
        %3810 = vmatprep.subr.mxu0 0.0
        %3811 = vmatpush1.msra.mxu0 0.0
        %3812 = vmatprep.subr.mxu0 0.0
        %3813 = vmatpush1.msra.mxu0 0.0
        %3814 = vmatprep.subr.mxu0 0.0
        %3815 = vmatpush1.msra.mxu0 0.0
        %3816 = vmatprep.subr.mxu0 0.0
        %3817 = vmatpush1.msra.mxu0 0.0
        %3818 = vmatprep.subr.mxu0 0.0
        %3819 = vmatpush1.msra.mxu0 0.0
        %3820 = vmatprep.subr.mxu0 0.0
        %3821 = vmatpush1.msra.mxu0 0.0
        %3822 = vmatprep.subr.mxu0 0.0
        %3823 = vmatpush1.msra.mxu0 0.0
        %3824 = vmatprep.subr.mxu0 0.0
        %3825 = vmatpush1.msra.mxu0 0.0
        %3826 = vmatprep.subr.mxu0 0.0
        %3827 = vmatpush1.msra.mxu0 0.0
        %3828 = vmatprep.subr.mxu0 0.0
        %3829 = vmatpush1.msra.mxu0 0.0
        %3830 = vmatprep.subr.mxu0 0.0
        %3831 = vmatpush1.msra.mxu0 0.0
        %3832 = vmatprep.subr.mxu0 0.0
        %3833 = vmatpush1.msra.mxu0 0.0
        %3834 = vmatprep.subr.mxu0 0.0
        %3835 = vmatpush1.msra.mxu0 0.0
        %3836 = vmatprep.subr.mxu0 0.0
        %3837 = vmatpush1.msra.mxu0 0.0
        %3838 = vmatprep.subr.mxu0 0.0
        %3839 = vmatpush1.msra.mxu0 0.0
        %3840 = vmatprep.subr.mxu0 0.0
        %3841 = vmatpush1.msra.mxu0 0.0
        %3842 = vmatprep.subr.mxu0 0.0
        %3843 = vmatpush1.msra.mxu0 0.0
        %3844 = vmatprep.subr.mxu0 0.0
        %3845 = vmatpush1.msra.mxu0 0.0
        %3846 = vmatprep.subr.mxu0 0.0
        %3847 = vmatpush1.msra.mxu0 0.0
        %3848 = vmatprep.subr.mxu0 0.0
        %3849 = vmatpush1.msra.mxu0 0.0
        %3850 = vmatprep.mubr.f32.mxu0 0.0
        %3851 = vmatmul.mubr.f32.gmra.mrb[0].mxu0 %v3781
        %v3852 = vpop.f32.mrb[0].mxu0
        %v3853 = vadd.f32 %v3778, %v3852
        %v3854 = vpop.f32.mrb[0].mxu0
        %3855 = vmatprep.mubr.f32.mxu0 0.0
        %3856 = vmatmul.mubr.f32.gmra.mrb[0].mxu0 %v3784
        %v3857 = vpop.f32.mrb[0].mxu0
        %v3858 = vadd.f32 %v3778, %v3857
        %v3859 = vpop.f32.mrb[0].mxu0
        %3860 = vdwg.mxu0
        %v3861 = vld [vmem:[%s887] sm:$0xff]
        %v3862 = vld [vmem:[%s887 + $0x8] sm:$0xff]
        %vm3863 = vcmp.gt.f32.partialorder %v3861, 0.5
        %vm3864 = vcmp.gt.f32.partialorder %v3862, 0.5
        %v3865 = vsel %vm3863, 1, 0
        %v3866 = vsel %vm3864, 1, 0
        %3867 = vset.pattern.permute.xlu0 0
        %3868 = vperm.xlu0 %3867, %v3865
        %v3869 = vpop.permute.xlu0 %3868
        %3870 = vset.pattern.permute.xlu0 0
        %3871 = vperm.xlu0 %3870, %v3866
        %v3872 = vpop.permute.xlu0 %3871
        %vm3873 = vcmp.eq.s32.totalorder %v3869, 1
        %vm3874 = vcmp.eq.s32.totalorder %v3872, 1
        %v3875 = vsel %vm3873, 0.0, %v3853
        %v3876 = vsel %vm3874, 0.0, %v3858
        %3877 = vst.msk [vmem:[%s874] sm:$0xff] %vm892, %v3875
        %3878 = vst.msk [vmem:[%s874 + $0x8] sm:$0xff] %vm892, %v3876
        %s3879 = sand.u32 %s636, 1
        %s3880 = scalar_lea.sflag [#allocation3], %s3879
        %s3881 = sand.u32 %s636, 1
        %s3882 = scalar_lea.vmem [#allocation2], %s3881
        %s3883 = sand.u32 %s662, 1
        %s3884 = scalar_lea.sflag [#allocation5], %s3883
        %s3885 = sand.u32 %s662, 1
        %s3886 = smul.addr %s3885, 16
        %s3887 = scalar_lea.vmem [#allocation4], %s3886
        // Predicated region
        $region129: #{text_encoder_forward.1} parent=127 // pred_check
          %p3888 = pneg %p646
        $region130: #{text_encoder_forward.1} parent=127 // pred_check_branch
          %3890 = sbr.rel (%p3888) target = $region132
        $region131: #{text_encoder_forward.1} parent=127 // pred_region
          %s3892 = ssub.s32 16, 16
          %3893 = vsyncadd %s3880, %s3892
          %s3894 = smul.addr %s46, 16
          %s3895 = scalar_lea.hbm %s27, %s3894
          %s3897 = sshll.u32 %s3882, 4
          %s3898 = int_to_ptr.vmem [resolvable:$true] %s3897
          %3900 = dma.vmem_to_hbm [thread:$0]  %s3898, 16, %s3895, %s3880
        $region132: #{text_encoder_forward.1} parent=127 // pred_fallthru
          _
        // Predicated region
        $region133: #{text_encoder_forward.1} parent=127 // pred_check
          %p3901 = pneg %p672
        $region134: #{text_encoder_forward.1} parent=127 // pred_check_branch
          %3903 = sbr.rel (%p3901) target = $region136
        $region135: #{text_encoder_forward.1} parent=127 // pred_region
          %s3905 = ssub.s32 256, 256
          %3906 = vsyncadd %s3884, %s3905
          %s3907 = smul.addr %s46, 2
          %s3908 = smul.addr %s3907, 128
          %s3909 = scalar_lea.hbm %s28, %s3908
          %s3910 = sshll.u32 %s3887, 4
          %s3911 = int_to_ptr.vmem [resolvable:$true] %s3910
          %3916 = dma.vmem_to_hbm [thread:$0]  %s3911, 256, %s3909, %s3884, 128, 128, 8
        $region136: #{text_encoder_forward.1} parent=127 // pred_fallthru
          _
      $region128: #{text_encoder_forward.1} parent=5 // pred_fallthru
        _
      %p3917 = scmp.le.s32.totalorder 2, %s41
      // Predicated region
      $region137: #{text_encoder_forward.1} parent=5 // pred_check
        %p3918 = pneg %p3917
      $region138: #{text_encoder_forward.1} parent=5 // pred_check_branch
        %3920 = sbr.rel (%p3918) target = $region140
      $region139: #{text_encoder_forward.1} parent=5 // pred_region
        %s3921 = ssub.s32 %s41, 2
        // Predicated region
        $region141: #{text_encoder_forward.1} parent=139 // pred_check
          %p3922 = pneg %p652
        $region142: #{text_encoder_forward.1} parent=139 // pred_check_branch
          %3924 = sbr.rel (%p3922) target = $region144
        $region143: #{text_encoder_forward.1} parent=139 // pred_region
          %s3925 = sand.u32 %s637, 1
          %s3926 = scalar_lea.sflag [#allocation3], %s3925
          %s3927 = sand.u32 %s637, 1
          %s3928 = scalar_lea.vmem [#allocation2], %s3927
          %3929 = dma.done %s3926, 16
        $region144: #{text_encoder_forward.1} parent=139 // pred_fallthru
          _
        // Predicated region
        $region145: #{text_encoder_forward.1} parent=139 // pred_check
          %p3930 = pneg %p678
        $region146: #{text_encoder_forward.1} parent=139 // pred_check_branch
          %3932 = sbr.rel (%p3930) target = $region148
        $region147: #{text_encoder_forward.1} parent=139 // pred_region
          %s3933 = sand.u32 %s663, 1
          %s3934 = scalar_lea.sflag [#allocation5], %s3933
          %s3935 = sand.u32 %s663, 1
          %s3936 = smul.addr %s3935, 16
          %s3937 = scalar_lea.vmem [#allocation4], %s3936
          %3938 = dma.done %s3934, 256
        $region148: #{text_encoder_forward.1} parent=139 // pred_fallthru
          _
      $region140: #{text_encoder_forward.1} parent=5 // pred_fallthru
        _
    $region6: #{text_encoder_forward.1} parent=1 // loop_footer
      %s45 = sadd.s32 1, %s41
    $region7: #{text_encoder_forward.1} parent=1 // loop_footer_branch
      %40 = sbr.rel target = $region3
    $region8: #{text_encoder_forward.1} parent=1 // loop_exit
      _
    %3939 = vsyncpa [#allocation3], 1
    %s3940 = scalar_lea.sflag [#allocation3], 1
    %3941 = vsyncpa %s3940, 1
    %3942 = vsyncpa [#allocation5], 1
    %s3943 = scalar_lea.sflag [#allocation5], 1
    %3944 = vsyncpa %s3943, 1

</llo_original>
